<compile_context>
chip_gen: v5e
topology: v5e:2x2
jax: 0.10.0
libtpu: 0.0.40
codegen_flags: <defaults>
</compile_context>

<pallas_src>
import math

import jax
import jax.numpy as jnp
from jax import lax
from jax.experimental import pallas as pl
from jax.experimental.pallas import tpu as pltpu

EPS = 1e-5  # torch nn.LayerNorm default


# ---------------------------------------------------------------------------
# helpers
# ---------------------------------------------------------------------------
def _pick_tile(size, target):
    """Largest multiple-of-8 divisor of `size` that is <= target, else `size`."""
    if size <= target:
        return size
    t = (target // 8) * 8
    while t >= 8:
        if size % t == 0:
            return t
        t -= 8
    return size


# ---------------------------------------------------------------------------
# kernel factory
# ---------------------------------------------------------------------------
def make_block_kernel(num_heads, head_dim, seq_len, *, mm_dtype, causal,
                      q_tile, kv_tile, approx_recip, use_exact_gelu):
    H, hd, S = num_heads, head_dim, seq_len
    n_q = S // q_tile
    n_kv = S // kv_tile
    f32 = jnp.float32

    def layer_norm(v, g, b):
        # two-pass (centered) variance: robust against cancellation.
        mu = jnp.mean(v, axis=-1, keepdims=True)
        xc = v - mu
        var = jnp.mean(xc * xc, axis=-1, keepdims=True)
        return xc * lax.rsqrt(var + EPS) * g + b

    def _erf(z):
        # Abramowitz & Stegun 7.1.26 (max abs err ~1.5e-7); divide on the EUP.
        a1, a2, a3, a4, a5 = (0.254829592, -0.284496736, 1.421413741,
                              -1.453152027, 1.061405429)
        p = 0.3275911
        sgn = jnp.where(z >= 0.0, 1.0, -1.0)
        az = jnp.abs(z)
        t = pl.reciprocal(1.0 + p * az, approx=approx_recip)
        poly = ((((a5 * t + a4) * t + a3) * t + a2) * t + a1) * t
        return sgn * (1.0 - poly * jnp.exp(-az * az))

    def gelu(v):
        if use_exact_gelu:
            # torch nn.GELU() default = exact (erf) GELU -- f32 path.
            return 0.5 * v * (1.0 + _erf(v * (1.0 / math.sqrt(2.0))))
        # bf16 path: tanh GELU (1 EUP op instead of exp + reciprocal).
        c = math.sqrt(2.0 / math.pi)
        return 0.5 * v * (1.0 + jnp.tanh(c * (v + 0.044715 * v * v * v)))

    def kernel(x_ref,
               ln1g_ref, ln1b_ref, wq_ref, bq_ref, wk_ref, bk_ref,
               wv_ref, bv_ref, wo_ref, bo_ref, ln2g_ref, ln2b_ref,
               w1_ref, b1_ref, w2_ref, b2_ref,
               out_ref,
               q_scr, k_scr, v_scr):
        x = x_ref[0]                                        # (S, E) f32
        nx = layer_norm(x, ln1g_ref[...], ln1b_ref[...])
        nx_mm = nx.astype(mm_dtype)                         # cast once

        # ---- head-major Q/K/V projections into VMEM scratch (H, S, hd) ----
        # weight refs are (H, E, hd); static leading-axis ref views -> no
        # lane-dim slicing / stacking of activations.  Scale is pre-folded
        # into wq / bq in the wrapper.
        for h in range(H):
            q_scr[h] = (jnp.dot(nx_mm, wq_ref[h], preferred_element_type=f32)
                        + bq_ref[h]).astype(mm_dtype)
            k_scr[h] = (jnp.dot(nx_mm, wk_ref[h], preferred_element_type=f32)
                        + bk_ref[h]).astype(mm_dtype)
            v_scr[h] = (jnp.dot(nx_mm, wv_ref[h], preferred_element_type=f32)
                        + bv_ref[h]).astype(mm_dtype)

        # ---- flash-style attention + fused out-proj / LN2 / MLP per q-tile --
        for qi in range(n_q):
            q0 = qi * q_tile
            qt = q_scr[:, pl.ds(q0, q_tile), :]             # (H, Tq, hd)

            if causal:
                kv_hi = (q0 + q_tile - 1) // kv_tile + 1    # static
            else:
                kv_hi = n_kv

            def kv_step(j, carry, q0=q0, qt=qt):
                m_p, l_p, acc_p = carry
                k0 = pl.multiple_of(j * kv_tile, kv_tile)
                kt = k_scr[:, pl.ds(k0, kv_tile), :]        # (H, Tkv, hd)
                vt = v_scr[:, pl.ds(k0, kv_tile), :]
                s = jnp.einsum("hqd,hkd->hqk", qt, kt,
                               preferred_element_type=f32)  # (H, Tq, Tkv)
                if causal:
                    # one 2-D comparison, broadcast over heads
                    row = q0 + lax.broadcasted_iota(jnp.int32,
                                                    (q_tile, kv_tile), 0)
                    col = k0 + lax.broadcasted_iota(jnp.int32,
                                                    (q_tile, kv_tile), 1)
                    s = jnp.where((row >= col)[None], s, -jnp.inf)
                m_n = jnp.maximum(m_p, jnp.max(s, axis=-1, keepdims=True))
                alpha = jnp.exp(m_p - m_n)
                p = jnp.exp(s - m_n)
                l_n = alpha * l_p + jnp.sum(p, axis=-1, keepdims=True)
                acc_n = alpha * acc_p + jnp.einsum(
                    "hqk,hkd->hqd", p.astype(mm_dtype), vt,
                    preferred_element_type=f32)
                return m_n, l_n, acc_n

            m0 = jnp.full((H, q_tile, 1), -jnp.inf, dtype=f32)
            l0 = jnp.zeros((H, q_tile, 1), dtype=f32)
            a0 = jnp.zeros((H, q_tile, hd), dtype=f32)
            _, l_f, acc_f = lax.fori_loop(0, kv_hi, kv_step, (m0, l0, a0))

            o = acc_f * pl.reciprocal(l_f, approx=approx_recip)  # (H, Tq, hd)

            # output projection: per-head accumulation with (H, hd, E) wo;
            # no lane-dim concatenation of heads.
            attn = bo_ref[...]                                   # (1, E)
            for h in range(H):
                attn = attn + jnp.dot(o[h].astype(mm_dtype), wo_ref[h],
                                      preferred_element_type=f32)

            xt = x[q0:q0 + q_tile, :] + attn        # residual (dropout = id)

            # ---- pre-LN feed-forward (row-wise, fused into the q-tile) ----
            nx2 = layer_norm(xt, ln2g_ref[...], ln2b_ref[...])
            h1 = jnp.dot(nx2.astype(mm_dtype), w1_ref[...],
                         preferred_element_type=f32) + b1_ref[...]
            h1 = gelu(h1)
            ff = jnp.dot(h1.astype(mm_dtype), w2_ref[...],
                         preferred_element_type=f32) + b2_ref[...]

            out_ref[0, pl.ds(q0, q_tile), :] = xt + ff   # residual (dropout=id)

    return kernel


# ---------------------------------------------------------------------------
# wrapper
# ---------------------------------------------------------------------------
def transformer_block_forward(x, params, *, num_heads, causal=False,
                              mm_dtype=jnp.bfloat16,
                              q_tile_target=256, kv_tile_target=256):
    """Forward pass of TransformerBlock. x: (B, S, E) float32."""
    B, S, E = x.shape
    assert E % num_heads == 0
    hd = E // num_heads
    hidden = params["w1"].shape[1]
    x = x.astype(jnp.float32)

    exact = jnp.dtype(mm_dtype) == jnp.dtype(jnp.float32)
    approx_recip = not exact
    inv_scale = 1.0 / math.sqrt(hd)

    # ---- weight layout prep (host side, free) ----
    def heads_w(w):   # (E, E) (in,out) -> (H, E, hd)
        return w.reshape(E, num_heads, hd).transpose(1, 0, 2)

    def heads_b(b):   # (1, E) -> (H, 1, hd)
        return b.reshape(num_heads, 1, hd)

    weights = [
        params["ln1_g"], params["ln1_b"],
        heads_w(params["wq"] * inv_scale).astype(mm_dtype),   # scale folded in
        heads_b(params["bq"] * inv_scale),
        heads_w(params["wk"]).astype(mm_dtype), heads_b(params["bk"]),
        heads_w(params["wv"]).astype(mm_dtype), heads_b(params["bv"]),
        params["wo"].reshape(num_heads, hd, E).astype(mm_dtype), params["bo"],
        params["ln2_g"], params["ln2_b"],
        params["w1"].astype(mm_dtype), params["b1"],
        params["w2"].astype(mm_dtype), params["b2"],
    ]

    q_tile = _pick_tile(S, q_tile_target)
    kv_tile = _pick_tile(S, kv_tile_target)

    kernel = make_block_kernel(num_heads, hd, S, mm_dtype=mm_dtype,
                               causal=causal, q_tile=q_tile, kv_tile=kv_tile,
                               approx_recip=approx_recip,
                               use_exact_gelu=exact)

    # ---- VMEM budget from the real working set, per-generation capacity ----
    mm_bytes = jnp.dtype(mm_dtype).itemsize
    w_bytes = sum(int(w.size) * w.dtype.itemsize for w in weights)
    qkv_scratch = 3 * num_heads * S * hd * mm_bytes
    io_bytes = 2 * 2 * S * E * 4                       # double-buffered x/out
    body_bytes = (2 * S * E * 4                        # x value + nx
                  + 3 * num_heads * q_tile * kv_tile * 4   # flash score tiles
                  + 2 * num_heads * q_tile * hd * 4        # acc / o
                  + 2 * q_tile * hidden * 4                # MLP hidden
                  + 4 * q_tile * E * 4)                    # per-tile temps
    try:
        cap = int(pltpu.get_tpu_info().vmem_capacity_bytes)
    except Exception:
        cap = 64 * 1024 * 1024                         # v7x-safe default

    def vmem_budget(weight_buffers):
        est = weight_buffers * w_bytes + qkv_scratch + io_bytes + body_bytes
        return int(min(int(0.85 * cap), max(int(1.5 * est), 32 * 1024 * 1024)))

    out_shape = jax.ShapeDtypeStruct((B, S, E), jnp.float32)
    x_spec = pl.BlockSpec((1, S, E), lambda b: (b, 0, 0))
    out_spec = pl.BlockSpec((1, S, E), lambda b: (b, 0, 0))
    scratch = [pltpu.VMEM((num_heads, S, hd), mm_dtype),
               pltpu.VMEM((num_heads, S, hd), mm_dtype),
               pltpu.VMEM((num_heads, S, hd), mm_dtype)]

    def run(single_buffer_weights):
        def wspec(w):
            nd = w.ndim
            if single_buffer_weights:
                # grid-invariant weights: no need to double-buffer them.
                return pl.BlockSpec(w.shape, lambda b, n=nd: (0,) * n,
                                    pipeline_mode=pl.Buffered(1))
            return pl.BlockSpec(w.shape, lambda b, n=nd: (0,) * n)

        call = pl.pallas_call(
            kernel,
            out_shape=out_shape,
            grid=(B,),
            in_specs=[x_spec] + [wspec(w) for w in weights],
            out_specs=out_spec,
            scratch_shapes=scratch,
            compiler_params=pltpu.CompilerParams(
                dimension_semantics=("parallel",),
                vmem_limit_bytes=vmem_budget(1 if single_buffer_weights
                                             else 2)),
        )
        return jax.block_until_ready(call(x, *weights))

    try:
        return run(True)
    except Exception:
        # pipeline_mode=pl.Buffered(1) not supported by this jax/Mosaic
        # version -> fall back to default (double-buffered) weight specs.
        return run(False)


# ---------------------------------------------------------------------------
# params + pure-JAX reference (mirrors the PyTorch module, eval mode, f32)
# ---------------------------------------------------------------------------
def init_block_params(key, emb_size, num_heads, hidden_size):
    ks = iter(jax.random.split(key, 16))

    def nrm(shape, scale=0.05):
        return (scale * jax.random.normal(next(ks), shape)).astype(jnp.float32)

    E, H = emb_size, hidden_size
    return {
        "ln1_g": jnp.ones((1, E), jnp.float32),
        "ln1_b": jnp.zeros((1, E), jnp.float32),
        # linear weights stored as (in, out) == torch weight transposed
        "wq": nrm((E, E)), "bq": nrm((1, E)),
        "wk": nrm((E, E)), "bk": nrm((1, E)),
        "wv": nrm((E, E)), "bv": nrm((1, E)),
        "wo": nrm((E, E)), "bo": nrm((1, E)),
        "ln2_g": jnp.ones((1, E), jnp.float32),
        "ln2_b": jnp.zeros((1, E), jnp.float32),
        "w1": nrm((E, H)), "b1": nrm((1, H)),
        "w2": nrm((H, E)), "b2": nrm((1, E)),
    }


def reference_block(x, params, *, num_heads, causal=False):
    B, S, E = x.shape
    hd = E // num_heads
    scale = float(hd) ** 0.5

    def ln(v, g, b):
        mu = jnp.mean(v, axis=-1, keepdims=True)
        var = jnp.mean((v - mu) ** 2, axis=-1, keepdims=True)
        return (v - mu) / jnp.sqrt(var + EPS) * g + b

    nx = ln(x, params["ln1_g"], params["ln1_b"])
    q = nx @ params["wq"] + params["bq"]
    k = nx @ params["wk"] + params["bk"]
    v = nx @ params["wv"] + params["bv"]

    def split(t):
        return t.reshape(B, S, num_heads, hd).transpose(0, 2, 1, 3)

    qh, kh, vh = split(q), split(k), split(v)
    s = jnp.einsum("bhqd,bhkd->bhqk", qh, kh)
    if causal:
        mask = jnp.tril(jnp.ones((S, S), bool))
        s = jnp.where(mask[None, None], s, -jnp.inf)  # mask BEFORE dividing
    p = jax.nn.softmax(s / scale, axis=-1)
    o = jnp.einsum("bhqk,bhkd->bhqd", p, vh)
    o = o.transpose(0, 2, 1, 3).reshape(B, S, E)
    x = x + (o @ params["wo"] + params["bo"])

    nx = ln(x, params["ln2_g"], params["ln2_b"])
    h = jax.nn.gelu(nx @ params["w1"] + params["b1"], approximate=False)
    x = x + (h @ params["w2"] + params["b2"])
    return x


if __name__ == "__main__":
    # small shapes consistent with the module
    batch, seq_len, emb_size = 2, 8, 32
    num_heads, hidden_size = 2, 64

    key = jax.random.PRNGKey(0)
    kx, kp = jax.random.split(key)
    x = jax.random.normal(kx, (batch, seq_len, emb_size), dtype=jnp.float32)
    params = init_block_params(kp, emb_size, num_heads, hidden_size)

    # 1) exact f32 matmul path, mask=None (torch default) -- tight tolerance
    out32 = transformer_block_forward(x, params, num_heads=num_heads,
                                      causal=False, mm_dtype=jnp.float32)
    ref32 = reference_block(x, params, num_heads=num_heads, causal=False)
    assert out32.shape == (batch, seq_len, emb_size)
    assert jnp.allclose(out32, ref32, atol=1e-4, rtol=1e-4), (
        float(jnp.max(jnp.abs(out32 - ref32))))

    # 2) bf16-matmul perf path with causal mask -- loose (bf16-level) tolerance
    out16 = transformer_block_forward(x, params, num_heads=num_heads,
                                      causal=True, mm_dtype=jnp.bfloat16)
    refc = reference_block(x, params, num_heads=num_heads, causal=True)
    assert out16.shape == (batch, seq_len, emb_size)
    assert jnp.allclose(out16, refc, atol=3e-2, rtol=3e-2), (
        float(jnp.max(jnp.abs(out16 - refc))))

    print("KERNEL_OK")
</pallas_src>

<mosaic_0001>
module attributes {stable_mosaic.version = 11 : i64} {
  func.func @kernel(%arg0: i32, %arg1: memref<1x8x32xf32, #tpu.memory_space<vmem>>, %arg2: memref<1x32xf32, #tpu.memory_space<vmem>>, %arg3: memref<1x32xf32, #tpu.memory_space<vmem>>, %arg4: memref<2x32x16xf32, #tpu.memory_space<vmem>>, %arg5: memref<2x1x16xf32, #tpu.memory_space<vmem>>, %arg6: memref<2x32x16xf32, #tpu.memory_space<vmem>>, %arg7: memref<2x1x16xf32, #tpu.memory_space<vmem>>, %arg8: memref<2x32x16xf32, #tpu.memory_space<vmem>>, %arg9: memref<2x1x16xf32, #tpu.memory_space<vmem>>, %arg10: memref<2x16x32xf32, #tpu.memory_space<vmem>>, %arg11: memref<1x32xf32, #tpu.memory_space<vmem>>, %arg12: memref<1x32xf32, #tpu.memory_space<vmem>>, %arg13: memref<1x32xf32, #tpu.memory_space<vmem>>, %arg14: memref<32x64xf32, #tpu.memory_space<vmem>>, %arg15: memref<1x64xf32, #tpu.memory_space<vmem>>, %arg16: memref<64x32xf32, #tpu.memory_space<vmem>>, %arg17: memref<1x32xf32, #tpu.memory_space<vmem>>, %arg18: memref<1x8x32xf32, #tpu.memory_space<vmem>>, %arg19: memref<2x8x16xf32, #tpu.memory_space<vmem>>, %arg20: memref<2x8x16xf32, #tpu.memory_space<vmem>>, %arg21: memref<2x8x16xf32, #tpu.memory_space<vmem>>) attributes {dimension_semantics = [#tpu.dimension_semantics<parallel>], iteration_bounds = array<i64: 2>, scalar_prefetch = 0 : i64, scratch_operands = 3 : i64, tpu.core_type = #tpu.core_type<tc>, window_params = [{transform_indices = @transform_0, window_bounds = array<i64: 1, 8, 32>}, {pipeline_mode = #tpu.pipeline_mode<synchronous>, transform_indices = @transform_1, window_bounds = array<i64: 1, 32>}, {pipeline_mode = #tpu.pipeline_mode<synchronous>, transform_indices = @transform_2, window_bounds = array<i64: 1, 32>}, {pipeline_mode = #tpu.pipeline_mode<synchronous>, transform_indices = @transform_3, window_bounds = array<i64: 2, 32, 16>}, {pipeline_mode = #tpu.pipeline_mode<synchronous>, transform_indices = @transform_4, window_bounds = array<i64: 2, 1, 16>}, {pipeline_mode = #tpu.pipeline_mode<synchronous>, transform_indices = @transform_5, window_bounds = array<i64: 2, 32, 16>}, {pipeline_mode = #tpu.pipeline_mode<synchronous>, transform_indices = @transform_6, window_bounds = array<i64: 2, 1, 16>}, {pipeline_mode = #tpu.pipeline_mode<synchronous>, transform_indices = @transform_7, window_bounds = array<i64: 2, 32, 16>}, {pipeline_mode = #tpu.pipeline_mode<synchronous>, transform_indices = @transform_8, window_bounds = array<i64: 2, 1, 16>}, {pipeline_mode = #tpu.pipeline_mode<synchronous>, transform_indices = @transform_9, window_bounds = array<i64: 2, 16, 32>}, {pipeline_mode = #tpu.pipeline_mode<synchronous>, transform_indices = @transform_10, window_bounds = array<i64: 1, 32>}, {pipeline_mode = #tpu.pipeline_mode<synchronous>, transform_indices = @transform_11, window_bounds = array<i64: 1, 32>}, {pipeline_mode = #tpu.pipeline_mode<synchronous>, transform_indices = @transform_12, window_bounds = array<i64: 1, 32>}, {pipeline_mode = #tpu.pipeline_mode<synchronous>, transform_indices = @transform_13, window_bounds = array<i64: 32, 64>}, {pipeline_mode = #tpu.pipeline_mode<synchronous>, transform_indices = @transform_14, window_bounds = array<i64: 1, 64>}, {pipeline_mode = #tpu.pipeline_mode<synchronous>, transform_indices = @transform_15, window_bounds = array<i64: 64, 32>}, {pipeline_mode = #tpu.pipeline_mode<synchronous>, transform_indices = @transform_16, window_bounds = array<i64: 1, 32>}, {transform_indices = @transform_17, window_bounds = array<i64: 1, 8, 32>}]} {
    %c0 = arith.constant 0 : index
    %c0_0 = arith.constant 0 : index
    %c0_1 = arith.constant 0 : index
    %0 = vector.load %arg1[%c0, %c0_0, %c0_1] : memref<1x8x32xf32, #tpu.memory_space<vmem>>, vector<1x8x32xf32>
    %1 = vector.shape_cast %0 : vector<1x8x32xf32> to vector<8x32xf32>
    %c0_2 = arith.constant 0 : index
    %c0_3 = arith.constant 0 : index
    %2 = vector.load %arg2[%c0_2, %c0_3] : memref<1x32xf32, #tpu.memory_space<vmem>>, vector<1x32xf32>
    %c0_4 = arith.constant 0 : index
    %c0_5 = arith.constant 0 : index
    %3 = vector.load %arg3[%c0_4, %c0_5] : memref<1x32xf32, #tpu.memory_space<vmem>>, vector<1x32xf32>
    %cst = arith.constant dense<0.000000e+00> : vector<8xf32>
    %4 = vector.multi_reduction <add>, %1, %cst [1] : vector<8x32xf32> to vector<8xf32>
    %5 = vector.shape_cast %4 : vector<8xf32> to vector<8x1xf32>
    %cst_6 = arith.constant 3.200000e+01 : f32
    %6 = vector.broadcast %cst_6 : f32 to vector<8x1xf32>
    %7 = arith.divf %5, %6 : vector<8x1xf32>
    %8 = vector.broadcast %7 : vector<8x1xf32> to vector<8x32xf32>
    %9 = arith.subf %1, %8 : vector<8x32xf32>
    %10 = arith.mulf %9, %9 : vector<8x32xf32>
    %cst_7 = arith.constant dense<0.000000e+00> : vector<8xf32>
    %11 = vector.multi_reduction <add>, %10, %cst_7 [1] : vector<8x32xf32> to vector<8xf32>
    %12 = vector.shape_cast %11 : vector<8xf32> to vector<8x1xf32>
    %cst_8 = arith.constant 3.200000e+01 : f32
    %13 = vector.broadcast %cst_8 : f32 to vector<8x1xf32>
    %14 = arith.divf %12, %13 : vector<8x1xf32>
    %cst_9 = arith.constant 9.99999974E-6 : f32
    %15 = vector.broadcast %cst_9 : f32 to vector<8x1xf32>
    %16 = arith.addf %14, %15 : vector<8x1xf32>
    %17 = math.rsqrt %16 : vector<8x1xf32>
    %18 = vector.broadcast %17 : vector<8x1xf32> to vector<8x32xf32>
    %19 = arith.mulf %9, %18 : vector<8x32xf32>
    %20 = vector.broadcast %2 : vector<1x32xf32> to vector<8x32xf32>
    %21 = arith.mulf %19, %20 : vector<8x32xf32>
    %22 = vector.broadcast %3 : vector<1x32xf32> to vector<8x32xf32>
    %23 = arith.addf %21, %22 : vector<8x32xf32>
    %c0_10 = arith.constant 0 : index
    %c0_11 = arith.constant 0 : index
    %c0_12 = arith.constant 0 : index
    %24 = vector.load %arg4[%c0_10, %c0_11, %c0_12] : memref<2x32x16xf32, #tpu.memory_space<vmem>>, vector<1x32x16xf32>
    %25 = vector.shape_cast %24 : vector<1x32x16xf32> to vector<32x16xf32>
    %cst_13 = arith.constant dense<0.000000e+00> : vector<8x16xf32>
    %26 = tpu.matmul %23, %25, %cst_13 {dimension_numbers = #tpu.dot_dimension_numbers<[1], [0], [0], [1], [0, 0, 1, 1], [], []>} : vector<8x32xf32>, vector<32x16xf32>, vector<8x16xf32> -> vector<8x16xf32>
    %c0_14 = arith.constant 0 : index
    %c0_15 = arith.constant 0 : index
    %c0_16 = arith.constant 0 : index
    %27 = vector.load %arg5[%c0_14, %c0_15, %c0_16] : memref<2x1x16xf32, #tpu.memory_space<vmem>>, vector<1x1x16xf32>
    %28 = vector.shape_cast %27 : vector<1x1x16xf32> to vector<1x16xf32>
    %29 = vector.broadcast %28 : vector<1x16xf32> to vector<8x16xf32>
    %30 = arith.addf %26, %29 : vector<8x16xf32>
    %c0_17 = arith.constant 0 : index
    %c0_18 = arith.constant 0 : index
    %c0_19 = arith.constant 0 : index
    %31 = vector.load %arg19[%c0_17, %c0_18, %c0_19] : memref<2x8x16xf32, #tpu.memory_space<vmem>>, vector<1x8x16xf32>
    %32 = vector.shape_cast %31 : vector<1x8x16xf32> to vector<8x16xf32>
    %33 = vector.shape_cast %30 : vector<8x16xf32> to vector<1x8x16xf32>
    tpu.vector_store %arg19[%c0_17, %c0_18, %c0_19], %33 {strides = array<i32>} : memref<2x8x16xf32, #tpu.memory_space<vmem>>, vector<1x8x16xf32>,
    %c0_20 = arith.constant 0 : index
    %c0_21 = arith.constant 0 : index
    %c0_22 = arith.constant 0 : index
    %34 = vector.load %arg6[%c0_20, %c0_21, %c0_22] : memref<2x32x16xf32, #tpu.memory_space<vmem>>, vector<1x32x16xf32>
    %35 = vector.shape_cast %34 : vector<1x32x16xf32> to vector<32x16xf32>
    %cst_23 = arith.constant dense<0.000000e+00> : vector<8x16xf32>
    %36 = tpu.matmul %23, %35, %cst_23 {dimension_numbers = #tpu.dot_dimension_numbers<[1], [0], [0], [1], [0, 0, 1, 1], [], []>} : vector<8x32xf32>, vector<32x16xf32>, vector<8x16xf32> -> vector<8x16xf32>
    %c0_24 = arith.constant 0 : index
    %c0_25 = arith.constant 0 : index
    %c0_26 = arith.constant 0 : index
    %37 = vector.load %arg7[%c0_24, %c0_25, %c0_26] : memref<2x1x16xf32, #tpu.memory_space<vmem>>, vector<1x1x16xf32>
    %38 = vector.shape_cast %37 : vector<1x1x16xf32> to vector<1x16xf32>
    %39 = vector.broadcast %38 : vector<1x16xf32> to vector<8x16xf32>
    %40 = arith.addf %36, %39 : vector<8x16xf32>
    %c0_27 = arith.constant 0 : index
    %c0_28 = arith.constant 0 : index
    %c0_29 = arith.constant 0 : index
    %41 = vector.load %arg20[%c0_27, %c0_28, %c0_29] : memref<2x8x16xf32, #tpu.memory_space<vmem>>, vector<1x8x16xf32>
    %42 = vector.shape_cast %41 : vector<1x8x16xf32> to vector<8x16xf32>
    %43 = vector.shape_cast %40 : vector<8x16xf32> to vector<1x8x16xf32>
    tpu.vector_store %arg20[%c0_27, %c0_28, %c0_29], %43 {strides = array<i32>} : memref<2x8x16xf32, #tpu.memory_space<vmem>>, vector<1x8x16xf32>,
    %c0_30 = arith.constant 0 : index
    %c0_31 = arith.constant 0 : index
    %c0_32 = arith.constant 0 : index
    %44 = vector.load %arg8[%c0_30, %c0_31, %c0_32] : memref<2x32x16xf32, #tpu.memory_space<vmem>>, vector<1x32x16xf32>
    %45 = vector.shape_cast %44 : vector<1x32x16xf32> to vector<32x16xf32>
    %cst_33 = arith.constant dense<0.000000e+00> : vector<8x16xf32>
    %46 = tpu.matmul %23, %45, %cst_33 {dimension_numbers = #tpu.dot_dimension_numbers<[1], [0], [0], [1], [0, 0, 1, 1], [], []>} : vector<8x32xf32>, vector<32x16xf32>, vector<8x16xf32> -> vector<8x16xf32>
    %c0_34 = arith.constant 0 : index
    %c0_35 = arith.constant 0 : index
    %c0_36 = arith.constant 0 : index
    %47 = vector.load %arg9[%c0_34, %c0_35, %c0_36] : memref<2x1x16xf32, #tpu.memory_space<vmem>>, vector<1x1x16xf32>
    %48 = vector.shape_cast %47 : vector<1x1x16xf32> to vector<1x16xf32>
    %49 = vector.broadcast %48 : vector<1x16xf32> to vector<8x16xf32>
    %50 = arith.addf %46, %49 : vector<8x16xf32>
    %c0_37 = arith.constant 0 : index
    %c0_38 = arith.constant 0 : index
    %c0_39 = arith.constant 0 : index
    %51 = vector.load %arg21[%c0_37, %c0_38, %c0_39] : memref<2x8x16xf32, #tpu.memory_space<vmem>>, vector<1x8x16xf32>
    %52 = vector.shape_cast %51 : vector<1x8x16xf32> to vector<8x16xf32>
    %53 = vector.shape_cast %50 : vector<8x16xf32> to vector<1x8x16xf32>
    tpu.vector_store %arg21[%c0_37, %c0_38, %c0_39], %53 {strides = array<i32>} : memref<2x8x16xf32, #tpu.memory_space<vmem>>, vector<1x8x16xf32>,
    %c1 = arith.constant 1 : index
    %c0_40 = arith.constant 0 : index
    %c0_41 = arith.constant 0 : index
    %54 = vector.load %arg4[%c1, %c0_40, %c0_41] : memref<2x32x16xf32, #tpu.memory_space<vmem>>, vector<1x32x16xf32>
    %55 = vector.shape_cast %54 : vector<1x32x16xf32> to vector<32x16xf32>
    %cst_42 = arith.constant dense<0.000000e+00> : vector<8x16xf32>
    %56 = tpu.matmul %23, %55, %cst_42 {dimension_numbers = #tpu.dot_dimension_numbers<[1], [0], [0], [1], [0, 0, 1, 1], [], []>} : vector<8x32xf32>, vector<32x16xf32>, vector<8x16xf32> -> vector<8x16xf32>
    %c1_43 = arith.constant 1 : index
    %c0_44 = arith.constant 0 : index
    %c0_45 = arith.constant 0 : index
    %57 = vector.load %arg5[%c1_43, %c0_44, %c0_45] : memref<2x1x16xf32, #tpu.memory_space<vmem>>, vector<1x1x16xf32>
    %58 = vector.shape_cast %57 : vector<1x1x16xf32> to vector<1x16xf32>
    %59 = vector.broadcast %58 : vector<1x16xf32> to vector<8x16xf32>
    %60 = arith.addf %56, %59 : vector<8x16xf32>
    %c1_46 = arith.constant 1 : index
    %c0_47 = arith.constant 0 : index
    %c0_48 = arith.constant 0 : index
    %61 = vector.load %arg19[%c1_46, %c0_47, %c0_48] : memref<2x8x16xf32, #tpu.memory_space<vmem>>, vector<1x8x16xf32>
    %62 = vector.shape_cast %61 : vector<1x8x16xf32> to vector<8x16xf32>
    %63 = vector.shape_cast %60 : vector<8x16xf32> to vector<1x8x16xf32>
    tpu.vector_store %arg19[%c1_46, %c0_47, %c0_48], %63 {strides = array<i32>} : memref<2x8x16xf32, #tpu.memory_space<vmem>>, vector<1x8x16xf32>,
    %c1_49 = arith.constant 1 : index
    %c0_50 = arith.constant 0 : index
    %c0_51 = arith.constant 0 : index
    %64 = vector.load %arg6[%c1_49, %c0_50, %c0_51] : memref<2x32x16xf32, #tpu.memory_space<vmem>>, vector<1x32x16xf32>
    %65 = vector.shape_cast %64 : vector<1x32x16xf32> to vector<32x16xf32>
    %cst_52 = arith.constant dense<0.000000e+00> : vector<8x16xf32>
    %66 = tpu.matmul %23, %65, %cst_52 {dimension_numbers = #tpu.dot_dimension_numbers<[1], [0], [0], [1], [0, 0, 1, 1], [], []>} : vector<8x32xf32>, vector<32x16xf32>, vector<8x16xf32> -> vector<8x16xf32>
    %c1_53 = arith.constant 1 : index
    %c0_54 = arith.constant 0 : index
    %c0_55 = arith.constant 0 : index
    %67 = vector.load %arg7[%c1_53, %c0_54, %c0_55] : memref<2x1x16xf32, #tpu.memory_space<vmem>>, vector<1x1x16xf32>
    %68 = vector.shape_cast %67 : vector<1x1x16xf32> to vector<1x16xf32>
    %69 = vector.broadcast %68 : vector<1x16xf32> to vector<8x16xf32>
    %70 = arith.addf %66, %69 : vector<8x16xf32>
    %c1_56 = arith.constant 1 : index
    %c0_57 = arith.constant 0 : index
    %c0_58 = arith.constant 0 : index
    %71 = vector.load %arg20[%c1_56, %c0_57, %c0_58] : memref<2x8x16xf32, #tpu.memory_space<vmem>>, vector<1x8x16xf32>
    %72 = vector.shape_cast %71 : vector<1x8x16xf32> to vector<8x16xf32>
    %73 = vector.shape_cast %70 : vector<8x16xf32> to vector<1x8x16xf32>
    tpu.vector_store %arg20[%c1_56, %c0_57, %c0_58], %73 {strides = array<i32>} : memref<2x8x16xf32, #tpu.memory_space<vmem>>, vector<1x8x16xf32>,
    %c1_59 = arith.constant 1 : index
    %c0_60 = arith.constant 0 : index
    %c0_61 = arith.constant 0 : index
    %74 = vector.load %arg8[%c1_59, %c0_60, %c0_61] : memref<2x32x16xf32, #tpu.memory_space<vmem>>, vector<1x32x16xf32>
    %75 = vector.shape_cast %74 : vector<1x32x16xf32> to vector<32x16xf32>
    %cst_62 = arith.constant dense<0.000000e+00> : vector<8x16xf32>
    %76 = tpu.matmul %23, %75, %cst_62 {dimension_numbers = #tpu.dot_dimension_numbers<[1], [0], [0], [1], [0, 0, 1, 1], [], []>} : vector<8x32xf32>, vector<32x16xf32>, vector<8x16xf32> -> vector<8x16xf32>
    %c1_63 = arith.constant 1 : index
    %c0_64 = arith.constant 0 : index
    %c0_65 = arith.constant 0 : index
    %77 = vector.load %arg9[%c1_63, %c0_64, %c0_65] : memref<2x1x16xf32, #tpu.memory_space<vmem>>, vector<1x1x16xf32>
    %78 = vector.shape_cast %77 : vector<1x1x16xf32> to vector<1x16xf32>
    %79 = vector.broadcast %78 : vector<1x16xf32> to vector<8x16xf32>
    %80 = arith.addf %76, %79 : vector<8x16xf32>
    %c1_66 = arith.constant 1 : index
    %c0_67 = arith.constant 0 : index
    %c0_68 = arith.constant 0 : index
    %81 = vector.load %arg21[%c1_66, %c0_67, %c0_68] : memref<2x8x16xf32, #tpu.memory_space<vmem>>, vector<1x8x16xf32>
    %82 = vector.shape_cast %81 : vector<1x8x16xf32> to vector<8x16xf32>
    %83 = vector.shape_cast %80 : vector<8x16xf32> to vector<1x8x16xf32>
    tpu.vector_store %arg21[%c1_66, %c0_67, %c0_68], %83 {strides = array<i32>} : memref<2x8x16xf32, #tpu.memory_space<vmem>>, vector<1x8x16xf32>,
    %c0_69 = arith.constant 0 : index
    %c0_70 = arith.constant 0 : index
    %c0_71 = arith.constant 0 : index
    %84 = vector.load %arg19[%c0_69, %c0_70, %c0_71] : memref<2x8x16xf32, #tpu.memory_space<vmem>>, vector<2x8x16xf32>
    %cst_72 = arith.constant 0xFF800000 : f32
    %85 = vector.broadcast %cst_72 : f32 to vector<2x8x1xf32>
    %cst_73 = arith.constant 0.000000e+00 : f32
    %86 = vector.broadcast %cst_73 : f32 to vector<2x8x1xf32>
    %cst_74 = arith.constant 0.000000e+00 : f32
    %87 = vector.broadcast %cst_74 : f32 to vector<2x8x16xf32>
    %c0_i32 = arith.constant 0 : i32
    %c8_i32 = arith.constant 8 : i32
    %88 = arith.muli %c0_i32, %c8_i32 : i32
    %89 = tpu.assume_multiple %88, 8 : i32
    %c0_75 = arith.constant 0 : index
    %90 = arith.index_cast %89 : i32 to index
    %c0_76 = arith.constant 0 : index
    %91 = vector.load %arg20[%c0_75, %90, %c0_76] : memref<2x8x16xf32, #tpu.memory_space<vmem>>, vector<2x8x16xf32>
    %c0_77 = arith.constant 0 : index
    %92 = arith.index_cast %89 : i32 to index
    %c0_78 = arith.constant 0 : index
    %93 = vector.load %arg21[%c0_77, %92, %c0_78] : memref<2x8x16xf32, #tpu.memory_space<vmem>>, vector<2x8x16xf32>
    "tpu.trace_start"() <{level = 10 : i32, message = "hqd,hkd->hqk"}> : () -> ()
    %cst_79 = arith.constant dense<0.000000e+00> : vector<2x8x8xf32>
    %94 = tpu.matmul %84, %91, %cst_79 {dimension_numbers = #tpu.dot_dimension_numbers<[2], [2], [1], [1], [0, 0, 0, 1, 1, 1], [0], [0]>} : vector<2x8x16xf32>, vector<2x8x16xf32>, vector<2x8x8xf32> -> vector<2x8x8xf32>
    "tpu.trace_stop"() : () -> ()
    %cst_80 = arith.constant dense<0xFF800000> : vector<2x8xf32>
    %95 = vector.multi_reduction <maximumf>, %94, %cst_80 [2] : vector<2x8x8xf32> to vector<2x8xf32>
    %96 = vector.shape_cast %95 : vector<2x8xf32> to vector<2x8x1xf32>
    %97 = arith.maximumf %85, %96 : vector<2x8x1xf32>
    %98 = arith.subf %85, %97 : vector<2x8x1xf32>
    %99 = math.exp %98 : vector<2x8x1xf32>
    %100 = vector.broadcast %97 : vector<2x8x1xf32> to vector<2x8x8xf32>
    %101 = arith.subf %94, %100 : vector<2x8x8xf32>
    %102 = math.exp %101 : vector<2x8x8xf32>
    %103 = arith.mulf %99, %86 : vector<2x8x1xf32>
    %cst_81 = arith.constant dense<0.000000e+00> : vector<2x8xf32>
    %104 = vector.multi_reduction <add>, %102, %cst_81 [2] : vector<2x8x8xf32> to vector<2x8xf32>
    %105 = vector.shape_cast %104 : vector<2x8xf32> to vector<2x8x1xf32>
    %106 = arith.addf %103, %105 : vector<2x8x1xf32>
    %107 = vector.broadcast %99 : vector<2x8x1xf32> to vector<2x8x16xf32>
    %108 = arith.mulf %107, %87 : vector<2x8x16xf32>
    "tpu.trace_start"() <{level = 10 : i32, message = "hqk,hkd->hqd"}> : () -> ()
    %cst_82 = arith.constant dense<0.000000e+00> : vector<2x8x16xf32>
    %109 = tpu.matmul %102, %93, %cst_82 {dimension_numbers = #tpu.dot_dimension_numbers<[2], [1], [1], [2], [0, 0, 0, 1, 1, 2], [0], [0]>} : vector<2x8x8xf32>, vector<2x8x16xf32>, vector<2x8x16xf32> -> vector<2x8x16xf32>
    "tpu.trace_stop"() : () -> ()
    %110 = arith.addf %108, %109 : vector<2x8x16xf32>
    %c1_i32 = arith.constant 1 : i32
    %111 = tpu.reciprocal %106 : vector<2x8x1xf32> -> vector<2x8x1xf32>
    %112 = vector.broadcast %111 : vector<2x8x1xf32> to vector<2x8x16xf32>
    %113 = arith.mulf %110, %112 : vector<2x8x16xf32>
    %c0_83 = arith.constant 0 : index
    %c0_84 = arith.constant 0 : index
    %114 = vector.load %arg11[%c0_83, %c0_84] : memref<1x32xf32, #tpu.memory_space<vmem>>, vector<1x32xf32>
    %115 = vector.extract_strided_slice %113 {offsets = [0, 0, 0], sizes = [1, 8, 16], strides = [1, 1, 1]} : vector<2x8x16xf32> to vector<1x8x16xf32>
    %116 = vector.shape_cast %115 : vector<1x8x16xf32> to vector<8x16xf32>
    %c0_85 = arith.constant 0 : index
    %c0_86 = arith.constant 0 : index
    %c0_87 = arith.constant 0 : index
    %117 = vector.load %arg10[%c0_85, %c0_86, %c0_87] : memref<2x16x32xf32, #tpu.memory_space<vmem>>, vector<1x16x32xf32>
    %118 = vector.shape_cast %117 : vector<1x16x32xf32> to vector<16x32xf32>
    %cst_88 = arith.constant dense<0.000000e+00> : vector<8x32xf32>
    %119 = tpu.matmul %116, %118, %cst_88 {dimension_numbers = #tpu.dot_dimension_numbers<[1], [0], [0], [1], [0, 0, 1, 1], [], []>} : vector<8x16xf32>, vector<16x32xf32>, vector<8x32xf32> -> vector<8x32xf32>
    %120 = vector.broadcast %114 : vector<1x32xf32> to vector<8x32xf32>
    %121 = arith.addf %120, %119 : vector<8x32xf32>
    %122 = vector.extract_strided_slice %113 {offsets = [1, 0, 0], sizes = [1, 8, 16], strides = [1, 1, 1]} : vector<2x8x16xf32> to vector<1x8x16xf32>
    %123 = vector.shape_cast %122 : vector<1x8x16xf32> to vector<8x16xf32>
    %c1_89 = arith.constant 1 : index
    %c0_90 = arith.constant 0 : index
    %c0_91 = arith.constant 0 : index
    %124 = vector.load %arg10[%c1_89, %c0_90, %c0_91] : memref<2x16x32xf32, #tpu.memory_space<vmem>>, vector<1x16x32xf32>
    %125 = vector.shape_cast %124 : vector<1x16x32xf32> to vector<16x32xf32>
    %cst_92 = arith.constant dense<0.000000e+00> : vector<8x32xf32>
    %126 = tpu.matmul %123, %125, %cst_92 {dimension_numbers = #tpu.dot_dimension_numbers<[1], [0], [0], [1], [0, 0, 1, 1], [], []>} : vector<8x16xf32>, vector<16x32xf32>, vector<8x32xf32> -> vector<8x32xf32>
    %127 = arith.addf %121, %126 : vector<8x32xf32>
    %128 = arith.addf %1, %127 : vector<8x32xf32>
    %c0_93 = arith.constant 0 : index
    %c0_94 = arith.constant 0 : index
    %129 = vector.load %arg12[%c0_93, %c0_94] : memref<1x32xf32, #tpu.memory_space<vmem>>, vector<1x32xf32>
    %c0_95 = arith.constant 0 : index
    %c0_96 = arith.constant 0 : index
    %130 = vector.load %arg13[%c0_95, %c0_96] : memref<1x32xf32, #tpu.memory_space<vmem>>, vector<1x32xf32>
    %cst_97 = arith.constant dense<0.000000e+00> : vector<8xf32>
    %131 = vector.multi_reduction <add>, %128, %cst_97 [1] : vector<8x32xf32> to vector<8xf32>
    %132 = vector.shape_cast %131 : vector<8xf32> to vector<8x1xf32>
    %cst_98 = arith.constant 3.200000e+01 : f32
    %133 = vector.broadcast %cst_98 : f32 to vector<8x1xf32>
    %134 = arith.divf %132, %133 : vector<8x1xf32>
    %135 = vector.broadcast %134 : vector<8x1xf32> to vector<8x32xf32>
    %136 = arith.subf %128, %135 : vector<8x32xf32>
    %137 = arith.mulf %136, %136 : vector<8x32xf32>
    %cst_99 = arith.constant dense<0.000000e+00> : vector<8xf32>
    %138 = vector.multi_reduction <add>, %137, %cst_99 [1] : vector<8x32xf32> to vector<8xf32>
    %139 = vector.shape_cast %138 : vector<8xf32> to vector<8x1xf32>
    %cst_100 = arith.constant 3.200000e+01 : f32
    %140 = vector.broadcast %cst_100 : f32 to vector<8x1xf32>
    %141 = arith.divf %139, %140 : vector<8x1xf32>
    %cst_101 = arith.constant 9.99999974E-6 : f32
    %142 = vector.broadcast %cst_101 : f32 to vector<8x1xf32>
    %143 = arith.addf %141, %142 : vector<8x1xf32>
    %144 = math.rsqrt %143 : vector<8x1xf32>
    %145 = vector.broadcast %144 : vector<8x1xf32> to vector<8x32xf32>
    %146 = arith.mulf %136, %145 : vector<8x32xf32>
    %147 = vector.broadcast %129 : vector<1x32xf32> to vector<8x32xf32>
    %148 = arith.mulf %146, %147 : vector<8x32xf32>
    %149 = vector.broadcast %130 : vector<1x32xf32> to vector<8x32xf32>
    %150 = arith.addf %148, %149 : vector<8x32xf32>
    %c0_102 = arith.constant 0 : index
    %c0_103 = arith.constant 0 : index
    %151 = vector.load %arg14[%c0_102, %c0_103] : memref<32x64xf32, #tpu.memory_space<vmem>>, vector<32x64xf32>
    %cst_104 = arith.constant dense<0.000000e+00> : vector<8x64xf32>
    %152 = tpu.matmul %150, %151, %cst_104 {dimension_numbers = #tpu.dot_dimension_numbers<[1], [0], [0], [1], [0, 0, 1, 1], [], []>} : vector<8x32xf32>, vector<32x64xf32>, vector<8x64xf32> -> vector<8x64xf32>
    %c0_105 = arith.constant 0 : index
    %c0_106 = arith.constant 0 : index
    %153 = vector.load %arg15[%c0_105, %c0_106] : memref<1x64xf32, #tpu.memory_space<vmem>>, vector<1x64xf32>
    %154 = vector.broadcast %153 : vector<1x64xf32> to vector<8x64xf32>
    %155 = arith.addf %152, %154 : vector<8x64xf32>
    %cst_107 = arith.constant 5.000000e-01 : f32
    %156 = vector.broadcast %cst_107 : f32 to vector<8x64xf32>
    %157 = arith.mulf %156, %155 : vector<8x64xf32>
    %cst_108 = arith.constant 0.707106769 : f32
    %158 = vector.broadcast %cst_108 : f32 to vector<8x64xf32>
    %159 = arith.mulf %155, %158 : vector<8x64xf32>
    %cst_109 = arith.constant 0.000000e+00 : f32
    %160 = vector.broadcast %cst_109 : f32 to vector<8x64xf32>
    %161 = arith.cmpf oge, %159, %160 : vector<8x64xf32>
    %cst_110 = arith.constant 1.000000e+00 : f32
    %cst_111 = arith.constant -1.000000e+00 : f32
    %162 = vector.broadcast %cst_110 : f32 to vector<8x64xf32>
    %163 = vector.broadcast %cst_111 : f32 to vector<8x64xf32>
    %164 = arith.select %161, %162, %163 : vector<8x64xi1>, vector<8x64xf32>
    %165 = math.absf %159 : vector<8x64xf32>
    %cst_112 = arith.constant 0.327591091 : f32
    %166 = vector.broadcast %cst_112 : f32 to vector<8x64xf32>
    %167 = arith.mulf %166, %165 : vector<8x64xf32>
    %cst_113 = arith.constant 1.000000e+00 : f32
    %168 = vector.broadcast %cst_113 : f32 to vector<8x64xf32>
    %169 = arith.addf %168, %167 : vector<8x64xf32>
    %170 = tpu.reciprocal %169 : vector<8x64xf32> -> vector<8x64xf32>
    %cst_114 = arith.constant 1.06140542 : f32
    %171 = vector.broadcast %cst_114 : f32 to vector<8x64xf32>
    %172 = arith.mulf %171, %170 : vector<8x64xf32>
    %cst_115 = arith.constant -1.45315206 : f32
    %173 = vector.broadcast %cst_115 : f32 to vector<8x64xf32>
    %174 = arith.addf %172, %173 : vector<8x64xf32>
    %175 = arith.mulf %174, %170 : vector<8x64xf32>
    %cst_116 = arith.constant 1.42141378 : f32
    %176 = vector.broadcast %cst_116 : f32 to vector<8x64xf32>
    %177 = arith.addf %175, %176 : vector<8x64xf32>
    %178 = arith.mulf %177, %170 : vector<8x64xf32>
    %cst_117 = arith.constant -0.284496725 : f32
    %179 = vector.broadcast %cst_117 : f32 to vector<8x64xf32>
    %180 = arith.addf %178, %179 : vector<8x64xf32>
    %181 = arith.mulf %180, %170 : vector<8x64xf32>
    %cst_118 = arith.constant 0.254829586 : f32
    %182 = vector.broadcast %cst_118 : f32 to vector<8x64xf32>
    %183 = arith.addf %181, %182 : vector<8x64xf32>
    %184 = arith.mulf %183, %170 : vector<8x64xf32>
    %cst_119 = arith.constant 0.000000e+00 : f32
    %185 = vector.broadcast %cst_119 : f32 to vector<8x64xf32>
    %186 = arith.subf %185, %165 : vector<8x64xf32>
    %187 = arith.mulf %186, %165 : vector<8x64xf32>
    %188 = math.exp %187 : vector<8x64xf32>
    %189 = arith.mulf %184, %188 : vector<8x64xf32>
    %cst_120 = arith.constant 1.000000e+00 : f32
    %190 = vector.broadcast %cst_120 : f32 to vector<8x64xf32>
    %191 = arith.subf %190, %189 : vector<8x64xf32>
    %192 = arith.mulf %164, %191 : vector<8x64xf32>
    %cst_121 = arith.constant 1.000000e+00 : f32
    %193 = vector.broadcast %cst_121 : f32 to vector<8x64xf32>
    %194 = arith.addf %193, %192 : vector<8x64xf32>
    %195 = arith.mulf %157, %194 : vector<8x64xf32>
    %c0_122 = arith.constant 0 : index
    %c0_123 = arith.constant 0 : index
    %196 = vector.load %arg16[%c0_122, %c0_123] : memref<64x32xf32, #tpu.memory_space<vmem>>, vector<64x32xf32>
    %cst_124 = arith.constant dense<0.000000e+00> : vector<8x32xf32>
    %197 = tpu.matmul %195, %196, %cst_124 {dimension_numbers = #tpu.dot_dimension_numbers<[1], [0], [0], [1], [0, 0, 1, 1], [], []>} : vector<8x64xf32>, vector<64x32xf32>, vector<8x32xf32> -> vector<8x32xf32>
    %c0_125 = arith.constant 0 : index
    %c0_126 = arith.constant 0 : index
    %198 = vector.load %arg17[%c0_125, %c0_126] : memref<1x32xf32, #tpu.memory_space<vmem>>, vector<1x32xf32>
    %199 = vector.broadcast %198 : vector<1x32xf32> to vector<8x32xf32>
    %200 = arith.addf %197, %199 : vector<8x32xf32>
    %201 = arith.addf %128, %200 : vector<8x32xf32>
    %c0_127 = arith.constant 0 : index
    %c0_128 = arith.constant 0 : index
    %c0_129 = arith.constant 0 : index
    %202 = vector.load %arg18[%c0_127, %c0_128, %c0_129] : memref<1x8x32xf32, #tpu.memory_space<vmem>>, vector<1x8x32xf32>
    %203 = vector.shape_cast %202 : vector<1x8x32xf32> to vector<8x32xf32>
    %204 = vector.shape_cast %201 : vector<8x32xf32> to vector<1x8x32xf32>
    tpu.vector_store %arg18[%c0_127, %c0_128, %c0_129], %204 {strides = array<i32>} : memref<1x8x32xf32, #tpu.memory_space<vmem>>, vector<1x8x32xf32>,
    return
  }
  func.func @transform_0(%arg0: i32) -> (i32, i32, i32) {
    %c0_i32 = arith.constant 0 : i32
    %c0_i32_0 = arith.constant 0 : i32
    %c0_i32_1 = arith.constant 0 : i32
    return %arg0, %c0_i32, %c0_i32_0 : i32, i32, i32
  }
  func.func @transform_1(%arg0: i32) -> (i32, i32) {
    %c0_i32 = arith.constant 0 : i32
    %c0_i32_0 = arith.constant 0 : i32
    %c0_i32_1 = arith.constant 0 : i32
    return %c0_i32, %c0_i32_0 : i32, i32
  }
  func.func @transform_2(%arg0: i32) -> (i32, i32) {
    %c0_i32 = arith.constant 0 : i32
    %c0_i32_0 = arith.constant 0 : i32
    %c0_i32_1 = arith.constant 0 : i32
    return %c0_i32, %c0_i32_0 : i32, i32
  }
  func.func @transform_3(%arg0: i32) -> (i32, i32, i32) {
    %c0_i32 = arith.constant 0 : i32
    %c0_i32_0 = arith.constant 0 : i32
    %c0_i32_1 = arith.constant 0 : i32
    %c0_i32_2 = arith.constant 0 : i32
    return %c0_i32, %c0_i32_0, %c0_i32_1 : i32, i32, i32
  }
  func.func @transform_4(%arg0: i32) -> (i32, i32, i32) {
    %c0_i32 = arith.constant 0 : i32
    %c0_i32_0 = arith.constant 0 : i32
    %c0_i32_1 = arith.constant 0 : i32
    %c0_i32_2 = arith.constant 0 : i32
    return %c0_i32, %c0_i32_0, %c0_i32_1 : i32, i32, i32
  }
  func.func @transform_5(%arg0: i32) -> (i32, i32, i32) {
    %c0_i32 = arith.constant 0 : i32
    %c0_i32_0 = arith.constant 0 : i32
    %c0_i32_1 = arith.constant 0 : i32
    %c0_i32_2 = arith.constant 0 : i32
    return %c0_i32, %c0_i32_0, %c0_i32_1 : i32, i32, i32
  }
  func.func @transform_6(%arg0: i32) -> (i32, i32, i32) {
    %c0_i32 = arith.constant 0 : i32
    %c0_i32_0 = arith.constant 0 : i32
    %c0_i32_1 = arith.constant 0 : i32
    %c0_i32_2 = arith.constant 0 : i32
    return %c0_i32, %c0_i32_0, %c0_i32_1 : i32, i32, i32
  }
  func.func @transform_7(%arg0: i32) -> (i32, i32, i32) {
    %c0_i32 = arith.constant 0 : i32
    %c0_i32_0 = arith.constant 0 : i32
    %c0_i32_1 = arith.constant 0 : i32
    %c0_i32_2 = arith.constant 0 : i32
    return %c0_i32, %c0_i32_0, %c0_i32_1 : i32, i32, i32
  }
  func.func @transform_8(%arg0: i32) -> (i32, i32, i32) {
    %c0_i32 = arith.constant 0 : i32
    %c0_i32_0 = arith.constant 0 : i32
    %c0_i32_1 = arith.constant 0 : i32
    %c0_i32_2 = arith.constant 0 : i32
    return %c0_i32, %c0_i32_0, %c0_i32_1 : i32, i32, i32
  }
  func.func @transform_9(%arg0: i32) -> (i32, i32, i32) {
    %c0_i32 = arith.constant 0 : i32
    %c0_i32_0 = arith.constant 0 : i32
    %c0_i32_1 = arith.constant 0 : i32
    %c0_i32_2 = arith.constant 0 : i32
    return %c0_i32, %c0_i32_0, %c0_i32_1 : i32, i32, i32
  }
  func.func @transform_10(%arg0: i32) -> (i32, i32) {
    %c0_i32 = arith.constant 0 : i32
    %c0_i32_0 = arith.constant 0 : i32
    %c0_i32_1 = arith.constant 0 : i32
    return %c0_i32, %c0_i32_0 : i32, i32
  }
  func.func @transform_11(%arg0: i32) -> (i32, i32) {
    %c0_i32 = arith.constant 0 : i32
    %c0_i32_0 = arith.constant 0 : i32
    %c0_i32_1 = arith.constant 0 : i32
    return %c0_i32, %c0_i32_0 : i32, i32
  }
  func.func @transform_12(%arg0: i32) -> (i32, i32) {
    %c0_i32 = arith.constant 0 : i32
    %c0_i32_0 = arith.constant 0 : i32
    %c0_i32_1 = arith.constant 0 : i32
    return %c0_i32, %c0_i32_0 : i32, i32
  }
  func.func @transform_13(%arg0: i32) -> (i32, i32) {
    %c0_i32 = arith.constant 0 : i32
    %c0_i32_0 = arith.constant 0 : i32
    %c0_i32_1 = arith.constant 0 : i32
    return %c0_i32, %c0_i32_0 : i32, i32
  }
  func.func @transform_14(%arg0: i32) -> (i32, i32) {
    %c0_i32 = arith.constant 0 : i32
    %c0_i32_0 = arith.constant 0 : i32
    %c0_i32_1 = arith.constant 0 : i32
    return %c0_i32, %c0_i32_0 : i32, i32
  }
  func.func @transform_15(%arg0: i32) -> (i32, i32) {
    %c0_i32 = arith.constant 0 : i32
    %c0_i32_0 = arith.constant 0 : i32
    %c0_i32_1 = arith.constant 0 : i32
    return %c0_i32, %c0_i32_0 : i32, i32
  }
  func.func @transform_16(%arg0: i32) -> (i32, i32) {
    %c0_i32 = arith.constant 0 : i32
    %c0_i32_0 = arith.constant 0 : i32
    %c0_i32_1 = arith.constant 0 : i32
    return %c0_i32, %c0_i32_0 : i32, i32
  }
  func.func @transform_17(%arg0: i32) -> (i32, i32, i32) {
    %c0_i32 = arith.constant 0 : i32
    %c0_i32_0 = arith.constant 0 : i32
    %c0_i32_1 = arith.constant 0 : i32
    return %arg0, %c0_i32, %c0_i32_0 : i32, i32, i32
  }
}

module attributes {stable_mosaic.version = 11 : i64} {
  func.func @kernel(%arg0: i32, %arg1: memref<1x8x32xf32, #tpu.memory_space<vmem>>, %arg2: memref<1x32xf32, #tpu.memory_space<vmem>>, %arg3: memref<1x32xf32, #tpu.memory_space<vmem>>, %arg4: memref<2x32x16xf32, #tpu.memory_space<vmem>>, %arg5: memref<2x1x16xf32, #tpu.memory_space<vmem>>, %arg6: memref<2x32x16xf32, #tpu.memory_space<vmem>>, %arg7: memref<2x1x16xf32, #tpu.memory_space<vmem>>, %arg8: memref<2x32x16xf32, #tpu.memory_space<vmem>>, %arg9: memref<2x1x16xf32, #tpu.memory_space<vmem>>, %arg10: memref<2x16x32xf32, #tpu.memory_space<vmem>>, %arg11: memref<1x32xf32, #tpu.memory_space<vmem>>, %arg12: memref<1x32xf32, #tpu.memory_space<vmem>>, %arg13: memref<1x32xf32, #tpu.memory_space<vmem>>, %arg14: memref<32x64xf32, #tpu.memory_space<vmem>>, %arg15: memref<1x64xf32, #tpu.memory_space<vmem>>, %arg16: memref<64x32xf32, #tpu.memory_space<vmem>>, %arg17: memref<1x32xf32, #tpu.memory_space<vmem>>, %arg18: memref<1x8x32xf32, #tpu.memory_space<vmem>>, %arg19: memref<2x8x16xf32, #tpu.memory_space<vmem>>, %arg20: memref<2x8x16xf32, #tpu.memory_space<vmem>>, %arg21: memref<2x8x16xf32, #tpu.memory_space<vmem>>) attributes {dimension_semantics = [#tpu.dimension_semantics<parallel>], iteration_bounds = array<i64: 2>, scalar_prefetch = 0 : i64, scratch_operands = 3 : i64, tpu.core_type = #tpu.core_type<tc>, window_params = [{transform_indices = @transform_0, window_bounds = array<i64: 1, 8, 32>}, {pipeline_mode = #tpu.pipeline_mode<synchronous>, transform_indices = @transform_1, window_bounds = array<i64: 1, 32>}, {pipeline_mode = #tpu.pipeline_mode<synchronous>, transform_indices = @transform_2, window_bounds = array<i64: 1, 32>}, {pipeline_mode = #tpu.pipeline_mode<synchronous>, transform_indices = @transform_3, window_bounds = array<i64: 2, 32, 16>}, {pipeline_mode = #tpu.pipeline_mode<synchronous>, transform_indices = @transform_4, window_bounds = array<i64: 2, 1, 16>}, {pipeline_mode = #tpu.pipeline_mode<synchronous>, transform_indices = @transform_5, window_bounds = array<i64: 2, 32, 16>}, {pipeline_mode = #tpu.pipeline_mode<synchronous>, transform_indices = @transform_6, window_bounds = array<i64: 2, 1, 16>}, {pipeline_mode = #tpu.pipeline_mode<synchronous>, transform_indices = @transform_7, window_bounds = array<i64: 2, 32, 16>}, {pipeline_mode = #tpu.pipeline_mode<synchronous>, transform_indices = @transform_8, window_bounds = array<i64: 2, 1, 16>}, {pipeline_mode = #tpu.pipeline_mode<synchronous>, transform_indices = @transform_9, window_bounds = array<i64: 2, 16, 32>}, {pipeline_mode = #tpu.pipeline_mode<synchronous>, transform_indices = @transform_10, window_bounds = array<i64: 1, 32>}, {pipeline_mode = #tpu.pipeline_mode<synchronous>, transform_indices = @transform_11, window_bounds = array<i64: 1, 32>}, {pipeline_mode = #tpu.pipeline_mode<synchronous>, transform_indices = @transform_12, window_bounds = array<i64: 1, 32>}, {pipeline_mode = #tpu.pipeline_mode<synchronous>, transform_indices = @transform_13, window_bounds = array<i64: 32, 64>}, {pipeline_mode = #tpu.pipeline_mode<synchronous>, transform_indices = @transform_14, window_bounds = array<i64: 1, 64>}, {pipeline_mode = #tpu.pipeline_mode<synchronous>, transform_indices = @transform_15, window_bounds = array<i64: 64, 32>}, {pipeline_mode = #tpu.pipeline_mode<synchronous>, transform_indices = @transform_16, window_bounds = array<i64: 1, 32>}, {transform_indices = @transform_17, window_bounds = array<i64: 1, 8, 32>}]} {
    %c0 = arith.constant 0 : index
    %c0_0 = arith.constant 0 : index
    %c0_1 = arith.constant 0 : index
    %0 = vector.load %arg1[%c0, %c0_0, %c0_1] : memref<1x8x32xf32, #tpu.memory_space<vmem>>, vector<1x8x32xf32>
    %1 = vector.shape_cast %0 : vector<1x8x32xf32> to vector<8x32xf32>
    %c0_2 = arith.constant 0 : index
    %c0_3 = arith.constant 0 : index
    %2 = vector.load %arg2[%c0_2, %c0_3] : memref<1x32xf32, #tpu.memory_space<vmem>>, vector<1x32xf32>
    %c0_4 = arith.constant 0 : index
    %c0_5 = arith.constant 0 : index
    %3 = vector.load %arg3[%c0_4, %c0_5] : memref<1x32xf32, #tpu.memory_space<vmem>>, vector<1x32xf32>
    %cst = arith.constant dense<0.000000e+00> : vector<8xf32>
    %4 = vector.multi_reduction <add>, %1, %cst [1] : vector<8x32xf32> to vector<8xf32>
    %5 = vector.shape_cast %4 : vector<8xf32> to vector<8x1xf32>
    %cst_6 = arith.constant 3.200000e+01 : f32
    %6 = vector.broadcast %cst_6 : f32 to vector<8x1xf32>
    %7 = arith.divf %5, %6 : vector<8x1xf32>
    %8 = vector.broadcast %7 : vector<8x1xf32> to vector<8x32xf32>
    %9 = arith.subf %1, %8 : vector<8x32xf32>
    %10 = arith.mulf %9, %9 : vector<8x32xf32>
    %cst_7 = arith.constant dense<0.000000e+00> : vector<8xf32>
    %11 = vector.multi_reduction <add>, %10, %cst_7 [1] : vector<8x32xf32> to vector<8xf32>
    %12 = vector.shape_cast %11 : vector<8xf32> to vector<8x1xf32>
    %cst_8 = arith.constant 3.200000e+01 : f32
    %13 = vector.broadcast %cst_8 : f32 to vector<8x1xf32>
    %14 = arith.divf %12, %13 : vector<8x1xf32>
    %cst_9 = arith.constant 9.99999974E-6 : f32
    %15 = vector.broadcast %cst_9 : f32 to vector<8x1xf32>
    %16 = arith.addf %14, %15 : vector<8x1xf32>
    %17 = math.rsqrt %16 : vector<8x1xf32>
    %18 = vector.broadcast %17 : vector<8x1xf32> to vector<8x32xf32>
    %19 = arith.mulf %9, %18 : vector<8x32xf32>
    %20 = vector.broadcast %2 : vector<1x32xf32> to vector<8x32xf32>
    %21 = arith.mulf %19, %20 : vector<8x32xf32>
    %22 = vector.broadcast %3 : vector<1x32xf32> to vector<8x32xf32>
    %23 = arith.addf %21, %22 : vector<8x32xf32>
    %c0_10 = arith.constant 0 : index
    %c0_11 = arith.constant 0 : index
    %c0_12 = arith.constant 0 : index
    %24 = vector.load %arg4[%c0_10, %c0_11, %c0_12] : memref<2x32x16xf32, #tpu.memory_space<vmem>>, vector<1x32x16xf32>
    %25 = vector.shape_cast %24 : vector<1x32x16xf32> to vector<32x16xf32>
    %cst_13 = arith.constant dense<0.000000e+00> : vector<8x16xf32>
    %26 = tpu.matmul %23, %25, %cst_13 {dimension_numbers = #tpu.dot_dimension_numbers<[1], [0], [0], [1], [0, 0, 1, 1], [], []>} : vector<8x32xf32>, vector<32x16xf32>, vector<8x16xf32> -> vector<8x16xf32>
    %c0_14 = arith.constant 0 : index
    %c0_15 = arith.constant 0 : index
    %c0_16 = arith.constant 0 : index
    %27 = vector.load %arg5[%c0_14, %c0_15, %c0_16] : memref<2x1x16xf32, #tpu.memory_space<vmem>>, vector<1x1x16xf32>
    %28 = vector.shape_cast %27 : vector<1x1x16xf32> to vector<1x16xf32>
    %29 = vector.broadcast %28 : vector<1x16xf32> to vector<8x16xf32>
    %30 = arith.addf %26, %29 : vector<8x16xf32>
    %c0_17 = arith.constant 0 : index
    %c0_18 = arith.constant 0 : index
    %c0_19 = arith.constant 0 : index
    %31 = vector.load %arg19[%c0_17, %c0_18, %c0_19] : memref<2x8x16xf32, #tpu.memory_space<vmem>>, vector<1x8x16xf32>
    %32 = vector.shape_cast %31 : vector<1x8x16xf32> to vector<8x16xf32>
    %33 = vector.shape_cast %30 : vector<8x16xf32> to vector<1x8x16xf32>
    tpu.vector_store %arg19[%c0_17, %c0_18, %c0_19], %33 {strides = array<i32>} : memref<2x8x16xf32, #tpu.memory_space<vmem>>, vector<1x8x16xf32>,
    %c0_20 = arith.constant 0 : index
    %c0_21 = arith.constant 0 : index
    %c0_22 = arith.constant 0 : index
    %34 = vector.load %arg6[%c0_20, %c0_21, %c0_22] : memref<2x32x16xf32, #tpu.memory_space<vmem>>, vector<1x32x16xf32>
    %35 = vector.shape_cast %34 : vector<1x32x16xf32> to vector<32x16xf32>
    %cst_23 = arith.constant dense<0.000000e+00> : vector<8x16xf32>
    %36 = tpu.matmul %23, %35, %cst_23 {dimension_numbers = #tpu.dot_dimension_numbers<[1], [0], [0], [1], [0, 0, 1, 1], [], []>} : vector<8x32xf32>, vector<32x16xf32>, vector<8x16xf32> -> vector<8x16xf32>
    %c0_24 = arith.constant 0 : index
    %c0_25 = arith.constant 0 : index
    %c0_26 = arith.constant 0 : index
    %37 = vector.load %arg7[%c0_24, %c0_25, %c0_26] : memref<2x1x16xf32, #tpu.memory_space<vmem>>, vector<1x1x16xf32>
    %38 = vector.shape_cast %37 : vector<1x1x16xf32> to vector<1x16xf32>
    %39 = vector.broadcast %38 : vector<1x16xf32> to vector<8x16xf32>
    %40 = arith.addf %36, %39 : vector<8x16xf32>
    %c0_27 = arith.constant 0 : index
    %c0_28 = arith.constant 0 : index
    %c0_29 = arith.constant 0 : index
    %41 = vector.load %arg20[%c0_27, %c0_28, %c0_29] : memref<2x8x16xf32, #tpu.memory_space<vmem>>, vector<1x8x16xf32>
    %42 = vector.shape_cast %41 : vector<1x8x16xf32> to vector<8x16xf32>
    %43 = vector.shape_cast %40 : vector<8x16xf32> to vector<1x8x16xf32>
    tpu.vector_store %arg20[%c0_27, %c0_28, %c0_29], %43 {strides = array<i32>} : memref<2x8x16xf32, #tpu.memory_space<vmem>>, vector<1x8x16xf32>,
    %c0_30 = arith.constant 0 : index
    %c0_31 = arith.constant 0 : index
    %c0_32 = arith.constant 0 : index
    %44 = vector.load %arg8[%c0_30, %c0_31, %c0_32] : memref<2x32x16xf32, #tpu.memory_space<vmem>>, vector<1x32x16xf32>
    %45 = vector.shape_cast %44 : vector<1x32x16xf32> to vector<32x16xf32>
    %cst_33 = arith.constant dense<0.000000e+00> : vector<8x16xf32>
    %46 = tpu.matmul %23, %45, %cst_33 {dimension_numbers = #tpu.dot_dimension_numbers<[1], [0], [0], [1], [0, 0, 1, 1], [], []>} : vector<8x32xf32>, vector<32x16xf32>, vector<8x16xf32> -> vector<8x16xf32>
    %c0_34 = arith.constant 0 : index
    %c0_35 = arith.constant 0 : index
    %c0_36 = arith.constant 0 : index
    %47 = vector.load %arg9[%c0_34, %c0_35, %c0_36] : memref<2x1x16xf32, #tpu.memory_space<vmem>>, vector<1x1x16xf32>
    %48 = vector.shape_cast %47 : vector<1x1x16xf32> to vector<1x16xf32>
    %49 = vector.broadcast %48 : vector<1x16xf32> to vector<8x16xf32>
    %50 = arith.addf %46, %49 : vector<8x16xf32>
    %c0_37 = arith.constant 0 : index
    %c0_38 = arith.constant 0 : index
    %c0_39 = arith.constant 0 : index
    %51 = vector.load %arg21[%c0_37, %c0_38, %c0_39] : memref<2x8x16xf32, #tpu.memory_space<vmem>>, vector<1x8x16xf32>
    %52 = vector.shape_cast %51 : vector<1x8x16xf32> to vector<8x16xf32>
    %53 = vector.shape_cast %50 : vector<8x16xf32> to vector<1x8x16xf32>
    tpu.vector_store %arg21[%c0_37, %c0_38, %c0_39], %53 {strides = array<i32>} : memref<2x8x16xf32, #tpu.memory_space<vmem>>, vector<1x8x16xf32>,
    %c1 = arith.constant 1 : index
    %c0_40 = arith.constant 0 : index
    %c0_41 = arith.constant 0 : index
    %54 = vector.load %arg4[%c1, %c0_40, %c0_41] : memref<2x32x16xf32, #tpu.memory_space<vmem>>, vector<1x32x16xf32>
    %55 = vector.shape_cast %54 : vector<1x32x16xf32> to vector<32x16xf32>
    %cst_42 = arith.constant dense<0.000000e+00> : vector<8x16xf32>
    %56 = tpu.matmul %23, %55, %cst_42 {dimension_numbers = #tpu.dot_dimension_numbers<[1], [0], [0], [1], [0, 0, 1, 1], [], []>} : vector<8x32xf32>, vector<32x16xf32>, vector<8x16xf32> -> vector<8x16xf32>
    %c1_43 = arith.constant 1 : index
    %c0_44 = arith.constant 0 : index
    %c0_45 = arith.constant 0 : index
    %57 = vector.load %arg5[%c1_43, %c0_44, %c0_45] : memref<2x1x16xf32, #tpu.memory_space<vmem>>, vector<1x1x16xf32>
    %58 = vector.shape_cast %57 : vector<1x1x16xf32> to vector<1x16xf32>
    %59 = vector.broadcast %58 : vector<1x16xf32> to vector<8x16xf32>
    %60 = arith.addf %56, %59 : vector<8x16xf32>
    %c1_46 = arith.constant 1 : index
    %c0_47 = arith.constant 0 : index
    %c0_48 = arith.constant 0 : index
    %61 = vector.load %arg19[%c1_46, %c0_47, %c0_48] : memref<2x8x16xf32, #tpu.memory_space<vmem>>, vector<1x8x16xf32>
    %62 = vector.shape_cast %61 : vector<1x8x16xf32> to vector<8x16xf32>
    %63 = vector.shape_cast %60 : vector<8x16xf32> to vector<1x8x16xf32>
    tpu.vector_store %arg19[%c1_46, %c0_47, %c0_48], %63 {strides = array<i32>} : memref<2x8x16xf32, #tpu.memory_space<vmem>>, vector<1x8x16xf32>,
    %c1_49 = arith.constant 1 : index
    %c0_50 = arith.constant 0 : index
    %c0_51 = arith.constant 0 : index
    %64 = vector.load %arg6[%c1_49, %c0_50, %c0_51] : memref<2x32x16xf32, #tpu.memory_space<vmem>>, vector<1x32x16xf32>
    %65 = vector.shape_cast %64 : vector<1x32x16xf32> to vector<32x16xf32>
    %cst_52 = arith.constant dense<0.000000e+00> : vector<8x16xf32>
    %66 = tpu.matmul %23, %65, %cst_52 {dimension_numbers = #tpu.dot_dimension_numbers<[1], [0], [0], [1], [0, 0, 1, 1], [], []>} : vector<8x32xf32>, vector<32x16xf32>, vector<8x16xf32> -> vector<8x16xf32>
    %c1_53 = arith.constant 1 : index
    %c0_54 = arith.constant 0 : index
    %c0_55 = arith.constant 0 : index
    %67 = vector.load %arg7[%c1_53, %c0_54, %c0_55] : memref<2x1x16xf32, #tpu.memory_space<vmem>>, vector<1x1x16xf32>
    %68 = vector.shape_cast %67 : vector<1x1x16xf32> to vector<1x16xf32>
    %69 = vector.broadcast %68 : vector<1x16xf32> to vector<8x16xf32>
    %70 = arith.addf %66, %69 : vector<8x16xf32>
    %c1_56 = arith.constant 1 : index
    %c0_57 = arith.constant 0 : index
    %c0_58 = arith.constant 0 : index
    %71 = vector.load %arg20[%c1_56, %c0_57, %c0_58] : memref<2x8x16xf32, #tpu.memory_space<vmem>>, vector<1x8x16xf32>
    %72 = vector.shape_cast %71 : vector<1x8x16xf32> to vector<8x16xf32>
    %73 = vector.shape_cast %70 : vector<8x16xf32> to vector<1x8x16xf32>
    tpu.vector_store %arg20[%c1_56, %c0_57, %c0_58], %73 {strides = array<i32>} : memref<2x8x16xf32, #tpu.memory_space<vmem>>, vector<1x8x16xf32>,
    %c1_59 = arith.constant 1 : index
    %c0_60 = arith.constant 0 : index
    %c0_61 = arith.constant 0 : index
    %74 = vector.load %arg8[%c1_59, %c0_60, %c0_61] : memref<2x32x16xf32, #tpu.memory_space<vmem>>, vector<1x32x16xf32>
    %75 = vector.shape_cast %74 : vector<1x32x16xf32> to vector<32x16xf32>
    %cst_62 = arith.constant dense<0.000000e+00> : vector<8x16xf32>
    %76 = tpu.matmul %23, %75, %cst_62 {dimension_numbers = #tpu.dot_dimension_numbers<[1], [0], [0], [1], [0, 0, 1, 1], [], []>} : vector<8x32xf32>, vector<32x16xf32>, vector<8x16xf32> -> vector<8x16xf32>
    %c1_63 = arith.constant 1 : index
    %c0_64 = arith.constant 0 : index
    %c0_65 = arith.constant 0 : index
    %77 = vector.load %arg9[%c1_63, %c0_64, %c0_65] : memref<2x1x16xf32, #tpu.memory_space<vmem>>, vector<1x1x16xf32>
    %78 = vector.shape_cast %77 : vector<1x1x16xf32> to vector<1x16xf32>
    %79 = vector.broadcast %78 : vector<1x16xf32> to vector<8x16xf32>
    %80 = arith.addf %76, %79 : vector<8x16xf32>
    %c1_66 = arith.constant 1 : index
    %c0_67 = arith.constant 0 : index
    %c0_68 = arith.constant 0 : index
    %81 = vector.load %arg21[%c1_66, %c0_67, %c0_68] : memref<2x8x16xf32, #tpu.memory_space<vmem>>, vector<1x8x16xf32>
    %82 = vector.shape_cast %81 : vector<1x8x16xf32> to vector<8x16xf32>
    %83 = vector.shape_cast %80 : vector<8x16xf32> to vector<1x8x16xf32>
    tpu.vector_store %arg21[%c1_66, %c0_67, %c0_68], %83 {strides = array<i32>} : memref<2x8x16xf32, #tpu.memory_space<vmem>>, vector<1x8x16xf32>,
    %c0_69 = arith.constant 0 : index
    %c0_70 = arith.constant 0 : index
    %c0_71 = arith.constant 0 : index
    %84 = vector.load %arg19[%c0_69, %c0_70, %c0_71] : memref<2x8x16xf32, #tpu.memory_space<vmem>>, vector<2x8x16xf32>
    %cst_72 = arith.constant 0xFF800000 : f32
    %85 = vector.broadcast %cst_72 : f32 to vector<2x8x1xf32>
    %cst_73 = arith.constant 0.000000e+00 : f32
    %86 = vector.broadcast %cst_73 : f32 to vector<2x8x1xf32>
    %cst_74 = arith.constant 0.000000e+00 : f32
    %87 = vector.broadcast %cst_74 : f32 to vector<2x8x16xf32>
    %c0_i32 = arith.constant 0 : i32
    %c8_i32 = arith.constant 8 : i32
    %88 = arith.muli %c0_i32, %c8_i32 : i32
    %89 = tpu.assume_multiple %88, 8 : i32
    %c0_75 = arith.constant 0 : index
    %90 = arith.index_cast %89 : i32 to index
    %c0_76 = arith.constant 0 : index
    %91 = vector.load %arg20[%c0_75, %90, %c0_76] : memref<2x8x16xf32, #tpu.memory_space<vmem>>, vector<2x8x16xf32>
    %c0_77 = arith.constant 0 : index
    %92 = arith.index_cast %89 : i32 to index
    %c0_78 = arith.constant 0 : index
    %93 = vector.load %arg21[%c0_77, %92, %c0_78] : memref<2x8x16xf32, #tpu.memory_space<vmem>>, vector<2x8x16xf32>
    "tpu.trace_start"() <{level = 10 : i32, message = "hqd,hkd->hqk"}> : () -> ()
    %cst_79 = arith.constant dense<0.000000e+00> : vector<2x8x8xf32>
    %94 = tpu.matmul %84, %91, %cst_79 {dimension_numbers = #tpu.dot_dimension_numbers<[2], [2], [1], [1], [0, 0, 0, 1, 1, 1], [0], [0]>} : vector<2x8x16xf32>, vector<2x8x16xf32>, vector<2x8x8xf32> -> vector<2x8x8xf32>
    "tpu.trace_stop"() : () -> ()
    %cst_80 = arith.constant dense<0xFF800000> : vector<2x8xf32>
    %95 = vector.multi_reduction <maximumf>, %94, %cst_80 [2] : vector<2x8x8xf32> to vector<2x8xf32>
    %96 = vector.shape_cast %95 : vector<2x8xf32> to vector<2x8x1xf32>
    %97 = arith.maximumf %85, %96 : vector<2x8x1xf32>
    %98 = arith.subf %85, %97 : vector<2x8x1xf32>
    %99 = math.exp %98 : vector<2x8x1xf32>
    %100 = vector.broadcast %97 : vector<2x8x1xf32> to vector<2x8x8xf32>
    %101 = arith.subf %94, %100 : vector<2x8x8xf32>
    %102 = math.exp %101 : vector<2x8x8xf32>
    %103 = arith.mulf %99, %86 : vector<2x8x1xf32>
    %cst_81 = arith.constant dense<0.000000e+00> : vector<2x8xf32>
    %104 = vector.multi_reduction <add>, %102, %cst_81 [2] : vector<2x8x8xf32> to vector<2x8xf32>
    %105 = vector.shape_cast %104 : vector<2x8xf32> to vector<2x8x1xf32>
    %106 = arith.addf %103, %105 : vector<2x8x1xf32>
    %107 = vector.broadcast %99 : vector<2x8x1xf32> to vector<2x8x16xf32>
    %108 = arith.mulf %107, %87 : vector<2x8x16xf32>
    "tpu.trace_start"() <{level = 10 : i32, message = "hqk,hkd->hqd"}> : () -> ()
    %cst_82 = arith.constant dense<0.000000e+00> : vector<2x8x16xf32>
    %109 = tpu.matmul %102, %93, %cst_82 {dimension_numbers = #tpu.dot_dimension_numbers<[2], [1], [1], [2], [0, 0, 0, 1, 1, 2], [0], [0]>} : vector<2x8x8xf32>, vector<2x8x16xf32>, vector<2x8x16xf32> -> vector<2x8x16xf32>
    "tpu.trace_stop"() : () -> ()
    %110 = arith.addf %108, %109 : vector<2x8x16xf32>
    %c1_i32 = arith.constant 1 : i32
    %111 = tpu.reciprocal %106 : vector<2x8x1xf32> -> vector<2x8x1xf32>
    %112 = vector.broadcast %111 : vector<2x8x1xf32> to vector<2x8x16xf32>
    %113 = arith.mulf %110, %112 : vector<2x8x16xf32>
    %c0_83 = arith.constant 0 : index
    %c0_84 = arith.constant 0 : index
    %114 = vector.load %arg11[%c0_83, %c0_84] : memref<1x32xf32, #tpu.memory_space<vmem>>, vector<1x32xf32>
    %115 = vector.extract_strided_slice %113 {offsets = [0, 0, 0], sizes = [1, 8, 16], strides = [1, 1, 1]} : vector<2x8x16xf32> to vector<1x8x16xf32>
    %116 = vector.shape_cast %115 : vector<1x8x16xf32> to vector<8x16xf32>
    %c0_85 = arith.constant 0 : index
    %c0_86 = arith.constant 0 : index
    %c0_87 = arith.constant 0 : index
    %117 = vector.load %arg10[%c0_85, %c0_86, %c0_87] : memref<2x16x32xf32, #tpu.memory_space<vmem>>, vector<1x16x32xf32>
    %118 = vector.shape_cast %117 : vector<1x16x32xf32> to vector<16x32xf32>
    %cst_88 = arith.constant dense<0.000000e+00> : vector<8x32xf32>
    %119 = tpu.matmul %116, %118, %cst_88 {dimension_numbers = #tpu.dot_dimension_numbers<[1], [0], [0], [1], [0, 0, 1, 1], [], []>} : vector<8x16xf32>, vector<16x32xf32>, vector<8x32xf32> -> vector<8x32xf32>
    %120 = vector.broadcast %114 : vector<1x32xf32> to vector<8x32xf32>
    %121 = arith.addf %120, %119 : vector<8x32xf32>
    %122 = vector.extract_strided_slice %113 {offsets = [1, 0, 0], sizes = [1, 8, 16], strides = [1, 1, 1]} : vector<2x8x16xf32> to vector<1x8x16xf32>
    %123 = vector.shape_cast %122 : vector<1x8x16xf32> to vector<8x16xf32>
    %c1_89 = arith.constant 1 : index
    %c0_90 = arith.constant 0 : index
    %c0_91 = arith.constant 0 : index
    %124 = vector.load %arg10[%c1_89, %c0_90, %c0_91] : memref<2x16x32xf32, #tpu.memory_space<vmem>>, vector<1x16x32xf32>
    %125 = vector.shape_cast %124 : vector<1x16x32xf32> to vector<16x32xf32>
    %cst_92 = arith.constant dense<0.000000e+00> : vector<8x32xf32>
    %126 = tpu.matmul %123, %125, %cst_92 {dimension_numbers = #tpu.dot_dimension_numbers<[1], [0], [0], [1], [0, 0, 1, 1], [], []>} : vector<8x16xf32>, vector<16x32xf32>, vector<8x32xf32> -> vector<8x32xf32>
    %127 = arith.addf %121, %126 : vector<8x32xf32>
    %128 = arith.addf %1, %127 : vector<8x32xf32>
    %c0_93 = arith.constant 0 : index
    %c0_94 = arith.constant 0 : index
    %129 = vector.load %arg12[%c0_93, %c0_94] : memref<1x32xf32, #tpu.memory_space<vmem>>, vector<1x32xf32>
    %c0_95 = arith.constant 0 : index
    %c0_96 = arith.constant 0 : index
    %130 = vector.load %arg13[%c0_95, %c0_96] : memref<1x32xf32, #tpu.memory_space<vmem>>, vector<1x32xf32>
    %cst_97 = arith.constant dense<0.000000e+00> : vector<8xf32>
    %131 = vector.multi_reduction <add>, %128, %cst_97 [1] : vector<8x32xf32> to vector<8xf32>
    %132 = vector.shape_cast %131 : vector<8xf32> to vector<8x1xf32>
    %cst_98 = arith.constant 3.200000e+01 : f32
    %133 = vector.broadcast %cst_98 : f32 to vector<8x1xf32>
    %134 = arith.divf %132, %133 : vector<8x1xf32>
    %135 = vector.broadcast %134 : vector<8x1xf32> to vector<8x32xf32>
    %136 = arith.subf %128, %135 : vector<8x32xf32>
    %137 = arith.mulf %136, %136 : vector<8x32xf32>
    %cst_99 = arith.constant dense<0.000000e+00> : vector<8xf32>
    %138 = vector.multi_reduction <add>, %137, %cst_99 [1] : vector<8x32xf32> to vector<8xf32>
    %139 = vector.shape_cast %138 : vector<8xf32> to vector<8x1xf32>
    %cst_100 = arith.constant 3.200000e+01 : f32
    %140 = vector.broadcast %cst_100 : f32 to vector<8x1xf32>
    %141 = arith.divf %139, %140 : vector<8x1xf32>
    %cst_101 = arith.constant 9.99999974E-6 : f32
    %142 = vector.broadcast %cst_101 : f32 to vector<8x1xf32>
    %143 = arith.addf %141, %142 : vector<8x1xf32>
    %144 = math.rsqrt %143 : vector<8x1xf32>
    %145 = vector.broadcast %144 : vector<8x1xf32> to vector<8x32xf32>
    %146 = arith.mulf %136, %145 : vector<8x32xf32>
    %147 = vector.broadcast %129 : vector<1x32xf32> to vector<8x32xf32>
    %148 = arith.mulf %146, %147 : vector<8x32xf32>
    %149 = vector.broadcast %130 : vector<1x32xf32> to vector<8x32xf32>
    %150 = arith.addf %148, %149 : vector<8x32xf32>
    %c0_102 = arith.constant 0 : index
    %c0_103 = arith.constant 0 : index
    %151 = vector.load %arg14[%c0_102, %c0_103] : memref<32x64xf32, #tpu.memory_space<vmem>>, vector<32x64xf32>
    %cst_104 = arith.constant dense<0.000000e+00> : vector<8x64xf32>
    %152 = tpu.matmul %150, %151, %cst_104 {dimension_numbers = #tpu.dot_dimension_numbers<[1], [0], [0], [1], [0, 0, 1, 1], [], []>} : vector<8x32xf32>, vector<32x64xf32>, vector<8x64xf32> -> vector<8x64xf32>
    %c0_105 = arith.constant 0 : index
    %c0_106 = arith.constant 0 : index
    %153 = vector.load %arg15[%c0_105, %c0_106] : memref<1x64xf32, #tpu.memory_space<vmem>>, vector<1x64xf32>
    %154 = vector.broadcast %153 : vector<1x64xf32> to vector<8x64xf32>
    %155 = arith.addf %152, %154 : vector<8x64xf32>
    %cst_107 = arith.constant 5.000000e-01 : f32
    %156 = vector.broadcast %cst_107 : f32 to vector<8x64xf32>
    %157 = arith.mulf %156, %155 : vector<8x64xf32>
    %cst_108 = arith.constant 0.707106769 : f32
    %158 = vector.broadcast %cst_108 : f32 to vector<8x64xf32>
    %159 = arith.mulf %155, %158 : vector<8x64xf32>
    %cst_109 = arith.constant 0.000000e+00 : f32
    %160 = vector.broadcast %cst_109 : f32 to vector<8x64xf32>
    %161 = arith.cmpf oge, %159, %160 : vector<8x64xf32>
    %cst_110 = arith.constant 1.000000e+00 : f32
    %cst_111 = arith.constant -1.000000e+00 : f32
    %162 = vector.broadcast %cst_110 : f32 to vector<8x64xf32>
    %163 = vector.broadcast %cst_111 : f32 to vector<8x64xf32>
    %164 = arith.select %161, %162, %163 : vector<8x64xi1>, vector<8x64xf32>
    %165 = math.absf %159 : vector<8x64xf32>
    %cst_112 = arith.constant 0.327591091 : f32
    %166 = vector.broadcast %cst_112 : f32 to vector<8x64xf32>
    %167 = arith.mulf %166, %165 : vector<8x64xf32>
    %cst_113 = arith.constant 1.000000e+00 : f32
    %168 = vector.broadcast %cst_113 : f32 to vector<8x64xf32>
    %169 = arith.addf %168, %167 : vector<8x64xf32>
    %170 = tpu.reciprocal %169 : vector<8x64xf32> -> vector<8x64xf32>
    %cst_114 = arith.constant 1.06140542 : f32
    %171 = vector.broadcast %cst_114 : f32 to vector<8x64xf32>
    %172 = arith.mulf %171, %170 : vector<8x64xf32>
    %cst_115 = arith.constant -1.45315206 : f32
    %173 = vector.broadcast %cst_115 : f32 to vector<8x64xf32>
    %174 = arith.addf %172, %173 : vector<8x64xf32>
    %175 = arith.mulf %174, %170 : vector<8x64xf32>
    %cst_116 = arith.constant 1.42141378 : f32
    %176 = vector.broadcast %cst_116 : f32 to vector<8x64xf32>
    %177 = arith.addf %175, %176 : vector<8x64xf32>
    %178 = arith.mulf %177, %170 : vector<8x64xf32>
    %cst_117 = arith.constant -0.284496725 : f32
    %179 = vector.broadcast %cst_117 : f32 to vector<8x64xf32>
    %180 = arith.addf %178, %179 : vector<8x64xf32>
    %181 = arith.mulf %180, %170 : vector<8x64xf32>
    %cst_118 = arith.constant 0.254829586 : f32
    %182 = vector.broadcast %cst_118 : f32 to vector<8x64xf32>
    %183 = arith.addf %181, %182 : vector<8x64xf32>
    %184 = arith.mulf %183, %170 : vector<8x64xf32>
    %cst_119 = arith.constant 0.000000e+00 : f32
    %185 = vector.broadcast %cst_119 : f32 to vector<8x64xf32>
    %186 = arith.subf %185, %165 : vector<8x64xf32>
    %187 = arith.mulf %186, %165 : vector<8x64xf32>
    %188 = math.exp %187 : vector<8x64xf32>
    %189 = arith.mulf %184, %188 : vector<8x64xf32>
    %cst_120 = arith.constant 1.000000e+00 : f32
    %190 = vector.broadcast %cst_120 : f32 to vector<8x64xf32>
    %191 = arith.subf %190, %189 : vector<8x64xf32>
    %192 = arith.mulf %164, %191 : vector<8x64xf32>
    %cst_121 = arith.constant 1.000000e+00 : f32
    %193 = vector.broadcast %cst_121 : f32 to vector<8x64xf32>
    %194 = arith.addf %193, %192 : vector<8x64xf32>
    %195 = arith.mulf %157, %194 : vector<8x64xf32>
    %c0_122 = arith.constant 0 : index
    %c0_123 = arith.constant 0 : index
    %196 = vector.load %arg16[%c0_122, %c0_123] : memref<64x32xf32, #tpu.memory_space<vmem>>, vector<64x32xf32>
    %cst_124 = arith.constant dense<0.000000e+00> : vector<8x32xf32>
    %197 = tpu.matmul %195, %196, %cst_124 {dimension_numbers = #tpu.dot_dimension_numbers<[1], [0], [0], [1], [0, 0, 1, 1], [], []>} : vector<8x64xf32>, vector<64x32xf32>, vector<8x32xf32> -> vector<8x32xf32>
    %c0_125 = arith.constant 0 : index
    %c0_126 = arith.constant 0 : index
    %198 = vector.load %arg17[%c0_125, %c0_126] : memref<1x32xf32, #tpu.memory_space<vmem>>, vector<1x32xf32>
    %199 = vector.broadcast %198 : vector<1x32xf32> to vector<8x32xf32>
    %200 = arith.addf %197, %199 : vector<8x32xf32>
    %201 = arith.addf %128, %200 : vector<8x32xf32>
    %c0_127 = arith.constant 0 : index
    %c0_128 = arith.constant 0 : index
    %c0_129 = arith.constant 0 : index
    %202 = vector.load %arg18[%c0_127, %c0_128, %c0_129] : memref<1x8x32xf32, #tpu.memory_space<vmem>>, vector<1x8x32xf32>
    %203 = vector.shape_cast %202 : vector<1x8x32xf32> to vector<8x32xf32>
    %204 = vector.shape_cast %201 : vector<8x32xf32> to vector<1x8x32xf32>
    tpu.vector_store %arg18[%c0_127, %c0_128, %c0_129], %204 {strides = array<i32>} : memref<1x8x32xf32, #tpu.memory_space<vmem>>, vector<1x8x32xf32>,
    return
  }
  func.func @transform_0(%arg0: i32) -> (i32, i32, i32) {
    %c0_i32 = arith.constant 0 : i32
    %c0_i32_0 = arith.constant 0 : i32
    %c0_i32_1 = arith.constant 0 : i32
    return %arg0, %c0_i32, %c0_i32_0 : i32, i32, i32
  }
  func.func @transform_1(%arg0: i32) -> (i32, i32) {
    %c0_i32 = arith.constant 0 : i32
    %c0_i32_0 = arith.constant 0 : i32
    %c0_i32_1 = arith.constant 0 : i32
    return %c0_i32, %c0_i32_0 : i32, i32
  }
  func.func @transform_2(%arg0: i32) -> (i32, i32) {
    %c0_i32 = arith.constant 0 : i32
    %c0_i32_0 = arith.constant 0 : i32
    %c0_i32_1 = arith.constant 0 : i32
    return %c0_i32, %c0_i32_0 : i32, i32
  }
  func.func @transform_3(%arg0: i32) -> (i32, i32, i32) {
    %c0_i32 = arith.constant 0 : i32
    %c0_i32_0 = arith.constant 0 : i32
    %c0_i32_1 = arith.constant 0 : i32
    %c0_i32_2 = arith.constant 0 : i32
    return %c0_i32, %c0_i32_0, %c0_i32_1 : i32, i32, i32
  }
  func.func @transform_4(%arg0: i32) -> (i32, i32, i32) {
    %c0_i32 = arith.constant 0 : i32
    %c0_i32_0 = arith.constant 0 : i32
    %c0_i32_1 = arith.constant 0 : i32
    %c0_i32_2 = arith.constant 0 : i32
    return %c0_i32, %c0_i32_0, %c0_i32_1 : i32, i32, i32
  }
  func.func @transform_5(%arg0: i32) -> (i32, i32, i32) {
    %c0_i32 = arith.constant 0 : i32
    %c0_i32_0 = arith.constant 0 : i32
    %c0_i32_1 = arith.constant 0 : i32
    %c0_i32_2 = arith.constant 0 : i32
    return %c0_i32, %c0_i32_0, %c0_i32_1 : i32, i32, i32
  }
  func.func @transform_6(%arg0: i32) -> (i32, i32, i32) {
    %c0_i32 = arith.constant 0 : i32
    %c0_i32_0 = arith.constant 0 : i32
    %c0_i32_1 = arith.constant 0 : i32
    %c0_i32_2 = arith.constant 0 : i32
    return %c0_i32, %c0_i32_0, %c0_i32_1 : i32, i32, i32
  }
  func.func @transform_7(%arg0: i32) -> (i32, i32, i32) {
    %c0_i32 = arith.constant 0 : i32
    %c0_i32_0 = arith.constant 0 : i32
    %c0_i32_1 = arith.constant 0 : i32
    %c0_i32_2 = arith.constant 0 : i32
    return %c0_i32, %c0_i32_0, %c0_i32_1 : i32, i32, i32
  }
  func.func @transform_8(%arg0: i32) -> (i32, i32, i32) {
    %c0_i32 = arith.constant 0 : i32
    %c0_i32_0 = arith.constant 0 : i32
    %c0_i32_1 = arith.constant 0 : i32
    %c0_i32_2 = arith.constant 0 : i32
    return %c0_i32, %c0_i32_0, %c0_i32_1 : i32, i32, i32
  }
  func.func @transform_9(%arg0: i32) -> (i32, i32, i32) {
    %c0_i32 = arith.constant 0 : i32
    %c0_i32_0 = arith.constant 0 : i32
    %c0_i32_1 = arith.constant 0 : i32
    %c0_i32_2 = arith.constant 0 : i32
    return %c0_i32, %c0_i32_0, %c0_i32_1 : i32, i32, i32
  }
  func.func @transform_10(%arg0: i32) -> (i32, i32) {
    %c0_i32 = arith.constant 0 : i32
    %c0_i32_0 = arith.constant 0 : i32
    %c0_i32_1 = arith.constant 0 : i32
    return %c0_i32, %c0_i32_0 : i32, i32
  }
  func.func @transform_11(%arg0: i32) -> (i32, i32) {
    %c0_i32 = arith.constant 0 : i32
    %c0_i32_0 = arith.constant 0 : i32
    %c0_i32_1 = arith.constant 0 : i32
    return %c0_i32, %c0_i32_0 : i32, i32
  }
  func.func @transform_12(%arg0: i32) -> (i32, i32) {
    %c0_i32 = arith.constant 0 : i32
    %c0_i32_0 = arith.constant 0 : i32
    %c0_i32_1 = arith.constant 0 : i32
    return %c0_i32, %c0_i32_0 : i32, i32
  }
  func.func @transform_13(%arg0: i32) -> (i32, i32) {
    %c0_i32 = arith.constant 0 : i32
    %c0_i32_0 = arith.constant 0 : i32
    %c0_i32_1 = arith.constant 0 : i32
    return %c0_i32, %c0_i32_0 : i32, i32
  }
  func.func @transform_14(%arg0: i32) -> (i32, i32) {
    %c0_i32 = arith.constant 0 : i32
    %c0_i32_0 = arith.constant 0 : i32
    %c0_i32_1 = arith.constant 0 : i32
    return %c0_i32, %c0_i32_0 : i32, i32
  }
  func.func @transform_15(%arg0: i32) -> (i32, i32) {
    %c0_i32 = arith.constant 0 : i32
    %c0_i32_0 = arith.constant 0 : i32
    %c0_i32_1 = arith.constant 0 : i32
    return %c0_i32, %c0_i32_0 : i32, i32
  }
  func.func @transform_16(%arg0: i32) -> (i32, i32) {
    %c0_i32 = arith.constant 0 : i32
    %c0_i32_0 = arith.constant 0 : i32
    %c0_i32_1 = arith.constant 0 : i32
    return %c0_i32, %c0_i32_0 : i32, i32
  }
  func.func @transform_17(%arg0: i32) -> (i32, i32, i32) {
    %c0_i32 = arith.constant 0 : i32
    %c0_i32_0 = arith.constant 0 : i32
    %c0_i32_1 = arith.constant 0 : i32
    return %arg0, %c0_i32, %c0_i32_0 : i32, i32, i32
  }
}

</mosaic_0001>

<llo_original>
// kernel: tpu_custom_call.1
$region0: #{tpu_custom_call.1}
  #allocation0 [shape = 'u32[]', space=smem, size = 0x4, offset = 0x4, fixed_abs, tag = 'smem constant byte address 0x4 - core index']
  #allocation1 [shape = 'u32[72,128]{1,0:T(1,128)}', space=vmem, size = 0x9000, scoped, tag = 'internal scratch']
  #allocation2 [shape = 'f32[2,8,16]{2,1,0:T(8,128)}', space=vmem, size = 0x2000, scoped, tag = 'scratch operand']
  #allocation3 [shape = 'f32[2,8,16]{2,1,0:T(8,128)}', space=vmem, size = 0x2000, scoped, tag = 'scratch operand']
  #allocation4 [shape = 'f32[2,8,16]{2,1,0:T(8,128)}', space=vmem, size = 0x2000, scoped, tag = 'scratch operand']
  %s0 = inlined_call_operand.vmem [shape: f32[2,8,32], index: 0, kind: input, shape index: {}]
  %s1 = inlined_call_operand.vmem [shape: f32[1,32], index: 1, kind: input, shape index: {}]
  %s2 = inlined_call_operand.vmem [shape: f32[1,32], index: 2, kind: input, shape index: {}]
  %s3 = inlined_call_operand.vmem [shape: f32[2,32,16], index: 3, kind: input, shape index: {}]
  %s4 = inlined_call_operand.vmem [shape: f32[2,1,16], index: 4, kind: input, shape index: {}]
  %s5 = inlined_call_operand.vmem [shape: f32[2,32,16], index: 5, kind: input, shape index: {}]
  %s6 = inlined_call_operand.vmem [shape: f32[2,1,16], index: 6, kind: input, shape index: {}]
  %s7 = inlined_call_operand.vmem [shape: f32[2,32,16], index: 7, kind: input, shape index: {}]
  %s8 = inlined_call_operand.vmem [shape: f32[2,1,16], index: 8, kind: input, shape index: {}]
  %s9 = inlined_call_operand.vmem [shape: f32[2,16,32], index: 9, kind: input, shape index: {}]
  %s10 = inlined_call_operand.vmem [shape: f32[1,32], index: 10, kind: input, shape index: {}]
  %s11 = inlined_call_operand.vmem [shape: f32[1,32], index: 11, kind: input, shape index: {}]
  %s12 = inlined_call_operand.vmem [shape: f32[1,32], index: 12, kind: input, shape index: {}]
  %s13 = inlined_call_operand.vmem [shape: f32[32,64], index: 13, kind: input, shape index: {}]
  %s14 = inlined_call_operand.vmem [shape: f32[1,64], index: 14, kind: input, shape index: {}]
  %s15 = inlined_call_operand.vmem [shape: f32[64,32], index: 15, kind: input, shape index: {}]
  %s16 = inlined_call_operand.vmem [shape: f32[1,32], index: 16, kind: input, shape index: {}]
  %s17 = inlined_call_operand.hbm [shape: f32[2,8,32], index: 17, kind: output, shape index: {}]
  %s18 = sld [smem:[#allocation0]]
  $region101: #{tpu_custom_call.1} parent=0
    _
  %s20 = ssub.s32 1, %s18
  %s21 = scalar_select 0, %s20, %s18
  $region1: #{tpu_custom_call.1} parent=0
    #allocation5 [shape = 'u8[8192]{0}', space=vmem, size = 0x2000, scoped, tag = 'output window, operand 0']
    #allocation6 [shape = 's32[2]{0}', space=sflag, size = 0x8, scoped, tag = 'scoped memory for tpu_custom_call.1']
    %22 = vsyncpa [#allocation6], 0
    %s23 = scalar_lea.sflag [#allocation6], 1
    %24 = vsyncpa %s23, 0
    loop: start=0, step=1, limit=4
    $region2: #{tpu_custom_call.1} parent=1 // loop_pre_header
      _
    $region3: #{tpu_custom_call.1} parent=1 // loop_header
      %s26 = sphi 0, %s30
      %p27 = scmp.ge.s32.totalorder %s26, 4
      %s36 = sphi 0, %s38
      %s39 = sphi 0, %s36
      %s40 = sphi 0, %s39
      %s56 = sphi 0, %s40
      %s60 = sphi 0, %s60
      %s62 = sphi 0, %s60
      %s63 = sphi 0, %s62
      %s77 = sphi 0, %s63
      %s81 = sphi 0, %s81
      %s83 = sphi 0, %s81
      %s84 = sphi 0, %s83
      %s98 = sphi 0, %s84
      %s102 = sphi 0, %s102
      %s104 = sphi 0, %s102
      %s105 = sphi 0, %s104
      %s119 = sphi 0, %s105
      %s123 = sphi 0, %s123
      %s125 = sphi 0, %s123
      %s126 = sphi 0, %s125
      %s140 = sphi 0, %s126
      %s144 = sphi 0, %s144
      %s146 = sphi 0, %s144
      %s147 = sphi 0, %s146
      %s161 = sphi 0, %s147
      %s165 = sphi 0, %s165
      %s167 = sphi 0, %s165
      %s168 = sphi 0, %s167
      %s182 = sphi 0, %s168
      %s186 = sphi 0, %s186
      %s188 = sphi 0, %s186
      %s189 = sphi 0, %s188
      %s203 = sphi 0, %s189
      %s207 = sphi 0, %s207
      %s209 = sphi 0, %s207
      %s210 = sphi 0, %s209
      %s224 = sphi 0, %s210
      %s228 = sphi 0, %s228
      %s230 = sphi 0, %s228
      %s231 = sphi 0, %s230
      %s245 = sphi 0, %s231
      %s249 = sphi 0, %s249
      %s251 = sphi 0, %s249
      %s252 = sphi 0, %s251
      %s266 = sphi 0, %s252
      %s270 = sphi 0, %s270
      %s272 = sphi 0, %s270
      %s273 = sphi 0, %s272
      %s287 = sphi 0, %s273
      %s291 = sphi 0, %s291
      %s293 = sphi 0, %s291
      %s294 = sphi 0, %s293
      %s308 = sphi 0, %s294
      %s312 = sphi 0, %s312
      %s314 = sphi 0, %s312
      %s315 = sphi 0, %s314
      %s329 = sphi 0, %s315
      %s333 = sphi 0, %s333
      %s335 = sphi 0, %s333
      %s336 = sphi 0, %s335
      %s350 = sphi 0, %s336
      %s354 = sphi 0, %s354
      %s356 = sphi 0, %s354
      %s357 = sphi 0, %s356
      %s371 = sphi 0, %s357
      %s375 = sphi 0, %s375
      %s377 = sphi 0, %s375
      %s378 = sphi 0, %s377
      %s392 = sphi 0, %s378
      %s398 = sphi 0, %s400
      %s401 = sphi 0, %s398
      %s402 = sphi 0, %s401
      %s418 = sphi 0, %s402
    $region4: #{tpu_custom_call.1} parent=1 // loop_header_branch
      %29 = sbr.rel (%p27) target = $region8
    $region5: #{tpu_custom_call.1} parent=1 // loop_body
      %s31 = ssub.s32 %s26, 1
      %s32 = ssub.s32 %s26, 2
      %s33 = sadd.s32 %s26, 1
      %s34 = ssub.s32 %s26, %s33
      %p35 = scmp.eq.s32.totalorder %s34, 0
      %s37 = sadd.s32 %s36, 1
      %s38 = scalar_select %p35, %s36, %s37
      %p41 = pneg %p35
      %p42 = scmp.eq.s32.totalorder %s26, 1
      %p43 = por %p41, %p42
      %p44 = scmp.ne.s32.totalorder %s36, %s39
      %p45 = scmp.eq.s32.totalorder %s26, 0
      %p46 = por %p44, %p45
      %p47 = scmp.ne.s32.totalorder %s36, %s39
      %p48 = scmp.eq.s32.totalorder %s31, 1
      %p49 = por %p47, %p48
      %p50 = scmp.ne.s32.totalorder %s39, %s40
      %p51 = scmp.eq.s32.totalorder %s31, 0
      %p52 = por %p50, %p51
      %p53 = scmp.ne.s32.totalorder %s39, %s40
      %p54 = scmp.eq.s32.totalorder %s32, 1
      %p55 = por %p53, %p54
      %p57 = scmp.ne.s32.totalorder %s40, %s56
      %p58 = scmp.eq.s32.totalorder %s32, 0
      %p59 = por %p57, %p58
      %s61 = sadd.s32 %s60, 1
      %p64 = scmp.eq.s32.totalorder %s26, 1
      %p65 = scmp.ne.s32.totalorder %s60, %s62
      %p66 = scmp.eq.s32.totalorder %s26, 0
      %p67 = por %p65, %p66
      %p68 = scmp.ne.s32.totalorder %s60, %s62
      %p69 = scmp.eq.s32.totalorder %s31, 1
      %p70 = por %p68, %p69
      %p71 = scmp.ne.s32.totalorder %s62, %s63
      %p72 = scmp.eq.s32.totalorder %s31, 0
      %p73 = por %p71, %p72
      %p74 = scmp.ne.s32.totalorder %s62, %s63
      %p75 = scmp.eq.s32.totalorder %s32, 1
      %p76 = por %p74, %p75
      %p78 = scmp.ne.s32.totalorder %s63, %s77
      %p79 = scmp.eq.s32.totalorder %s32, 0
      %p80 = por %p78, %p79
      %s82 = sadd.s32 %s81, 1
      %p85 = scmp.eq.s32.totalorder %s26, 1
      %p86 = scmp.ne.s32.totalorder %s81, %s83
      %p87 = scmp.eq.s32.totalorder %s26, 0
      %p88 = por %p86, %p87
      %p89 = scmp.ne.s32.totalorder %s81, %s83
      %p90 = scmp.eq.s32.totalorder %s31, 1
      %p91 = por %p89, %p90
      %p92 = scmp.ne.s32.totalorder %s83, %s84
      %p93 = scmp.eq.s32.totalorder %s31, 0
      %p94 = por %p92, %p93
      %p95 = scmp.ne.s32.totalorder %s83, %s84
      %p96 = scmp.eq.s32.totalorder %s32, 1
      %p97 = por %p95, %p96
      %p99 = scmp.ne.s32.totalorder %s84, %s98
      %p100 = scmp.eq.s32.totalorder %s32, 0
      %p101 = por %p99, %p100
      %s103 = sadd.s32 %s102, 1
      %p106 = scmp.eq.s32.totalorder %s26, 1
      %p107 = scmp.ne.s32.totalorder %s102, %s104
      %p108 = scmp.eq.s32.totalorder %s26, 0
      %p109 = por %p107, %p108
      %p110 = scmp.ne.s32.totalorder %s102, %s104
      %p111 = scmp.eq.s32.totalorder %s31, 1
      %p112 = por %p110, %p111
      %p113 = scmp.ne.s32.totalorder %s104, %s105
      %p114 = scmp.eq.s32.totalorder %s31, 0
      %p115 = por %p113, %p114
      %p116 = scmp.ne.s32.totalorder %s104, %s105
      %p117 = scmp.eq.s32.totalorder %s32, 1
      %p118 = por %p116, %p117
      %p120 = scmp.ne.s32.totalorder %s105, %s119
      %p121 = scmp.eq.s32.totalorder %s32, 0
      %p122 = por %p120, %p121
      %s124 = sadd.s32 %s123, 1
      %p127 = scmp.eq.s32.totalorder %s26, 1
      %p128 = scmp.ne.s32.totalorder %s123, %s125
      %p129 = scmp.eq.s32.totalorder %s26, 0
      %p130 = por %p128, %p129
      %p131 = scmp.ne.s32.totalorder %s123, %s125
      %p132 = scmp.eq.s32.totalorder %s31, 1
      %p133 = por %p131, %p132
      %p134 = scmp.ne.s32.totalorder %s125, %s126
      %p135 = scmp.eq.s32.totalorder %s31, 0
      %p136 = por %p134, %p135
      %p137 = scmp.ne.s32.totalorder %s125, %s126
      %p138 = scmp.eq.s32.totalorder %s32, 1
      %p139 = por %p137, %p138
      %p141 = scmp.ne.s32.totalorder %s126, %s140
      %p142 = scmp.eq.s32.totalorder %s32, 0
      %p143 = por %p141, %p142
      %s145 = sadd.s32 %s144, 1
      %p148 = scmp.eq.s32.totalorder %s26, 1
      %p149 = scmp.ne.s32.totalorder %s144, %s146
      %p150 = scmp.eq.s32.totalorder %s26, 0
      %p151 = por %p149, %p150
      %p152 = scmp.ne.s32.totalorder %s144, %s146
      %p153 = scmp.eq.s32.totalorder %s31, 1
      %p154 = por %p152, %p153
      %p155 = scmp.ne.s32.totalorder %s146, %s147
      %p156 = scmp.eq.s32.totalorder %s31, 0
      %p157 = por %p155, %p156
      %p158 = scmp.ne.s32.totalorder %s146, %s147
      %p159 = scmp.eq.s32.totalorder %s32, 1
      %p160 = por %p158, %p159
      %p162 = scmp.ne.s32.totalorder %s147, %s161
      %p163 = scmp.eq.s32.totalorder %s32, 0
      %p164 = por %p162, %p163
      %s166 = sadd.s32 %s165, 1
      %p169 = scmp.eq.s32.totalorder %s26, 1
      %p170 = scmp.ne.s32.totalorder %s165, %s167
      %p171 = scmp.eq.s32.totalorder %s26, 0
      %p172 = por %p170, %p171
      %p173 = scmp.ne.s32.totalorder %s165, %s167
      %p174 = scmp.eq.s32.totalorder %s31, 1
      %p175 = por %p173, %p174
      %p176 = scmp.ne.s32.totalorder %s167, %s168
      %p177 = scmp.eq.s32.totalorder %s31, 0
      %p178 = por %p176, %p177
      %p179 = scmp.ne.s32.totalorder %s167, %s168
      %p180 = scmp.eq.s32.totalorder %s32, 1
      %p181 = por %p179, %p180
      %p183 = scmp.ne.s32.totalorder %s168, %s182
      %p184 = scmp.eq.s32.totalorder %s32, 0
      %p185 = por %p183, %p184
      %s187 = sadd.s32 %s186, 1
      %p190 = scmp.eq.s32.totalorder %s26, 1
      %p191 = scmp.ne.s32.totalorder %s186, %s188
      %p192 = scmp.eq.s32.totalorder %s26, 0
      %p193 = por %p191, %p192
      %p194 = scmp.ne.s32.totalorder %s186, %s188
      %p195 = scmp.eq.s32.totalorder %s31, 1
      %p196 = por %p194, %p195
      %p197 = scmp.ne.s32.totalorder %s188, %s189
      %p198 = scmp.eq.s32.totalorder %s31, 0
      %p199 = por %p197, %p198
      %p200 = scmp.ne.s32.totalorder %s188, %s189
      %p201 = scmp.eq.s32.totalorder %s32, 1
      %p202 = por %p200, %p201
      %p204 = scmp.ne.s32.totalorder %s189, %s203
      %p205 = scmp.eq.s32.totalorder %s32, 0
      %p206 = por %p204, %p205
      %s208 = sadd.s32 %s207, 1
      %p211 = scmp.eq.s32.totalorder %s26, 1
      %p212 = scmp.ne.s32.totalorder %s207, %s209
      %p213 = scmp.eq.s32.totalorder %s26, 0
      %p214 = por %p212, %p213
      %p215 = scmp.ne.s32.totalorder %s207, %s209
      %p216 = scmp.eq.s32.totalorder %s31, 1
      %p217 = por %p215, %p216
      %p218 = scmp.ne.s32.totalorder %s209, %s210
      %p219 = scmp.eq.s32.totalorder %s31, 0
      %p220 = por %p218, %p219
      %p221 = scmp.ne.s32.totalorder %s209, %s210
      %p222 = scmp.eq.s32.totalorder %s32, 1
      %p223 = por %p221, %p222
      %p225 = scmp.ne.s32.totalorder %s210, %s224
      %p226 = scmp.eq.s32.totalorder %s32, 0
      %p227 = por %p225, %p226
      %s229 = sadd.s32 %s228, 1
      %p232 = scmp.eq.s32.totalorder %s26, 1
      %p233 = scmp.ne.s32.totalorder %s228, %s230
      %p234 = scmp.eq.s32.totalorder %s26, 0
      %p235 = por %p233, %p234
      %p236 = scmp.ne.s32.totalorder %s228, %s230
      %p237 = scmp.eq.s32.totalorder %s31, 1
      %p238 = por %p236, %p237
      %p239 = scmp.ne.s32.totalorder %s230, %s231
      %p240 = scmp.eq.s32.totalorder %s31, 0
      %p241 = por %p239, %p240
      %p242 = scmp.ne.s32.totalorder %s230, %s231
      %p243 = scmp.eq.s32.totalorder %s32, 1
      %p244 = por %p242, %p243
      %p246 = scmp.ne.s32.totalorder %s231, %s245
      %p247 = scmp.eq.s32.totalorder %s32, 0
      %p248 = por %p246, %p247
      %s250 = sadd.s32 %s249, 1
      %p253 = scmp.eq.s32.totalorder %s26, 1
      %p254 = scmp.ne.s32.totalorder %s249, %s251
      %p255 = scmp.eq.s32.totalorder %s26, 0
      %p256 = por %p254, %p255
      %p257 = scmp.ne.s32.totalorder %s249, %s251
      %p258 = scmp.eq.s32.totalorder %s31, 1
      %p259 = por %p257, %p258
      %p260 = scmp.ne.s32.totalorder %s251, %s252
      %p261 = scmp.eq.s32.totalorder %s31, 0
      %p262 = por %p260, %p261
      %p263 = scmp.ne.s32.totalorder %s251, %s252
      %p264 = scmp.eq.s32.totalorder %s32, 1
      %p265 = por %p263, %p264
      %p267 = scmp.ne.s32.totalorder %s252, %s266
      %p268 = scmp.eq.s32.totalorder %s32, 0
      %p269 = por %p267, %p268
      %s271 = sadd.s32 %s270, 1
      %p274 = scmp.eq.s32.totalorder %s26, 1
      %p275 = scmp.ne.s32.totalorder %s270, %s272
      %p276 = scmp.eq.s32.totalorder %s26, 0
      %p277 = por %p275, %p276
      %p278 = scmp.ne.s32.totalorder %s270, %s272
      %p279 = scmp.eq.s32.totalorder %s31, 1
      %p280 = por %p278, %p279
      %p281 = scmp.ne.s32.totalorder %s272, %s273
      %p282 = scmp.eq.s32.totalorder %s31, 0
      %p283 = por %p281, %p282
      %p284 = scmp.ne.s32.totalorder %s272, %s273
      %p285 = scmp.eq.s32.totalorder %s32, 1
      %p286 = por %p284, %p285
      %p288 = scmp.ne.s32.totalorder %s273, %s287
      %p289 = scmp.eq.s32.totalorder %s32, 0
      %p290 = por %p288, %p289
      %s292 = sadd.s32 %s291, 1
      %p295 = scmp.eq.s32.totalorder %s26, 1
      %p296 = scmp.ne.s32.totalorder %s291, %s293
      %p297 = scmp.eq.s32.totalorder %s26, 0
      %p298 = por %p296, %p297
      %p299 = scmp.ne.s32.totalorder %s291, %s293
      %p300 = scmp.eq.s32.totalorder %s31, 1
      %p301 = por %p299, %p300
      %p302 = scmp.ne.s32.totalorder %s293, %s294
      %p303 = scmp.eq.s32.totalorder %s31, 0
      %p304 = por %p302, %p303
      %p305 = scmp.ne.s32.totalorder %s293, %s294
      %p306 = scmp.eq.s32.totalorder %s32, 1
      %p307 = por %p305, %p306
      %p309 = scmp.ne.s32.totalorder %s294, %s308
      %p310 = scmp.eq.s32.totalorder %s32, 0
      %p311 = por %p309, %p310
      %s313 = sadd.s32 %s312, 1
      %p316 = scmp.eq.s32.totalorder %s26, 1
      %p317 = scmp.ne.s32.totalorder %s312, %s314
      %p318 = scmp.eq.s32.totalorder %s26, 0
      %p319 = por %p317, %p318
      %p320 = scmp.ne.s32.totalorder %s312, %s314
      %p321 = scmp.eq.s32.totalorder %s31, 1
      %p322 = por %p320, %p321
      %p323 = scmp.ne.s32.totalorder %s314, %s315
      %p324 = scmp.eq.s32.totalorder %s31, 0
      %p325 = por %p323, %p324
      %p326 = scmp.ne.s32.totalorder %s314, %s315
      %p327 = scmp.eq.s32.totalorder %s32, 1
      %p328 = por %p326, %p327
      %p330 = scmp.ne.s32.totalorder %s315, %s329
      %p331 = scmp.eq.s32.totalorder %s32, 0
      %p332 = por %p330, %p331
      %s334 = sadd.s32 %s333, 1
      %p337 = scmp.eq.s32.totalorder %s26, 1
      %p338 = scmp.ne.s32.totalorder %s333, %s335
      %p339 = scmp.eq.s32.totalorder %s26, 0
      %p340 = por %p338, %p339
      %p341 = scmp.ne.s32.totalorder %s333, %s335
      %p342 = scmp.eq.s32.totalorder %s31, 1
      %p343 = por %p341, %p342
      %p344 = scmp.ne.s32.totalorder %s335, %s336
      %p345 = scmp.eq.s32.totalorder %s31, 0
      %p346 = por %p344, %p345
      %p347 = scmp.ne.s32.totalorder %s335, %s336
      %p348 = scmp.eq.s32.totalorder %s32, 1
      %p349 = por %p347, %p348
      %p351 = scmp.ne.s32.totalorder %s336, %s350
      %p352 = scmp.eq.s32.totalorder %s32, 0
      %p353 = por %p351, %p352
      %s355 = sadd.s32 %s354, 1
      %p358 = scmp.eq.s32.totalorder %s26, 1
      %p359 = scmp.ne.s32.totalorder %s354, %s356
      %p360 = scmp.eq.s32.totalorder %s26, 0
      %p361 = por %p359, %p360
      %p362 = scmp.ne.s32.totalorder %s354, %s356
      %p363 = scmp.eq.s32.totalorder %s31, 1
      %p364 = por %p362, %p363
      %p365 = scmp.ne.s32.totalorder %s356, %s357
      %p366 = scmp.eq.s32.totalorder %s31, 0
      %p367 = por %p365, %p366
      %p368 = scmp.ne.s32.totalorder %s356, %s357
      %p369 = scmp.eq.s32.totalorder %s32, 1
      %p370 = por %p368, %p369
      %p372 = scmp.ne.s32.totalorder %s357, %s371
      %p373 = scmp.eq.s32.totalorder %s32, 0
      %p374 = por %p372, %p373
      %s376 = sadd.s32 %s375, 1
      %p379 = scmp.eq.s32.totalorder %s26, 1
      %p380 = scmp.ne.s32.totalorder %s375, %s377
      %p381 = scmp.eq.s32.totalorder %s26, 0
      %p382 = por %p380, %p381
      %p383 = scmp.ne.s32.totalorder %s375, %s377
      %p384 = scmp.eq.s32.totalorder %s31, 1
      %p385 = por %p383, %p384
      %p386 = scmp.ne.s32.totalorder %s377, %s378
      %p387 = scmp.eq.s32.totalorder %s31, 0
      %p388 = por %p386, %p387
      %p389 = scmp.ne.s32.totalorder %s377, %s378
      %p390 = scmp.eq.s32.totalorder %s32, 1
      %p391 = por %p389, %p390
      %p393 = scmp.ne.s32.totalorder %s378, %s392
      %p394 = scmp.eq.s32.totalorder %s32, 0
      %p395 = por %p393, %p394
      %s396 = ssub.s32 %s26, %s33
      %p397 = scmp.eq.s32.totalorder %s396, 0
      %s399 = sadd.s32 %s398, 1
      %s400 = scalar_select %p397, %s398, %s399
      %p403 = pneg %p397
      %p404 = scmp.eq.s32.totalorder %s26, 1
      %p405 = por %p403, %p404
      %p406 = scmp.ne.s32.totalorder %s398, %s401
      %p407 = scmp.eq.s32.totalorder %s26, 0
      %p408 = por %p406, %p407
      %p409 = scmp.ne.s32.totalorder %s398, %s401
      %p410 = scmp.eq.s32.totalorder %s31, 1
      %p411 = por %p409, %p410
      %p412 = scmp.ne.s32.totalorder %s401, %s402
      %p413 = scmp.eq.s32.totalorder %s31, 0
      %p414 = por %p412, %p413
      %p415 = scmp.ne.s32.totalorder %s401, %s402
      %p416 = scmp.eq.s32.totalorder %s32, 1
      %p417 = por %p415, %p416
      %p419 = scmp.ne.s32.totalorder %s402, %s418
      %p420 = scmp.eq.s32.totalorder %s32, 0
      %p421 = por %p419, %p420
      %p422 = scmp.le.s32.totalorder 1, %s26
      %p423 = scmp.lt.s32.totalorder %s26, 3
      %p424 = pnand %p422, %p423
      %p425 = pneg %p424
      // Predicated region
      $region9: #{tpu_custom_call.1} parent=5 // pred_check
        _
      $region10: #{tpu_custom_call.1} parent=5 // pred_check_branch
        %427 = sbr.rel (%p424) target = $region12
      $region11: #{tpu_custom_call.1} parent=5 // pred_region
        %s428 = ssub.s32 %s26, 1
        // Predicated region
        $region13: #{tpu_custom_call.1} parent=11 // pred_check
          %p429 = pneg %p73
        $region14: #{tpu_custom_call.1} parent=11 // pred_check_branch
          %431 = sbr.rel (%p429) target = $region16
        $region15: #{tpu_custom_call.1} parent=11 // pred_region
          _
        $region16: #{tpu_custom_call.1} parent=11 // pred_fallthru
          _
        // Predicated region
        $region17: #{tpu_custom_call.1} parent=11 // pred_check
          %p432 = pneg %p94
        $region18: #{tpu_custom_call.1} parent=11 // pred_check_branch
          %434 = sbr.rel (%p432) target = $region20
        $region19: #{tpu_custom_call.1} parent=11 // pred_region
          _
        $region20: #{tpu_custom_call.1} parent=11 // pred_fallthru
          _
        // Predicated region
        $region21: #{tpu_custom_call.1} parent=11 // pred_check
          %p435 = pneg %p115
        $region22: #{tpu_custom_call.1} parent=11 // pred_check_branch
          %437 = sbr.rel (%p435) target = $region24
        $region23: #{tpu_custom_call.1} parent=11 // pred_region
          _
        $region24: #{tpu_custom_call.1} parent=11 // pred_fallthru
          _
        // Predicated region
        $region25: #{tpu_custom_call.1} parent=11 // pred_check
          %p438 = pneg %p136
        $region26: #{tpu_custom_call.1} parent=11 // pred_check_branch
          %440 = sbr.rel (%p438) target = $region28
        $region27: #{tpu_custom_call.1} parent=11 // pred_region
          _
        $region28: #{tpu_custom_call.1} parent=11 // pred_fallthru
          _
        // Predicated region
        $region29: #{tpu_custom_call.1} parent=11 // pred_check
          %p441 = pneg %p157
        $region30: #{tpu_custom_call.1} parent=11 // pred_check_branch
          %443 = sbr.rel (%p441) target = $region32
        $region31: #{tpu_custom_call.1} parent=11 // pred_region
          _
        $region32: #{tpu_custom_call.1} parent=11 // pred_fallthru
          _
        // Predicated region
        $region33: #{tpu_custom_call.1} parent=11 // pred_check
          %p444 = pneg %p178
        $region34: #{tpu_custom_call.1} parent=11 // pred_check_branch
          %446 = sbr.rel (%p444) target = $region36
        $region35: #{tpu_custom_call.1} parent=11 // pred_region
          _
        $region36: #{tpu_custom_call.1} parent=11 // pred_fallthru
          _
        // Predicated region
        $region37: #{tpu_custom_call.1} parent=11 // pred_check
          %p447 = pneg %p199
        $region38: #{tpu_custom_call.1} parent=11 // pred_check_branch
          %449 = sbr.rel (%p447) target = $region40
        $region39: #{tpu_custom_call.1} parent=11 // pred_region
          _
        $region40: #{tpu_custom_call.1} parent=11 // pred_fallthru
          _
        // Predicated region
        $region41: #{tpu_custom_call.1} parent=11 // pred_check
          %p450 = pneg %p220
        $region42: #{tpu_custom_call.1} parent=11 // pred_check_branch
          %452 = sbr.rel (%p450) target = $region44
        $region43: #{tpu_custom_call.1} parent=11 // pred_region
          _
        $region44: #{tpu_custom_call.1} parent=11 // pred_fallthru
          _
        // Predicated region
        $region45: #{tpu_custom_call.1} parent=11 // pred_check
          %p453 = pneg %p241
        $region46: #{tpu_custom_call.1} parent=11 // pred_check_branch
          %455 = sbr.rel (%p453) target = $region48
        $region47: #{tpu_custom_call.1} parent=11 // pred_region
          _
        $region48: #{tpu_custom_call.1} parent=11 // pred_fallthru
          _
        // Predicated region
        $region49: #{tpu_custom_call.1} parent=11 // pred_check
          %p456 = pneg %p262
        $region50: #{tpu_custom_call.1} parent=11 // pred_check_branch
          %458 = sbr.rel (%p456) target = $region52
        $region51: #{tpu_custom_call.1} parent=11 // pred_region
          _
        $region52: #{tpu_custom_call.1} parent=11 // pred_fallthru
          _
        // Predicated region
        $region53: #{tpu_custom_call.1} parent=11 // pred_check
          %p459 = pneg %p283
        $region54: #{tpu_custom_call.1} parent=11 // pred_check_branch
          %461 = sbr.rel (%p459) target = $region56
        $region55: #{tpu_custom_call.1} parent=11 // pred_region
          _
        $region56: #{tpu_custom_call.1} parent=11 // pred_fallthru
          _
        // Predicated region
        $region57: #{tpu_custom_call.1} parent=11 // pred_check
          %p462 = pneg %p304
        $region58: #{tpu_custom_call.1} parent=11 // pred_check_branch
          %464 = sbr.rel (%p462) target = $region60
        $region59: #{tpu_custom_call.1} parent=11 // pred_region
          _
        $region60: #{tpu_custom_call.1} parent=11 // pred_fallthru
          _
        // Predicated region
        $region61: #{tpu_custom_call.1} parent=11 // pred_check
          %p465 = pneg %p325
        $region62: #{tpu_custom_call.1} parent=11 // pred_check_branch
          %467 = sbr.rel (%p465) target = $region64
        $region63: #{tpu_custom_call.1} parent=11 // pred_region
          _
        $region64: #{tpu_custom_call.1} parent=11 // pred_fallthru
          _
        // Predicated region
        $region65: #{tpu_custom_call.1} parent=11 // pred_check
          %p468 = pneg %p346
        $region66: #{tpu_custom_call.1} parent=11 // pred_check_branch
          %470 = sbr.rel (%p468) target = $region68
        $region67: #{tpu_custom_call.1} parent=11 // pred_region
          _
        $region68: #{tpu_custom_call.1} parent=11 // pred_fallthru
          _
        // Predicated region
        $region69: #{tpu_custom_call.1} parent=11 // pred_check
          %p471 = pneg %p367
        $region70: #{tpu_custom_call.1} parent=11 // pred_check_branch
          %473 = sbr.rel (%p471) target = $region72
        $region71: #{tpu_custom_call.1} parent=11 // pred_region
          _
        $region72: #{tpu_custom_call.1} parent=11 // pred_fallthru
          _
        // Predicated region
        $region73: #{tpu_custom_call.1} parent=11 // pred_check
          %p474 = pneg %p388
        $region74: #{tpu_custom_call.1} parent=11 // pred_check_branch
          %476 = sbr.rel (%p474) target = $region76
        $region75: #{tpu_custom_call.1} parent=11 // pred_region
          _
        $region76: #{tpu_custom_call.1} parent=11 // pred_fallthru
          _
      $region12: #{tpu_custom_call.1} parent=5 // pred_fallthru
        _
      %p477 = scmp.lt.s32.totalorder %s26, 2
      // Predicated region
      $region77: #{tpu_custom_call.1} parent=5 // pred_check
        %p478 = pneg %p477
      $region78: #{tpu_custom_call.1} parent=5 // pred_check_branch
        %480 = sbr.rel (%p478) target = $region80
      $region79: #{tpu_custom_call.1} parent=5 // pred_region
        // Predicated region
        $region81: #{tpu_custom_call.1} parent=79 // pred_check
          %p481 = pneg %p46
        $region82: #{tpu_custom_call.1} parent=79 // pred_check_branch
          %483 = sbr.rel (%p481) target = $region84
        $region83: #{tpu_custom_call.1} parent=79 // pred_region
          %p484 = scmp.lt.s32.totalorder %s26, 1
          %s485 = scalar_select %p484, %s26, 1
          %s486 = smul.addr %s485, 8
          %s487 = scalar_lea.vmem %s0, %s486
        $region84: #{tpu_custom_call.1} parent=79 // pred_fallthru
          _
      $region80: #{tpu_custom_call.1} parent=5 // pred_fallthru
        _
      %p488 = scmp.le.s32.totalorder 1, %s26
      %p489 = scmp.lt.s32.totalorder %s26, 3
      %p490 = pnand %p488, %p489
      %p491 = pneg %p490
      // Predicated region
      $region85: #{tpu_custom_call.1} parent=5 // pred_check
        _
      $region86: #{tpu_custom_call.1} parent=5 // pred_check_branch
        %493 = sbr.rel (%p490) target = $region88
      $region87: #{tpu_custom_call.1} parent=5 // pred_region
        %s494 = ssub.s32 %s26, 1
        %p495 = scmp.lt.s32.totalorder %s31, 1
        %s496 = scalar_select %p495, %s31, 1
        %s497 = smul.addr %s496, 8
        %s498 = scalar_lea.vmem %s0, %s497
        %p499 = pneg %p52
        %p500 = pneg %p49
        %p501 = pneg %p73
        %p502 = pneg %p70
        %p503 = pneg %p94
        %p504 = pneg %p91
        %p505 = pneg %p115
        %p506 = pneg %p112
        %p507 = pneg %p136
        %p508 = pneg %p133
        %p509 = pneg %p157
        %p510 = pneg %p154
        %p511 = pneg %p178
        %p512 = pneg %p175
        %p513 = pneg %p199
        %p514 = pneg %p196
        %p515 = pneg %p220
        %p516 = pneg %p217
        %p517 = pneg %p241
        %p518 = pneg %p238
        %p519 = pneg %p262
        %p520 = pneg %p259
        %p521 = pneg %p283
        %p522 = pneg %p280
        %p523 = pneg %p304
        %p524 = pneg %p301
        %p525 = pneg %p325
        %p526 = pneg %p322
        %p527 = pneg %p346
        %p528 = pneg %p343
        %p529 = pneg %p367
        %p530 = pneg %p364
        %p531 = pneg %p388
        %p532 = pneg %p385
        %p533 = pneg %p414
        %p534 = pneg %p411
        %s535 = sand.u32 %s401, 1
        %s536 = scalar_lea.sflag [#allocation6], %s535
        %s537 = sand.u32 %s401, 1
        %s538 = smul.addr %s537, 8
        %s539 = scalar_lea.vmem [#allocation5], %s538
        %p540 = scmp.lt.s32.totalorder %s31, 1
        %s541 = scalar_select %p540, %s31, 1
        %s542 = smul.addr %s541, 8
        %s543 = scalar_lea.vmem %s0, %s542
        %v544 = vld [vmem:[%s543] sm:$0xff]
        %v545 = vld [vmem:[%s1] sm:$0x1]
        %v546 = vld [vmem:[%s2] sm:$0x1]
        %vm547 = vcmask 261120
        %v548 = vsel %vm547, %v544, 0.0
        %549 = vadd.xlane.f32.xlu0 %v548
        %v550 = vpop.xlane.xlu0 %549
        %v551 = vrcp.pop 32.0
        %v552 = vmul.f32 32.0, %v551
        %v553 = vsub.f32 1.0, %v552
        %v554 = vmul.f32 %v551, %v553
        %v555 = vadd.f32 %v551, %v554
        %vm556 = vweird.f32 %v551
        %v557 = vsel %vm556, %v551, %v555
        %v558 = vmul.f32 %v550, %v557
        %v559 = vsub.f32 %v544, %v558
        %v560 = vmul.f32 %v559, %v559
        %v561 = vsel %vm547, %v560, 0.0
        %562 = vadd.xlane.f32.xlu0 %v561
        %v563 = vpop.xlane.xlu0 %562
        %v564 = vmul.f32 %v563, %v557
        %v565 = vadd.f32 %v564, 1e-05
        %v566 = vrsqrt.pop %v565
        %v567 = vmul.f32 %v566, %v565
        %v568 = vmul.f32 %v567, %v566
        %v569 = vmul.f32 0.5, %v568
        %v570 = vsub.f32 1.5, %v569
        %v571 = vmul.f32 %v566, %v570
        %vm572 = vweird.f32 %v565
        %vm573 = vweird.f32 %v566
        %vm574 = vmor %vm572, %vm573
        %v575 = vsel %vm574, %v566, %v571
        %v576 = vmul.f32 %v559, %v575
        %v578 = vperm.slane %v545, 0
        %v580 = vmul.f32 %v576, %v578
        %v582 = vperm.slane %v546, 0
        %v584 = vadd.f32 %v580, %v582
        %v585 = vld [vmem:[%s3] sm:$0xff]
        %v586 = vld [vmem:[%s3 + $0x8] sm:$0xff]
        %v587 = vld [vmem:[%s3 + $0x10] sm:$0xff]
        %v588 = vld [vmem:[%s3 + $0x18] sm:$0xff]
        %v589 = vld [vmem:[%s4] sm:$0x1]
        %v591 = vperm.slane %v589, 0
        %v594 = vsel %vm547, %v584, 0
        %596 = vmatpush.msra.mxu0 0.0
        %597 = vmatpush.msra.mxu0 0.0
        %598 = vmatpush.msra.mxu0 0.0
        %599 = vmatpush.msra.mxu0 0.0
        %600 = vmatpush.msra.mxu0 0.0
        %601 = vmatpush.msra.mxu0 0.0
        %602 = vmatpush.msra.mxu0 0.0
        %603 = vmatpush.msra.mxu0 0.0
        %604 = vmatpush.msra.mxu0 0.0
        %605 = vmatpush.msra.mxu0 0.0
        %606 = vmatpush.msra.mxu0 0.0
        %607 = vmatpush.msra.mxu0 0.0
        %608 = vmatpush.msra.mxu0 %v588
        %609 = vmatpush.msra.mxu0 %v587
        %610 = vmatpush.msra.mxu0 %v586
        %611 = vmatpush.msra.mxu0 %v585
        %612 = vmatmul.f32.gmra.mxu0 %v594
        %v613 = vpop.f32.mrf.mxu0
        %v614 = vadd.f32 %v591, %v613
        %615 = vdwg.mxu0
        %vm616 = vcmask 130048
        %617 = vst.msk [vmem:[#allocation2] sm:$0xff] %vm616, %v614
        %v618 = vld [vmem:[%s5] sm:$0xff]
        %v619 = vld [vmem:[%s5 + $0x8] sm:$0xff]
        %v620 = vld [vmem:[%s5 + $0x10] sm:$0xff]
        %v621 = vld [vmem:[%s5 + $0x18] sm:$0xff]
        %v622 = vld [vmem:[%s6] sm:$0x1]
        %v624 = vperm.slane %v622, 0
        %626 = vmatpush.msra.mxu0 0.0
        %627 = vmatpush.msra.mxu0 0.0
        %628 = vmatpush.msra.mxu0 0.0
        %629 = vmatpush.msra.mxu0 0.0
        %630 = vmatpush.msra.mxu0 0.0
        %631 = vmatpush.msra.mxu0 0.0
        %632 = vmatpush.msra.mxu0 0.0
        %633 = vmatpush.msra.mxu0 0.0
        %634 = vmatpush.msra.mxu0 0.0
        %635 = vmatpush.msra.mxu0 0.0
        %636 = vmatpush.msra.mxu0 0.0
        %637 = vmatpush.msra.mxu0 0.0
        %638 = vmatpush.msra.mxu0 %v621
        %639 = vmatpush.msra.mxu0 %v620
        %640 = vmatpush.msra.mxu0 %v619
        %641 = vmatpush.msra.mxu0 %v618
        %642 = vmatmul.f32.gmra.mxu0 %v594
        %v643 = vpop.f32.mrf.mxu0
        %v644 = vadd.f32 %v624, %v643
        %645 = vdwg.mxu0
        %646 = vst.msk [vmem:[#allocation3] sm:$0xff] %vm616, %v644
        %v647 = vld [vmem:[%s7] sm:$0xff]
        %v648 = vld [vmem:[%s7 + $0x8] sm:$0xff]
        %v649 = vld [vmem:[%s7 + $0x10] sm:$0xff]
        %v650 = vld [vmem:[%s7 + $0x18] sm:$0xff]
        %v651 = vld [vmem:[%s8] sm:$0x1]
        %v653 = vperm.slane %v651, 0
        %655 = vmatpush.msra.mxu0 0.0
        %656 = vmatpush.msra.mxu0 0.0
        %657 = vmatpush.msra.mxu0 0.0
        %658 = vmatpush.msra.mxu0 0.0
        %659 = vmatpush.msra.mxu0 0.0
        %660 = vmatpush.msra.mxu0 0.0
        %661 = vmatpush.msra.mxu0 0.0
        %662 = vmatpush.msra.mxu0 0.0
        %663 = vmatpush.msra.mxu0 0.0
        %664 = vmatpush.msra.mxu0 0.0
        %665 = vmatpush.msra.mxu0 0.0
        %666 = vmatpush.msra.mxu0 0.0
        %667 = vmatpush.msra.mxu0 %v650
        %668 = vmatpush.msra.mxu0 %v649
        %669 = vmatpush.msra.mxu0 %v648
        %670 = vmatpush.msra.mxu0 %v647
        %671 = vmatmul.f32.gmra.mxu0 %v594
        %v672 = vpop.f32.mrf.mxu0
        %v673 = vadd.f32 %v653, %v672
        %674 = vdwg.mxu0
        %675 = vst.msk [vmem:[#allocation4] sm:$0xff] %vm616, %v673
        %s676 = scalar_lea.vmem %s3, 32
        %v677 = vld [vmem:[%s676] sm:$0xff]
        %v678 = vld [vmem:[%s676 + $0x8] sm:$0xff]
        %v679 = vld [vmem:[%s676 + $0x10] sm:$0xff]
        %v680 = vld [vmem:[%s676 + $0x18] sm:$0xff]
        %s681 = scalar_lea.vmem %s4, 1
        %v682 = vld [vmem:[%s681] sm:$0x1]
        %v684 = vperm.slane %v682, 0
        %686 = vmatpush.msra.mxu0 0.0
        %687 = vmatpush.msra.mxu0 0.0
        %688 = vmatpush.msra.mxu0 0.0
        %689 = vmatpush.msra.mxu0 0.0
        %690 = vmatpush.msra.mxu0 0.0
        %691 = vmatpush.msra.mxu0 0.0
        %692 = vmatpush.msra.mxu0 0.0
        %693 = vmatpush.msra.mxu0 0.0
        %694 = vmatpush.msra.mxu0 0.0
        %695 = vmatpush.msra.mxu0 0.0
        %696 = vmatpush.msra.mxu0 0.0
        %697 = vmatpush.msra.mxu0 0.0
        %698 = vmatpush.msra.mxu0 %v680
        %699 = vmatpush.msra.mxu0 %v679
        %700 = vmatpush.msra.mxu0 %v678
        %701 = vmatpush.msra.mxu0 %v677
        %702 = vmatmul.f32.gmra.mxu0 %v594
        %v703 = vpop.f32.mrf.mxu0
        %v704 = vadd.f32 %v684, %v703
        %705 = vdwg.mxu0
        %s706 = scalar_lea.vmem [#allocation2], 8
        %707 = vst.msk [vmem:[%s706] sm:$0xff] %vm616, %v704
        %s708 = scalar_lea.vmem %s5, 32
        %v709 = vld [vmem:[%s708] sm:$0xff]
        %v710 = vld [vmem:[%s708 + $0x8] sm:$0xff]
        %v711 = vld [vmem:[%s708 + $0x10] sm:$0xff]
        %v712 = vld [vmem:[%s708 + $0x18] sm:$0xff]
        %s713 = scalar_lea.vmem %s6, 1
        %v714 = vld [vmem:[%s713] sm:$0x1]
        %v716 = vperm.slane %v714, 0
        %718 = vmatpush.msra.mxu0 0.0
        %719 = vmatpush.msra.mxu0 0.0
        %720 = vmatpush.msra.mxu0 0.0
        %721 = vmatpush.msra.mxu0 0.0
        %722 = vmatpush.msra.mxu0 0.0
        %723 = vmatpush.msra.mxu0 0.0
        %724 = vmatpush.msra.mxu0 0.0
        %725 = vmatpush.msra.mxu0 0.0
        %726 = vmatpush.msra.mxu0 0.0
        %727 = vmatpush.msra.mxu0 0.0
        %728 = vmatpush.msra.mxu0 0.0
        %729 = vmatpush.msra.mxu0 0.0
        %730 = vmatpush.msra.mxu0 %v712
        %731 = vmatpush.msra.mxu0 %v711
        %732 = vmatpush.msra.mxu0 %v710
        %733 = vmatpush.msra.mxu0 %v709
        %734 = vmatmul.f32.gmra.mxu0 %v594
        %v735 = vpop.f32.mrf.mxu0
        %v736 = vadd.f32 %v716, %v735
        %737 = vdwg.mxu0
        %s738 = scalar_lea.vmem [#allocation3], 8
        %739 = vst.msk [vmem:[%s738] sm:$0xff] %vm616, %v736
        %s740 = scalar_lea.vmem %s7, 32
        %v741 = vld [vmem:[%s740] sm:$0xff]
        %v742 = vld [vmem:[%s740 + $0x8] sm:$0xff]
        %v743 = vld [vmem:[%s740 + $0x10] sm:$0xff]
        %v744 = vld [vmem:[%s740 + $0x18] sm:$0xff]
        %s745 = scalar_lea.vmem %s8, 1
        %v746 = vld [vmem:[%s745] sm:$0x1]
        %v748 = vperm.slane %v746, 0
        %750 = vmatpush.msra.mxu0 0.0
        %751 = vmatpush.msra.mxu0 0.0
        %752 = vmatpush.msra.mxu0 0.0
        %753 = vmatpush.msra.mxu0 0.0
        %754 = vmatpush.msra.mxu0 0.0
        %755 = vmatpush.msra.mxu0 0.0
        %756 = vmatpush.msra.mxu0 0.0
        %757 = vmatpush.msra.mxu0 0.0
        %758 = vmatpush.msra.mxu0 0.0
        %759 = vmatpush.msra.mxu0 0.0
        %760 = vmatpush.msra.mxu0 0.0
        %761 = vmatpush.msra.mxu0 0.0
        %762 = vmatpush.msra.mxu0 %v744
        %763 = vmatpush.msra.mxu0 %v743
        %764 = vmatpush.msra.mxu0 %v742
        %765 = vmatpush.msra.mxu0 %v741
        %766 = vmatmul.f32.gmra.mxu0 %v594
        %v767 = vpop.f32.mrf.mxu0
        %v768 = vadd.f32 %v748, %v767
        %769 = vdwg.mxu0
        %s770 = scalar_lea.vmem [#allocation4], 8
        %771 = vst.msk [vmem:[%s770] sm:$0xff] %vm616, %v768
        %v772 = vld [vmem:[#allocation2] sm:$0xff]
        %v773 = vld [vmem:[#allocation2 + $0x8] sm:$0xff]
        %v774 = vld [vmem:[#allocation3] sm:$0xff]
        %v775 = vld [vmem:[#allocation3 + $0x8] sm:$0xff]
        %v776 = vld [vmem:[#allocation4] sm:$0xff]
        %v777 = vld [vmem:[#allocation4 + $0x8] sm:$0xff]
        %v779 = vsel %vm616, %v772, 0
        %v782 = vsel %vm616, %v774, 0
        %784 = vmatpush.xpose.msra.mxu0 0.0
        %785 = vmatpush.xpose.msra.mxu0 0.0
        %786 = vmatpush.xpose.msra.mxu0 0.0
        %787 = vmatpush.xpose.msra.mxu0 0.0
        %788 = vmatpush.xpose.msra.mxu0 0.0
        %789 = vmatpush.xpose.msra.mxu0 0.0
        %790 = vmatpush.xpose.msra.mxu0 0.0
        %791 = vmatpush.xpose.msra.mxu0 0.0
        %792 = vmatpush.xpose.msra.mxu0 0.0
        %793 = vmatpush.xpose.msra.mxu0 0.0
        %794 = vmatpush.xpose.msra.mxu0 0.0
        %795 = vmatpush.xpose.msra.mxu0 0.0
        %796 = vmatpush.xpose.msra.mxu0 0.0
        %797 = vmatpush.xpose.msra.mxu0 0.0
        %798 = vmatpush.xpose.msra.mxu0 0.0
        %799 = vmatpush.xpose.msra.mxu0 %v782
        %800 = vmatmul.f32.gmra.mxu0 %v779
        %v801 = vpop.f32.mrf.mxu0
        %v802 = vadd.f32 0.0, %v801
        %803 = vdwg.mxu0
        %v805 = vsel %vm616, %v773, 0
        %v808 = vsel %vm616, %v775, 0
        %810 = vmatpush.xpose.msra.mxu0 0.0
        %811 = vmatpush.xpose.msra.mxu0 0.0
        %812 = vmatpush.xpose.msra.mxu0 0.0
        %813 = vmatpush.xpose.msra.mxu0 0.0
        %814 = vmatpush.xpose.msra.mxu0 0.0
        %815 = vmatpush.xpose.msra.mxu0 0.0
        %816 = vmatpush.xpose.msra.mxu0 0.0
        %817 = vmatpush.xpose.msra.mxu0 0.0
        %818 = vmatpush.xpose.msra.mxu0 0.0
        %819 = vmatpush.xpose.msra.mxu0 0.0
        %820 = vmatpush.xpose.msra.mxu0 0.0
        %821 = vmatpush.xpose.msra.mxu0 0.0
        %822 = vmatpush.xpose.msra.mxu0 0.0
        %823 = vmatpush.xpose.msra.mxu0 0.0
        %824 = vmatpush.xpose.msra.mxu0 0.0
        %825 = vmatpush.xpose.msra.mxu0 %v808
        %826 = vmatmul.f32.gmra.mxu0 %v805
        %v827 = vpop.f32.mrf.mxu0
        %v828 = vadd.f32 0.0, %v827
        %829 = vdwg.mxu0
        %vm830 = vcmask 64512
        %v831 = vsel %vm830, %v802, -inf
        %832 = vmax.xlane.f32.xlu0 %v831
        %v833 = vpop.xlane.xlu0 %832
        %v834 = vsel %vm830, %v828, -inf
        %835 = vmax.xlane.f32.xlu0 %v834
        %v836 = vpop.xlane.xlu0 %835
        %v837 = vsub.f32 -inf, %v833
        %v838 = vsub.f32 -inf, %v836
        %v839 = vmul.f32 %v837, 1.442695
        %v840 = vpow.pop %v839
        %v841 = vmul.f32 %v838, 1.442695
        %v842 = vpow.pop %v841
        %v843 = vsub.f32 %v802, %v833
        %v844 = vsub.f32 %v828, %v836
        %v845 = vmul.f32 %v843, 1.442695
        %v846 = vpow.pop %v845
        %v847 = vmul.f32 %v844, 1.442695
        %v848 = vpow.pop %v847
        %v849 = vmul.f32 %v840, 0.0
        %v850 = vmul.f32 %v842, 0.0
        %v851 = vsel %vm830, %v846, 0.0
        %852 = vadd.xlane.f32.xlu0 %v851
        %v853 = vpop.xlane.xlu0 %852
        %v854 = vsel %vm830, %v848, 0.0
        %855 = vadd.xlane.f32.xlu0 %v854
        %v856 = vpop.xlane.xlu0 %855
        %v857 = vadd.f32 %v849, %v853
        %v858 = vadd.f32 %v850, %v856
        %v860 = vsel %vm830, %v846, 0
        %862 = vmatpush.msra.mxu0 0.0
        %863 = vmatpush.msra.mxu0 0.0
        %864 = vmatpush.msra.mxu0 0.0
        %865 = vmatpush.msra.mxu0 0.0
        %866 = vmatpush.msra.mxu0 0.0
        %867 = vmatpush.msra.mxu0 0.0
        %868 = vmatpush.msra.mxu0 0.0
        %869 = vmatpush.msra.mxu0 0.0
        %870 = vmatpush.msra.mxu0 0.0
        %871 = vmatpush.msra.mxu0 0.0
        %872 = vmatpush.msra.mxu0 0.0
        %873 = vmatpush.msra.mxu0 0.0
        %874 = vmatpush.msra.mxu0 0.0
        %875 = vmatpush.msra.mxu0 0.0
        %876 = vmatpush.msra.mxu0 0.0
        %877 = vmatpush.msra.mxu0 %v776
        %878 = vmatmul.f32.gmra.mxu0 %v860
        %v879 = vpop.f32.mrf.mxu0
        %v880 = vadd.f32 0.0, %v879
        %881 = vdwg.mxu0
        %v883 = vsel %vm830, %v848, 0
        %885 = vmatpush.msra.mxu0 0.0
        %886 = vmatpush.msra.mxu0 0.0
        %887 = vmatpush.msra.mxu0 0.0
        %888 = vmatpush.msra.mxu0 0.0
        %889 = vmatpush.msra.mxu0 0.0
        %890 = vmatpush.msra.mxu0 0.0
        %891 = vmatpush.msra.mxu0 0.0
        %892 = vmatpush.msra.mxu0 0.0
        %893 = vmatpush.msra.mxu0 0.0
        %894 = vmatpush.msra.mxu0 0.0
        %895 = vmatpush.msra.mxu0 0.0
        %896 = vmatpush.msra.mxu0 0.0
        %897 = vmatpush.msra.mxu0 0.0
        %898 = vmatpush.msra.mxu0 0.0
        %899 = vmatpush.msra.mxu0 0.0
        %900 = vmatpush.msra.mxu0 %v777
        %901 = vmatmul.f32.gmra.mxu0 %v883
        %v902 = vpop.f32.mrf.mxu0
        %v903 = vadd.f32 0.0, %v902
        %904 = vdwg.mxu0
        %v905 = vadd.f32 %v849, %v880
        %v906 = vadd.f32 %v850, %v903
        %v907 = vrcp.pop %v857
        %v908 = vmul.f32 %v857, %v907
        %v909 = vsub.f32 1.0, %v908
        %v910 = vmul.f32 %v907, %v909
        %v911 = vadd.f32 %v907, %v910
        %vm912 = vweird.f32 %v857
        %vm913 = vweird.f32 %v907
        %vm914 = vmor %vm912, %vm913
        %v915 = vsel %vm914, %v907, %v911
        %v916 = vand.u32 2147483647, %v857
        %vm917 = vcmp.eq.f32.partialorder %v916, 8.507059e+37
        %v918 = vand.u32 %v857, 2147483648
        %v919 = vor.u32 1.1754944e-38, %v918
        %v920 = vsel %vm917, %v919, %v915
        %v921 = vrcp.pop %v858
        %v922 = vmul.f32 %v858, %v921
        %v923 = vsub.f32 1.0, %v922
        %v924 = vmul.f32 %v921, %v923
        %v925 = vadd.f32 %v921, %v924
        %vm926 = vweird.f32 %v858
        %vm927 = vweird.f32 %v921
        %vm928 = vmor %vm926, %vm927
        %v929 = vsel %vm928, %v921, %v925
        %v930 = vand.u32 2147483647, %v858
        %vm931 = vcmp.eq.f32.partialorder %v930, 8.507059e+37
        %v932 = vand.u32 %v858, 2147483648
        %v933 = vor.u32 1.1754944e-38, %v932
        %v934 = vsel %vm931, %v933, %v929
        %v935 = vmul.f32 %v905, %v920
        %v936 = vmul.f32 %v906, %v934
        %v937 = vld [vmem:[%s10] sm:$0x1]
        %v938 = vld [vmem:[%s9] sm:$0xff]
        %v939 = vld [vmem:[%s9 + $0x8] sm:$0xff]
        %v941 = vsel %vm616, %v935, 0
        %943 = vmatpush.msra.mxu0 0.0
        %944 = vmatpush.msra.mxu0 0.0
        %945 = vmatpush.msra.mxu0 0.0
        %946 = vmatpush.msra.mxu0 0.0
        %947 = vmatpush.msra.mxu0 0.0
        %948 = vmatpush.msra.mxu0 0.0
        %949 = vmatpush.msra.mxu0 0.0
        %950 = vmatpush.msra.mxu0 0.0
        %951 = vmatpush.msra.mxu0 0.0
        %952 = vmatpush.msra.mxu0 0.0
        %953 = vmatpush.msra.mxu0 0.0
        %954 = vmatpush.msra.mxu0 0.0
        %955 = vmatpush.msra.mxu0 0.0
        %956 = vmatpush.msra.mxu0 0.0
        %957 = vmatpush.msra.mxu0 %v939
        %958 = vmatpush.msra.mxu0 %v938
        %959 = vmatmul.f32.gmra.mxu0 %v941
        %v960 = vpop.f32.mrf.mxu0
        %v961 = vadd.f32 0.0, %v960
        %962 = vdwg.mxu0
        %v964 = vperm.slane %v937, 0
        %v966 = vadd.f32 %v964, %v961
        %s967 = scalar_lea.vmem %s9, 16
        %v968 = vld [vmem:[%s967] sm:$0xff]
        %v969 = vld [vmem:[%s967 + $0x8] sm:$0xff]
        %v971 = vsel %vm616, %v936, 0
        %973 = vmatpush.msra.mxu0 0.0
        %974 = vmatpush.msra.mxu0 0.0
        %975 = vmatpush.msra.mxu0 0.0
        %976 = vmatpush.msra.mxu0 0.0
        %977 = vmatpush.msra.mxu0 0.0
        %978 = vmatpush.msra.mxu0 0.0
        %979 = vmatpush.msra.mxu0 0.0
        %980 = vmatpush.msra.mxu0 0.0
        %981 = vmatpush.msra.mxu0 0.0
        %982 = vmatpush.msra.mxu0 0.0
        %983 = vmatpush.msra.mxu0 0.0
        %984 = vmatpush.msra.mxu0 0.0
        %985 = vmatpush.msra.mxu0 0.0
        %986 = vmatpush.msra.mxu0 0.0
        %987 = vmatpush.msra.mxu0 %v969
        %988 = vmatpush.msra.mxu0 %v968
        %989 = vmatmul.f32.gmra.mxu0 %v971
        %v990 = vpop.f32.mrf.mxu0
        %v991 = vadd.f32 0.0, %v990
        %992 = vdwg.mxu0
        %v993 = vadd.f32 %v966, %v991
        %v994 = vadd.f32 %v544, %v993
        %v995 = vld [vmem:[%s11] sm:$0x1]
        %v996 = vld [vmem:[%s12] sm:$0x1]
        %v997 = vsel %vm547, %v994, 0.0
        %998 = vadd.xlane.f32.xlu0 %v997
        %v999 = vpop.xlane.xlu0 %998
        %v1000 = vmul.f32 %v999, %v557
        %v1001 = vsub.f32 %v994, %v1000
        %v1002 = vmul.f32 %v1001, %v1001
        %v1003 = vsel %vm547, %v1002, 0.0
        %1004 = vadd.xlane.f32.xlu0 %v1003
        %v1005 = vpop.xlane.xlu0 %1004
        %v1006 = vmul.f32 %v1005, %v557
        %v1007 = vadd.f32 %v1006, 1e-05
        %v1008 = vrsqrt.pop %v1007
        %v1009 = vmul.f32 %v1008, %v1007
        %v1010 = vmul.f32 %v1009, %v1008
        %v1011 = vmul.f32 0.5, %v1010
        %v1012 = vsub.f32 1.5, %v1011
        %v1013 = vmul.f32 %v1008, %v1012
        %vm1014 = vweird.f32 %v1007
        %vm1015 = vweird.f32 %v1008
        %vm1016 = vmor %vm1014, %vm1015
        %v1017 = vsel %vm1016, %v1008, %v1013
        %v1018 = vmul.f32 %v1001, %v1017
        %v1020 = vperm.slane %v995, 0
        %v1022 = vmul.f32 %v1018, %v1020
        %v1024 = vperm.slane %v996, 0
        %v1026 = vadd.f32 %v1022, %v1024
        %v1027 = vld [vmem:[%s13] sm:$0xff]
        %v1028 = vld [vmem:[%s13 + $0x8] sm:$0xff]
        %v1029 = vld [vmem:[%s13 + $0x10] sm:$0xff]
        %v1030 = vld [vmem:[%s13 + $0x18] sm:$0xff]
        %v1031 = vld [vmem:[%s14] sm:$0x1]
        %v1033 = vperm.slane %v1031, 0
        %v1036 = vsel %vm547, %v1026, 0
        %1038 = vmatpush.msra.mxu0 0.0
        %1039 = vmatpush.msra.mxu0 0.0
        %1040 = vmatpush.msra.mxu0 0.0
        %1041 = vmatpush.msra.mxu0 0.0
        %1042 = vmatpush.msra.mxu0 0.0
        %1043 = vmatpush.msra.mxu0 0.0
        %1044 = vmatpush.msra.mxu0 0.0
        %1045 = vmatpush.msra.mxu0 0.0
        %1046 = vmatpush.msra.mxu0 0.0
        %1047 = vmatpush.msra.mxu0 0.0
        %1048 = vmatpush.msra.mxu0 0.0
        %1049 = vmatpush.msra.mxu0 0.0
        %1050 = vmatpush.msra.mxu0 %v1030
        %1051 = vmatpush.msra.mxu0 %v1029
        %1052 = vmatpush.msra.mxu0 %v1028
        %1053 = vmatpush.msra.mxu0 %v1027
        %1054 = vmatmul.f32.gmra.mxu0 %v1036
        %v1055 = vpop.f32.mrf.mxu0
        %v1056 = vadd.f32 %v1033, %v1055
        %1057 = vdwg.mxu0
        %v1058 = vmul.f32 %v1056, 0.5
        %v1059 = vmul.f32 %v1056, 0.70710677
        %vm1060 = vcmp.ge.f32.partialorder %v1059, 0.0
        %v1061 = vsel %vm1060, 1.0, -1.0
        %v1062 = vand.u32 2147483647, %v1059
        %v1063 = vmul.f32 %v1062, 0.3275911
        %v1064 = vadd.f32 %v1063, 1.0
        %v1065 = vrcp.pop %v1064
        %v1066 = vmul.f32 %v1064, %v1065
        %v1067 = vsub.f32 1.0, %v1066
        %v1068 = vmul.f32 %v1065, %v1067
        %v1069 = vadd.f32 %v1065, %v1068
        %vm1070 = vweird.f32 %v1064
        %vm1071 = vweird.f32 %v1065
        %vm1072 = vmor %vm1070, %vm1071
        %v1073 = vsel %vm1072, %v1065, %v1069
        %v1074 = vand.u32 2147483647, %v1064
        %vm1075 = vcmp.eq.f32.partialorder %v1074, 8.507059e+37
        %v1076 = vand.u32 %v1064, 2147483648
        %v1077 = vor.u32 1.1754944e-38, %v1076
        %v1078 = vsel %vm1075, %v1077, %v1073
        %v1079 = vmul.f32 %v1078, 1.0614054
        %v1080 = vadd.f32 %v1079, -1.4531521
        %v1081 = vmul.f32 %v1080, %v1078
        %v1082 = vadd.f32 %v1081, 1.4214138
        %v1083 = vmul.f32 %v1082, %v1078
        %v1084 = vadd.f32 %v1083, -0.28449672
        %v1085 = vmul.f32 %v1084, %v1078
        %v1086 = vadd.f32 %v1085, 0.2548296
        %v1087 = vmul.f32 %v1086, %v1078
        %v1088 = vsub.f32 0.0, %v1062
        %v1089 = vmul.f32 %v1088, %v1062
        %v1090 = vmul.f32 %v1089, 1.442695
        %v1091 = vpow.pop %v1090
        %v1092 = vmul.f32 %v1087, %v1091
        %v1093 = vsub.f32 1.0, %v1092
        %v1094 = vmul.f32 %v1061, %v1093
        %v1095 = vadd.f32 %v1094, 1.0
        %v1096 = vmul.f32 %v1058, %v1095
        %v1097 = vld [vmem:[%s15] sm:$0xff]
        %v1098 = vld [vmem:[%s15 + $0x8] sm:$0xff]
        %v1099 = vld [vmem:[%s15 + $0x10] sm:$0xff]
        %v1100 = vld [vmem:[%s15 + $0x18] sm:$0xff]
        %v1101 = vld [vmem:[%s15 + $0x20] sm:$0xff]
        %v1102 = vld [vmem:[%s15 + $0x28] sm:$0xff]
        %v1103 = vld [vmem:[%s15 + $0x30] sm:$0xff]
        %v1104 = vld [vmem:[%s15 + $0x38] sm:$0xff]
        %v1105 = vld [vmem:[%s16] sm:$0x1]
        %v1107 = vperm.slane %v1105, 0
        %vm1109 = vcmask 523264
        %v1111 = vsel %vm1109, %v1096, 0
        %1113 = vmatpush.msra.mxu0 0.0
        %1114 = vmatpush.msra.mxu0 0.0
        %1115 = vmatpush.msra.mxu0 0.0
        %1116 = vmatpush.msra.mxu0 0.0
        %1117 = vmatpush.msra.mxu0 0.0
        %1118 = vmatpush.msra.mxu0 0.0
        %1119 = vmatpush.msra.mxu0 0.0
        %1120 = vmatpush.msra.mxu0 0.0
        %1121 = vmatpush.msra.mxu0 %v1104
        %1122 = vmatpush.msra.mxu0 %v1103
        %1123 = vmatpush.msra.mxu0 %v1102
        %1124 = vmatpush.msra.mxu0 %v1101
        %1125 = vmatpush.msra.mxu0 %v1100
        %1126 = vmatpush.msra.mxu0 %v1099
        %1127 = vmatpush.msra.mxu0 %v1098
        %1128 = vmatpush.msra.mxu0 %v1097
        %1129 = vmatmul.f32.gmra.mxu0 %v1111
        %v1130 = vpop.f32.mrf.mxu0
        %v1131 = vadd.f32 %v1107, %v1130
        %1132 = vdwg.mxu0
        %v1133 = vadd.f32 %v994, %v1131
        %1134 = vst.msk [vmem:[%s539] sm:$0xff] %vm547, %v1133
        %s1135 = sand.u32 %s401, 1
        %s1136 = scalar_lea.sflag [#allocation6], %s1135
        %s1137 = sand.u32 %s401, 1
        %s1138 = smul.addr %s1137, 8
        %s1139 = scalar_lea.vmem [#allocation5], %s1138
        // Predicated region
        $region89: #{tpu_custom_call.1} parent=87 // pred_check
          %p1140 = pneg %p411
        $region90: #{tpu_custom_call.1} parent=87 // pred_check_branch
          %1142 = sbr.rel (%p1140) target = $region92
        $region91: #{tpu_custom_call.1} parent=87 // pred_region
          %1144 = vsyncadd %s1136, 0
          %s1145 = smul.addr %s31, 8
          %s1146 = scalar_lea.hbm %s17, %s1145
          %s1148 = sshll.u32 %s1139, 4
          %s1149 = int_to_ptr.vmem [resolvable:$true] %s1148
          %s1150 = sshll.u32 %s1146, 4
          %s1151 = int_to_ptr.hbm [resolvable:$true] %s1150
          %1153 = dma.vmem_to_hbm [thread:$0]  %s1149, 128, %s1151, %s1136
        $region92: #{tpu_custom_call.1} parent=87 // pred_fallthru
          _
      $region88: #{tpu_custom_call.1} parent=5 // pred_fallthru
        _
      %p1154 = scmp.le.s32.totalorder 2, %s26
      // Predicated region
      $region93: #{tpu_custom_call.1} parent=5 // pred_check
        %p1155 = pneg %p1154
      $region94: #{tpu_custom_call.1} parent=5 // pred_check_branch
        %1157 = sbr.rel (%p1155) target = $region96
      $region95: #{tpu_custom_call.1} parent=5 // pred_region
        %s1158 = ssub.s32 %s26, 2
        // Predicated region
        $region97: #{tpu_custom_call.1} parent=95 // pred_check
          %p1159 = pneg %p417
        $region98: #{tpu_custom_call.1} parent=95 // pred_check_branch
          %1161 = sbr.rel (%p1159) target = $region100
        $region99: #{tpu_custom_call.1} parent=95 // pred_region
          %s1162 = sand.u32 %s402, 1
          %s1163 = scalar_lea.sflag [#allocation6], %s1162
          %s1164 = sand.u32 %s402, 1
          %s1165 = smul.addr %s1164, 8
          %s1166 = scalar_lea.vmem [#allocation5], %s1165
          %1168 = dma.done %s1163, 128
        $region100: #{tpu_custom_call.1} parent=95 // pred_fallthru
          _
      $region96: #{tpu_custom_call.1} parent=5 // pred_fallthru
        _
    $region6: #{tpu_custom_call.1} parent=1 // loop_footer
      %s30 = sadd.s32 1, %s26
    $region7: #{tpu_custom_call.1} parent=1 // loop_footer_branch
      %25 = sbr.rel target = $region3
    $region8: #{tpu_custom_call.1} parent=1 // loop_exit
      _
    %1169 = vsyncpa [#allocation6], 1
    %s1170 = scalar_lea.sflag [#allocation6], 1
    %1171 = vsyncpa %s1170, 1

// kernel: tpu_custom_call.1
$region0: #{tpu_custom_call.1}
  #allocation0 [shape = 'u32[]', space=smem, size = 0x4, offset = 0x4, fixed_abs, tag = 'smem constant byte address 0x4 - core index']
  #allocation1 [shape = 'u32[72,128]{1,0:T(1,128)}', space=vmem, size = 0x9000, scoped, tag = 'internal scratch']
  #allocation2 [shape = 'f32[2,8,16]{2,1,0:T(8,128)}', space=vmem, size = 0x2000, scoped, tag = 'scratch operand']
  #allocation3 [shape = 'f32[2,8,16]{2,1,0:T(8,128)}', space=vmem, size = 0x2000, scoped, tag = 'scratch operand']
  #allocation4 [shape = 'f32[2,8,16]{2,1,0:T(8,128)}', space=vmem, size = 0x2000, scoped, tag = 'scratch operand']
  %s0 = inlined_call_operand.vmem [shape: f32[2,8,32], index: 0, kind: input, shape index: {}]
  %s1 = inlined_call_operand.vmem [shape: f32[1,32], index: 1, kind: input, shape index: {}]
  %s2 = inlined_call_operand.vmem [shape: f32[1,32], index: 2, kind: input, shape index: {}]
  %s3 = inlined_call_operand.vmem [shape: f32[2,32,16], index: 3, kind: input, shape index: {}]
  %s4 = inlined_call_operand.vmem [shape: f32[2,1,16], index: 4, kind: input, shape index: {}]
  %s5 = inlined_call_operand.vmem [shape: f32[2,32,16], index: 5, kind: input, shape index: {}]
  %s6 = inlined_call_operand.vmem [shape: f32[2,1,16], index: 6, kind: input, shape index: {}]
  %s7 = inlined_call_operand.vmem [shape: f32[2,32,16], index: 7, kind: input, shape index: {}]
  %s8 = inlined_call_operand.vmem [shape: f32[2,1,16], index: 8, kind: input, shape index: {}]
  %s9 = inlined_call_operand.vmem [shape: f32[2,16,32], index: 9, kind: input, shape index: {}]
  %s10 = inlined_call_operand.vmem [shape: f32[1,32], index: 10, kind: input, shape index: {}]
  %s11 = inlined_call_operand.vmem [shape: f32[1,32], index: 11, kind: input, shape index: {}]
  %s12 = inlined_call_operand.vmem [shape: f32[1,32], index: 12, kind: input, shape index: {}]
  %s13 = inlined_call_operand.vmem [shape: f32[32,64], index: 13, kind: input, shape index: {}]
  %s14 = inlined_call_operand.vmem [shape: f32[1,64], index: 14, kind: input, shape index: {}]
  %s15 = inlined_call_operand.vmem [shape: f32[64,32], index: 15, kind: input, shape index: {}]
  %s16 = inlined_call_operand.vmem [shape: f32[1,32], index: 16, kind: input, shape index: {}]
  %s17 = inlined_call_operand.hbm [shape: f32[2,8,32], index: 17, kind: output, shape index: {}]
  %s18 = sld [smem:[#allocation0]]
  $region101: #{tpu_custom_call.1} parent=0
    _
  %s20 = ssub.s32 1, %s18
  %s21 = scalar_select 0, %s20, %s18
  $region1: #{tpu_custom_call.1} parent=0
    #allocation5 [shape = 'u8[8192]{0}', space=vmem, size = 0x2000, scoped, tag = 'output window, operand 0']
    #allocation6 [shape = 's32[2]{0}', space=sflag, size = 0x8, scoped, tag = 'scoped memory for tpu_custom_call.1']
    %22 = vsyncpa [#allocation6], 0
    %s23 = scalar_lea.sflag [#allocation6], 1
    %24 = vsyncpa %s23, 0
    loop: start=0, step=1, limit=4
    $region2: #{tpu_custom_call.1} parent=1 // loop_pre_header
      _
    $region3: #{tpu_custom_call.1} parent=1 // loop_header
      %s26 = sphi 0, %s30
      %p27 = scmp.ge.s32.totalorder %s26, 4
      %s36 = sphi 0, %s38
      %s39 = sphi 0, %s36
      %s40 = sphi 0, %s39
      %s56 = sphi 0, %s40
      %s60 = sphi 0, %s60
      %s62 = sphi 0, %s60
      %s63 = sphi 0, %s62
      %s77 = sphi 0, %s63
      %s81 = sphi 0, %s81
      %s83 = sphi 0, %s81
      %s84 = sphi 0, %s83
      %s98 = sphi 0, %s84
      %s102 = sphi 0, %s102
      %s104 = sphi 0, %s102
      %s105 = sphi 0, %s104
      %s119 = sphi 0, %s105
      %s123 = sphi 0, %s123
      %s125 = sphi 0, %s123
      %s126 = sphi 0, %s125
      %s140 = sphi 0, %s126
      %s144 = sphi 0, %s144
      %s146 = sphi 0, %s144
      %s147 = sphi 0, %s146
      %s161 = sphi 0, %s147
      %s165 = sphi 0, %s165
      %s167 = sphi 0, %s165
      %s168 = sphi 0, %s167
      %s182 = sphi 0, %s168
      %s186 = sphi 0, %s186
      %s188 = sphi 0, %s186
      %s189 = sphi 0, %s188
      %s203 = sphi 0, %s189
      %s207 = sphi 0, %s207
      %s209 = sphi 0, %s207
      %s210 = sphi 0, %s209
      %s224 = sphi 0, %s210
      %s228 = sphi 0, %s228
      %s230 = sphi 0, %s228
      %s231 = sphi 0, %s230
      %s245 = sphi 0, %s231
      %s249 = sphi 0, %s249
      %s251 = sphi 0, %s249
      %s252 = sphi 0, %s251
      %s266 = sphi 0, %s252
      %s270 = sphi 0, %s270
      %s272 = sphi 0, %s270
      %s273 = sphi 0, %s272
      %s287 = sphi 0, %s273
      %s291 = sphi 0, %s291
      %s293 = sphi 0, %s291
      %s294 = sphi 0, %s293
      %s308 = sphi 0, %s294
      %s312 = sphi 0, %s312
      %s314 = sphi 0, %s312
      %s315 = sphi 0, %s314
      %s329 = sphi 0, %s315
      %s333 = sphi 0, %s333
      %s335 = sphi 0, %s333
      %s336 = sphi 0, %s335
      %s350 = sphi 0, %s336
      %s354 = sphi 0, %s354
      %s356 = sphi 0, %s354
      %s357 = sphi 0, %s356
      %s371 = sphi 0, %s357
      %s375 = sphi 0, %s375
      %s377 = sphi 0, %s375
      %s378 = sphi 0, %s377
      %s392 = sphi 0, %s378
      %s398 = sphi 0, %s400
      %s401 = sphi 0, %s398
      %s402 = sphi 0, %s401
      %s418 = sphi 0, %s402
    $region4: #{tpu_custom_call.1} parent=1 // loop_header_branch
      %29 = sbr.rel (%p27) target = $region8
    $region5: #{tpu_custom_call.1} parent=1 // loop_body
      %s31 = ssub.s32 %s26, 1
      %s32 = ssub.s32 %s26, 2
      %s33 = sadd.s32 %s26, 1
      %s34 = ssub.s32 %s26, %s33
      %p35 = scmp.eq.s32.totalorder %s34, 0
      %s37 = sadd.s32 %s36, 1
      %s38 = scalar_select %p35, %s36, %s37
      %p41 = pneg %p35
      %p42 = scmp.eq.s32.totalorder %s26, 1
      %p43 = por %p41, %p42
      %p44 = scmp.ne.s32.totalorder %s36, %s39
      %p45 = scmp.eq.s32.totalorder %s26, 0
      %p46 = por %p44, %p45
      %p47 = scmp.ne.s32.totalorder %s36, %s39
      %p48 = scmp.eq.s32.totalorder %s31, 1
      %p49 = por %p47, %p48
      %p50 = scmp.ne.s32.totalorder %s39, %s40
      %p51 = scmp.eq.s32.totalorder %s31, 0
      %p52 = por %p50, %p51
      %p53 = scmp.ne.s32.totalorder %s39, %s40
      %p54 = scmp.eq.s32.totalorder %s32, 1
      %p55 = por %p53, %p54
      %p57 = scmp.ne.s32.totalorder %s40, %s56
      %p58 = scmp.eq.s32.totalorder %s32, 0
      %p59 = por %p57, %p58
      %s61 = sadd.s32 %s60, 1
      %p64 = scmp.eq.s32.totalorder %s26, 1
      %p65 = scmp.ne.s32.totalorder %s60, %s62
      %p66 = scmp.eq.s32.totalorder %s26, 0
      %p67 = por %p65, %p66
      %p68 = scmp.ne.s32.totalorder %s60, %s62
      %p69 = scmp.eq.s32.totalorder %s31, 1
      %p70 = por %p68, %p69
      %p71 = scmp.ne.s32.totalorder %s62, %s63
      %p72 = scmp.eq.s32.totalorder %s31, 0
      %p73 = por %p71, %p72
      %p74 = scmp.ne.s32.totalorder %s62, %s63
      %p75 = scmp.eq.s32.totalorder %s32, 1
      %p76 = por %p74, %p75
      %p78 = scmp.ne.s32.totalorder %s63, %s77
      %p79 = scmp.eq.s32.totalorder %s32, 0
      %p80 = por %p78, %p79
      %s82 = sadd.s32 %s81, 1
      %p85 = scmp.eq.s32.totalorder %s26, 1
      %p86 = scmp.ne.s32.totalorder %s81, %s83
      %p87 = scmp.eq.s32.totalorder %s26, 0
      %p88 = por %p86, %p87
      %p89 = scmp.ne.s32.totalorder %s81, %s83
      %p90 = scmp.eq.s32.totalorder %s31, 1
      %p91 = por %p89, %p90
      %p92 = scmp.ne.s32.totalorder %s83, %s84
      %p93 = scmp.eq.s32.totalorder %s31, 0
      %p94 = por %p92, %p93
      %p95 = scmp.ne.s32.totalorder %s83, %s84
      %p96 = scmp.eq.s32.totalorder %s32, 1
      %p97 = por %p95, %p96
      %p99 = scmp.ne.s32.totalorder %s84, %s98
      %p100 = scmp.eq.s32.totalorder %s32, 0
      %p101 = por %p99, %p100
      %s103 = sadd.s32 %s102, 1
      %p106 = scmp.eq.s32.totalorder %s26, 1
      %p107 = scmp.ne.s32.totalorder %s102, %s104
      %p108 = scmp.eq.s32.totalorder %s26, 0
      %p109 = por %p107, %p108
      %p110 = scmp.ne.s32.totalorder %s102, %s104
      %p111 = scmp.eq.s32.totalorder %s31, 1
      %p112 = por %p110, %p111
      %p113 = scmp.ne.s32.totalorder %s104, %s105
      %p114 = scmp.eq.s32.totalorder %s31, 0
      %p115 = por %p113, %p114
      %p116 = scmp.ne.s32.totalorder %s104, %s105
      %p117 = scmp.eq.s32.totalorder %s32, 1
      %p118 = por %p116, %p117
      %p120 = scmp.ne.s32.totalorder %s105, %s119
      %p121 = scmp.eq.s32.totalorder %s32, 0
      %p122 = por %p120, %p121
      %s124 = sadd.s32 %s123, 1
      %p127 = scmp.eq.s32.totalorder %s26, 1
      %p128 = scmp.ne.s32.totalorder %s123, %s125
      %p129 = scmp.eq.s32.totalorder %s26, 0
      %p130 = por %p128, %p129
      %p131 = scmp.ne.s32.totalorder %s123, %s125
      %p132 = scmp.eq.s32.totalorder %s31, 1
      %p133 = por %p131, %p132
      %p134 = scmp.ne.s32.totalorder %s125, %s126
      %p135 = scmp.eq.s32.totalorder %s31, 0
      %p136 = por %p134, %p135
      %p137 = scmp.ne.s32.totalorder %s125, %s126
      %p138 = scmp.eq.s32.totalorder %s32, 1
      %p139 = por %p137, %p138
      %p141 = scmp.ne.s32.totalorder %s126, %s140
      %p142 = scmp.eq.s32.totalorder %s32, 0
      %p143 = por %p141, %p142
      %s145 = sadd.s32 %s144, 1
      %p148 = scmp.eq.s32.totalorder %s26, 1
      %p149 = scmp.ne.s32.totalorder %s144, %s146
      %p150 = scmp.eq.s32.totalorder %s26, 0
      %p151 = por %p149, %p150
      %p152 = scmp.ne.s32.totalorder %s144, %s146
      %p153 = scmp.eq.s32.totalorder %s31, 1
      %p154 = por %p152, %p153
      %p155 = scmp.ne.s32.totalorder %s146, %s147
      %p156 = scmp.eq.s32.totalorder %s31, 0
      %p157 = por %p155, %p156
      %p158 = scmp.ne.s32.totalorder %s146, %s147
      %p159 = scmp.eq.s32.totalorder %s32, 1
      %p160 = por %p158, %p159
      %p162 = scmp.ne.s32.totalorder %s147, %s161
      %p163 = scmp.eq.s32.totalorder %s32, 0
      %p164 = por %p162, %p163
      %s166 = sadd.s32 %s165, 1
      %p169 = scmp.eq.s32.totalorder %s26, 1
      %p170 = scmp.ne.s32.totalorder %s165, %s167
      %p171 = scmp.eq.s32.totalorder %s26, 0
      %p172 = por %p170, %p171
      %p173 = scmp.ne.s32.totalorder %s165, %s167
      %p174 = scmp.eq.s32.totalorder %s31, 1
      %p175 = por %p173, %p174
      %p176 = scmp.ne.s32.totalorder %s167, %s168
      %p177 = scmp.eq.s32.totalorder %s31, 0
      %p178 = por %p176, %p177
      %p179 = scmp.ne.s32.totalorder %s167, %s168
      %p180 = scmp.eq.s32.totalorder %s32, 1
      %p181 = por %p179, %p180
      %p183 = scmp.ne.s32.totalorder %s168, %s182
      %p184 = scmp.eq.s32.totalorder %s32, 0
      %p185 = por %p183, %p184
      %s187 = sadd.s32 %s186, 1
      %p190 = scmp.eq.s32.totalorder %s26, 1
      %p191 = scmp.ne.s32.totalorder %s186, %s188
      %p192 = scmp.eq.s32.totalorder %s26, 0
      %p193 = por %p191, %p192
      %p194 = scmp.ne.s32.totalorder %s186, %s188
      %p195 = scmp.eq.s32.totalorder %s31, 1
      %p196 = por %p194, %p195
      %p197 = scmp.ne.s32.totalorder %s188, %s189
      %p198 = scmp.eq.s32.totalorder %s31, 0
      %p199 = por %p197, %p198
      %p200 = scmp.ne.s32.totalorder %s188, %s189
      %p201 = scmp.eq.s32.totalorder %s32, 1
      %p202 = por %p200, %p201
      %p204 = scmp.ne.s32.totalorder %s189, %s203
      %p205 = scmp.eq.s32.totalorder %s32, 0
      %p206 = por %p204, %p205
      %s208 = sadd.s32 %s207, 1
      %p211 = scmp.eq.s32.totalorder %s26, 1
      %p212 = scmp.ne.s32.totalorder %s207, %s209
      %p213 = scmp.eq.s32.totalorder %s26, 0
      %p214 = por %p212, %p213
      %p215 = scmp.ne.s32.totalorder %s207, %s209
      %p216 = scmp.eq.s32.totalorder %s31, 1
      %p217 = por %p215, %p216
      %p218 = scmp.ne.s32.totalorder %s209, %s210
      %p219 = scmp.eq.s32.totalorder %s31, 0
      %p220 = por %p218, %p219
      %p221 = scmp.ne.s32.totalorder %s209, %s210
      %p222 = scmp.eq.s32.totalorder %s32, 1
      %p223 = por %p221, %p222
      %p225 = scmp.ne.s32.totalorder %s210, %s224
      %p226 = scmp.eq.s32.totalorder %s32, 0
      %p227 = por %p225, %p226
      %s229 = sadd.s32 %s228, 1
      %p232 = scmp.eq.s32.totalorder %s26, 1
      %p233 = scmp.ne.s32.totalorder %s228, %s230
      %p234 = scmp.eq.s32.totalorder %s26, 0
      %p235 = por %p233, %p234
      %p236 = scmp.ne.s32.totalorder %s228, %s230
      %p237 = scmp.eq.s32.totalorder %s31, 1
      %p238 = por %p236, %p237
      %p239 = scmp.ne.s32.totalorder %s230, %s231
      %p240 = scmp.eq.s32.totalorder %s31, 0
      %p241 = por %p239, %p240
      %p242 = scmp.ne.s32.totalorder %s230, %s231
      %p243 = scmp.eq.s32.totalorder %s32, 1
      %p244 = por %p242, %p243
      %p246 = scmp.ne.s32.totalorder %s231, %s245
      %p247 = scmp.eq.s32.totalorder %s32, 0
      %p248 = por %p246, %p247
      %s250 = sadd.s32 %s249, 1
      %p253 = scmp.eq.s32.totalorder %s26, 1
      %p254 = scmp.ne.s32.totalorder %s249, %s251
      %p255 = scmp.eq.s32.totalorder %s26, 0
      %p256 = por %p254, %p255
      %p257 = scmp.ne.s32.totalorder %s249, %s251
      %p258 = scmp.eq.s32.totalorder %s31, 1
      %p259 = por %p257, %p258
      %p260 = scmp.ne.s32.totalorder %s251, %s252
      %p261 = scmp.eq.s32.totalorder %s31, 0
      %p262 = por %p260, %p261
      %p263 = scmp.ne.s32.totalorder %s251, %s252
      %p264 = scmp.eq.s32.totalorder %s32, 1
      %p265 = por %p263, %p264
      %p267 = scmp.ne.s32.totalorder %s252, %s266
      %p268 = scmp.eq.s32.totalorder %s32, 0
      %p269 = por %p267, %p268
      %s271 = sadd.s32 %s270, 1
      %p274 = scmp.eq.s32.totalorder %s26, 1
      %p275 = scmp.ne.s32.totalorder %s270, %s272
      %p276 = scmp.eq.s32.totalorder %s26, 0
      %p277 = por %p275, %p276
      %p278 = scmp.ne.s32.totalorder %s270, %s272
      %p279 = scmp.eq.s32.totalorder %s31, 1
      %p280 = por %p278, %p279
      %p281 = scmp.ne.s32.totalorder %s272, %s273
      %p282 = scmp.eq.s32.totalorder %s31, 0
      %p283 = por %p281, %p282
      %p284 = scmp.ne.s32.totalorder %s272, %s273
      %p285 = scmp.eq.s32.totalorder %s32, 1
      %p286 = por %p284, %p285
      %p288 = scmp.ne.s32.totalorder %s273, %s287
      %p289 = scmp.eq.s32.totalorder %s32, 0
      %p290 = por %p288, %p289
      %s292 = sadd.s32 %s291, 1
      %p295 = scmp.eq.s32.totalorder %s26, 1
      %p296 = scmp.ne.s32.totalorder %s291, %s293
      %p297 = scmp.eq.s32.totalorder %s26, 0
      %p298 = por %p296, %p297
      %p299 = scmp.ne.s32.totalorder %s291, %s293
      %p300 = scmp.eq.s32.totalorder %s31, 1
      %p301 = por %p299, %p300
      %p302 = scmp.ne.s32.totalorder %s293, %s294
      %p303 = scmp.eq.s32.totalorder %s31, 0
      %p304 = por %p302, %p303
      %p305 = scmp.ne.s32.totalorder %s293, %s294
      %p306 = scmp.eq.s32.totalorder %s32, 1
      %p307 = por %p305, %p306
      %p309 = scmp.ne.s32.totalorder %s294, %s308
      %p310 = scmp.eq.s32.totalorder %s32, 0
      %p311 = por %p309, %p310
      %s313 = sadd.s32 %s312, 1
      %p316 = scmp.eq.s32.totalorder %s26, 1
      %p317 = scmp.ne.s32.totalorder %s312, %s314
      %p318 = scmp.eq.s32.totalorder %s26, 0
      %p319 = por %p317, %p318
      %p320 = scmp.ne.s32.totalorder %s312, %s314
      %p321 = scmp.eq.s32.totalorder %s31, 1
      %p322 = por %p320, %p321
      %p323 = scmp.ne.s32.totalorder %s314, %s315
      %p324 = scmp.eq.s32.totalorder %s31, 0
      %p325 = por %p323, %p324
      %p326 = scmp.ne.s32.totalorder %s314, %s315
      %p327 = scmp.eq.s32.totalorder %s32, 1
      %p328 = por %p326, %p327
      %p330 = scmp.ne.s32.totalorder %s315, %s329
      %p331 = scmp.eq.s32.totalorder %s32, 0
      %p332 = por %p330, %p331
      %s334 = sadd.s32 %s333, 1
      %p337 = scmp.eq.s32.totalorder %s26, 1
      %p338 = scmp.ne.s32.totalorder %s333, %s335
      %p339 = scmp.eq.s32.totalorder %s26, 0
      %p340 = por %p338, %p339
      %p341 = scmp.ne.s32.totalorder %s333, %s335
      %p342 = scmp.eq.s32.totalorder %s31, 1
      %p343 = por %p341, %p342
      %p344 = scmp.ne.s32.totalorder %s335, %s336
      %p345 = scmp.eq.s32.totalorder %s31, 0
      %p346 = por %p344, %p345
      %p347 = scmp.ne.s32.totalorder %s335, %s336
      %p348 = scmp.eq.s32.totalorder %s32, 1
      %p349 = por %p347, %p348
      %p351 = scmp.ne.s32.totalorder %s336, %s350
      %p352 = scmp.eq.s32.totalorder %s32, 0
      %p353 = por %p351, %p352
      %s355 = sadd.s32 %s354, 1
      %p358 = scmp.eq.s32.totalorder %s26, 1
      %p359 = scmp.ne.s32.totalorder %s354, %s356
      %p360 = scmp.eq.s32.totalorder %s26, 0
      %p361 = por %p359, %p360
      %p362 = scmp.ne.s32.totalorder %s354, %s356
      %p363 = scmp.eq.s32.totalorder %s31, 1
      %p364 = por %p362, %p363
      %p365 = scmp.ne.s32.totalorder %s356, %s357
      %p366 = scmp.eq.s32.totalorder %s31, 0
      %p367 = por %p365, %p366
      %p368 = scmp.ne.s32.totalorder %s356, %s357
      %p369 = scmp.eq.s32.totalorder %s32, 1
      %p370 = por %p368, %p369
      %p372 = scmp.ne.s32.totalorder %s357, %s371
      %p373 = scmp.eq.s32.totalorder %s32, 0
      %p374 = por %p372, %p373
      %s376 = sadd.s32 %s375, 1
      %p379 = scmp.eq.s32.totalorder %s26, 1
      %p380 = scmp.ne.s32.totalorder %s375, %s377
      %p381 = scmp.eq.s32.totalorder %s26, 0
      %p382 = por %p380, %p381
      %p383 = scmp.ne.s32.totalorder %s375, %s377
      %p384 = scmp.eq.s32.totalorder %s31, 1
      %p385 = por %p383, %p384
      %p386 = scmp.ne.s32.totalorder %s377, %s378
      %p387 = scmp.eq.s32.totalorder %s31, 0
      %p388 = por %p386, %p387
      %p389 = scmp.ne.s32.totalorder %s377, %s378
      %p390 = scmp.eq.s32.totalorder %s32, 1
      %p391 = por %p389, %p390
      %p393 = scmp.ne.s32.totalorder %s378, %s392
      %p394 = scmp.eq.s32.totalorder %s32, 0
      %p395 = por %p393, %p394
      %s396 = ssub.s32 %s26, %s33
      %p397 = scmp.eq.s32.totalorder %s396, 0
      %s399 = sadd.s32 %s398, 1
      %s400 = scalar_select %p397, %s398, %s399
      %p403 = pneg %p397
      %p404 = scmp.eq.s32.totalorder %s26, 1
      %p405 = por %p403, %p404
      %p406 = scmp.ne.s32.totalorder %s398, %s401
      %p407 = scmp.eq.s32.totalorder %s26, 0
      %p408 = por %p406, %p407
      %p409 = scmp.ne.s32.totalorder %s398, %s401
      %p410 = scmp.eq.s32.totalorder %s31, 1
      %p411 = por %p409, %p410
      %p412 = scmp.ne.s32.totalorder %s401, %s402
      %p413 = scmp.eq.s32.totalorder %s31, 0
      %p414 = por %p412, %p413
      %p415 = scmp.ne.s32.totalorder %s401, %s402
      %p416 = scmp.eq.s32.totalorder %s32, 1
      %p417 = por %p415, %p416
      %p419 = scmp.ne.s32.totalorder %s402, %s418
      %p420 = scmp.eq.s32.totalorder %s32, 0
      %p421 = por %p419, %p420
      %p422 = scmp.le.s32.totalorder 1, %s26
      %p423 = scmp.lt.s32.totalorder %s26, 3
      %p424 = pnand %p422, %p423
      %p425 = pneg %p424
      // Predicated region
      $region9: #{tpu_custom_call.1} parent=5 // pred_check
        _
      $region10: #{tpu_custom_call.1} parent=5 // pred_check_branch
        %427 = sbr.rel (%p424) target = $region12
      $region11: #{tpu_custom_call.1} parent=5 // pred_region
        %s428 = ssub.s32 %s26, 1
        // Predicated region
        $region13: #{tpu_custom_call.1} parent=11 // pred_check
          %p429 = pneg %p73
        $region14: #{tpu_custom_call.1} parent=11 // pred_check_branch
          %431 = sbr.rel (%p429) target = $region16
        $region15: #{tpu_custom_call.1} parent=11 // pred_region
          _
        $region16: #{tpu_custom_call.1} parent=11 // pred_fallthru
          _
        // Predicated region
        $region17: #{tpu_custom_call.1} parent=11 // pred_check
          %p432 = pneg %p94
        $region18: #{tpu_custom_call.1} parent=11 // pred_check_branch
          %434 = sbr.rel (%p432) target = $region20
        $region19: #{tpu_custom_call.1} parent=11 // pred_region
          _
        $region20: #{tpu_custom_call.1} parent=11 // pred_fallthru
          _
        // Predicated region
        $region21: #{tpu_custom_call.1} parent=11 // pred_check
          %p435 = pneg %p115
        $region22: #{tpu_custom_call.1} parent=11 // pred_check_branch
          %437 = sbr.rel (%p435) target = $region24
        $region23: #{tpu_custom_call.1} parent=11 // pred_region
          _
        $region24: #{tpu_custom_call.1} parent=11 // pred_fallthru
          _
        // Predicated region
        $region25: #{tpu_custom_call.1} parent=11 // pred_check
          %p438 = pneg %p136
        $region26: #{tpu_custom_call.1} parent=11 // pred_check_branch
          %440 = sbr.rel (%p438) target = $region28
        $region27: #{tpu_custom_call.1} parent=11 // pred_region
          _
        $region28: #{tpu_custom_call.1} parent=11 // pred_fallthru
          _
        // Predicated region
        $region29: #{tpu_custom_call.1} parent=11 // pred_check
          %p441 = pneg %p157
        $region30: #{tpu_custom_call.1} parent=11 // pred_check_branch
          %443 = sbr.rel (%p441) target = $region32
        $region31: #{tpu_custom_call.1} parent=11 // pred_region
          _
        $region32: #{tpu_custom_call.1} parent=11 // pred_fallthru
          _
        // Predicated region
        $region33: #{tpu_custom_call.1} parent=11 // pred_check
          %p444 = pneg %p178
        $region34: #{tpu_custom_call.1} parent=11 // pred_check_branch
          %446 = sbr.rel (%p444) target = $region36
        $region35: #{tpu_custom_call.1} parent=11 // pred_region
          _
        $region36: #{tpu_custom_call.1} parent=11 // pred_fallthru
          _
        // Predicated region
        $region37: #{tpu_custom_call.1} parent=11 // pred_check
          %p447 = pneg %p199
        $region38: #{tpu_custom_call.1} parent=11 // pred_check_branch
          %449 = sbr.rel (%p447) target = $region40
        $region39: #{tpu_custom_call.1} parent=11 // pred_region
          _
        $region40: #{tpu_custom_call.1} parent=11 // pred_fallthru
          _
        // Predicated region
        $region41: #{tpu_custom_call.1} parent=11 // pred_check
          %p450 = pneg %p220
        $region42: #{tpu_custom_call.1} parent=11 // pred_check_branch
          %452 = sbr.rel (%p450) target = $region44
        $region43: #{tpu_custom_call.1} parent=11 // pred_region
          _
        $region44: #{tpu_custom_call.1} parent=11 // pred_fallthru
          _
        // Predicated region
        $region45: #{tpu_custom_call.1} parent=11 // pred_check
          %p453 = pneg %p241
        $region46: #{tpu_custom_call.1} parent=11 // pred_check_branch
          %455 = sbr.rel (%p453) target = $region48
        $region47: #{tpu_custom_call.1} parent=11 // pred_region
          _
        $region48: #{tpu_custom_call.1} parent=11 // pred_fallthru
          _
        // Predicated region
        $region49: #{tpu_custom_call.1} parent=11 // pred_check
          %p456 = pneg %p262
        $region50: #{tpu_custom_call.1} parent=11 // pred_check_branch
          %458 = sbr.rel (%p456) target = $region52
        $region51: #{tpu_custom_call.1} parent=11 // pred_region
          _
        $region52: #{tpu_custom_call.1} parent=11 // pred_fallthru
          _
        // Predicated region
        $region53: #{tpu_custom_call.1} parent=11 // pred_check
          %p459 = pneg %p283
        $region54: #{tpu_custom_call.1} parent=11 // pred_check_branch
          %461 = sbr.rel (%p459) target = $region56
        $region55: #{tpu_custom_call.1} parent=11 // pred_region
          _
        $region56: #{tpu_custom_call.1} parent=11 // pred_fallthru
          _
        // Predicated region
        $region57: #{tpu_custom_call.1} parent=11 // pred_check
          %p462 = pneg %p304
        $region58: #{tpu_custom_call.1} parent=11 // pred_check_branch
          %464 = sbr.rel (%p462) target = $region60
        $region59: #{tpu_custom_call.1} parent=11 // pred_region
          _
        $region60: #{tpu_custom_call.1} parent=11 // pred_fallthru
          _
        // Predicated region
        $region61: #{tpu_custom_call.1} parent=11 // pred_check
          %p465 = pneg %p325
        $region62: #{tpu_custom_call.1} parent=11 // pred_check_branch
          %467 = sbr.rel (%p465) target = $region64
        $region63: #{tpu_custom_call.1} parent=11 // pred_region
          _
        $region64: #{tpu_custom_call.1} parent=11 // pred_fallthru
          _
        // Predicated region
        $region65: #{tpu_custom_call.1} parent=11 // pred_check
          %p468 = pneg %p346
        $region66: #{tpu_custom_call.1} parent=11 // pred_check_branch
          %470 = sbr.rel (%p468) target = $region68
        $region67: #{tpu_custom_call.1} parent=11 // pred_region
          _
        $region68: #{tpu_custom_call.1} parent=11 // pred_fallthru
          _
        // Predicated region
        $region69: #{tpu_custom_call.1} parent=11 // pred_check
          %p471 = pneg %p367
        $region70: #{tpu_custom_call.1} parent=11 // pred_check_branch
          %473 = sbr.rel (%p471) target = $region72
        $region71: #{tpu_custom_call.1} parent=11 // pred_region
          _
        $region72: #{tpu_custom_call.1} parent=11 // pred_fallthru
          _
        // Predicated region
        $region73: #{tpu_custom_call.1} parent=11 // pred_check
          %p474 = pneg %p388
        $region74: #{tpu_custom_call.1} parent=11 // pred_check_branch
          %476 = sbr.rel (%p474) target = $region76
        $region75: #{tpu_custom_call.1} parent=11 // pred_region
          _
        $region76: #{tpu_custom_call.1} parent=11 // pred_fallthru
          _
      $region12: #{tpu_custom_call.1} parent=5 // pred_fallthru
        _
      %p477 = scmp.lt.s32.totalorder %s26, 2
      // Predicated region
      $region77: #{tpu_custom_call.1} parent=5 // pred_check
        %p478 = pneg %p477
      $region78: #{tpu_custom_call.1} parent=5 // pred_check_branch
        %480 = sbr.rel (%p478) target = $region80
      $region79: #{tpu_custom_call.1} parent=5 // pred_region
        // Predicated region
        $region81: #{tpu_custom_call.1} parent=79 // pred_check
          %p481 = pneg %p46
        $region82: #{tpu_custom_call.1} parent=79 // pred_check_branch
          %483 = sbr.rel (%p481) target = $region84
        $region83: #{tpu_custom_call.1} parent=79 // pred_region
          %p484 = scmp.lt.s32.totalorder %s26, 1
          %s485 = scalar_select %p484, %s26, 1
          %s486 = smul.addr %s485, 8
          %s487 = scalar_lea.vmem %s0, %s486
        $region84: #{tpu_custom_call.1} parent=79 // pred_fallthru
          _
      $region80: #{tpu_custom_call.1} parent=5 // pred_fallthru
        _
      %p488 = scmp.le.s32.totalorder 1, %s26
      %p489 = scmp.lt.s32.totalorder %s26, 3
      %p490 = pnand %p488, %p489
      %p491 = pneg %p490
      // Predicated region
      $region85: #{tpu_custom_call.1} parent=5 // pred_check
        _
      $region86: #{tpu_custom_call.1} parent=5 // pred_check_branch
        %493 = sbr.rel (%p490) target = $region88
      $region87: #{tpu_custom_call.1} parent=5 // pred_region
        %s494 = ssub.s32 %s26, 1
        %p495 = scmp.lt.s32.totalorder %s31, 1
        %s496 = scalar_select %p495, %s31, 1
        %s497 = smul.addr %s496, 8
        %s498 = scalar_lea.vmem %s0, %s497
        %p499 = pneg %p52
        %p500 = pneg %p49
        %p501 = pneg %p73
        %p502 = pneg %p70
        %p503 = pneg %p94
        %p504 = pneg %p91
        %p505 = pneg %p115
        %p506 = pneg %p112
        %p507 = pneg %p136
        %p508 = pneg %p133
        %p509 = pneg %p157
        %p510 = pneg %p154
        %p511 = pneg %p178
        %p512 = pneg %p175
        %p513 = pneg %p199
        %p514 = pneg %p196
        %p515 = pneg %p220
        %p516 = pneg %p217
        %p517 = pneg %p241
        %p518 = pneg %p238
        %p519 = pneg %p262
        %p520 = pneg %p259
        %p521 = pneg %p283
        %p522 = pneg %p280
        %p523 = pneg %p304
        %p524 = pneg %p301
        %p525 = pneg %p325
        %p526 = pneg %p322
        %p527 = pneg %p346
        %p528 = pneg %p343
        %p529 = pneg %p367
        %p530 = pneg %p364
        %p531 = pneg %p388
        %p532 = pneg %p385
        %p533 = pneg %p414
        %p534 = pneg %p411
        %s535 = sand.u32 %s401, 1
        %s536 = scalar_lea.sflag [#allocation6], %s535
        %s537 = sand.u32 %s401, 1
        %s538 = smul.addr %s537, 8
        %s539 = scalar_lea.vmem [#allocation5], %s538
        %p540 = scmp.lt.s32.totalorder %s31, 1
        %s541 = scalar_select %p540, %s31, 1
        %s542 = smul.addr %s541, 8
        %s543 = scalar_lea.vmem %s0, %s542
        %v544 = vld [vmem:[%s543] sm:$0xff]
        %v545 = vld [vmem:[%s1] sm:$0x1]
        %v546 = vld [vmem:[%s2] sm:$0x1]
        %vm547 = vcmask 261120
        %v548 = vsel %vm547, %v544, 0.0
        %549 = vadd.xlane.f32.xlu0 %v548
        %v550 = vpop.xlane.xlu0 %549
        %v551 = vrcp.pop 32.0
        %v552 = vmul.f32 32.0, %v551
        %v553 = vsub.f32 1.0, %v552
        %v554 = vmul.f32 %v551, %v553
        %v555 = vadd.f32 %v551, %v554
        %vm556 = vweird.f32 %v551
        %v557 = vsel %vm556, %v551, %v555
        %v558 = vmul.f32 %v550, %v557
        %v559 = vsub.f32 %v544, %v558
        %v560 = vmul.f32 %v559, %v559
        %v561 = vsel %vm547, %v560, 0.0
        %562 = vadd.xlane.f32.xlu0 %v561
        %v563 = vpop.xlane.xlu0 %562
        %v564 = vmul.f32 %v563, %v557
        %v565 = vadd.f32 %v564, 1e-05
        %v566 = vrsqrt.pop %v565
        %v567 = vmul.f32 %v566, %v565
        %v568 = vmul.f32 %v567, %v566
        %v569 = vmul.f32 0.5, %v568
        %v570 = vsub.f32 1.5, %v569
        %v571 = vmul.f32 %v566, %v570
        %vm572 = vweird.f32 %v565
        %vm573 = vweird.f32 %v566
        %vm574 = vmor %vm572, %vm573
        %v575 = vsel %vm574, %v566, %v571
        %v576 = vmul.f32 %v559, %v575
        %v578 = vperm.slane %v545, 0
        %v580 = vmul.f32 %v576, %v578
        %v582 = vperm.slane %v546, 0
        %v584 = vadd.f32 %v580, %v582
        %v585 = vld [vmem:[%s3] sm:$0xff]
        %v586 = vld [vmem:[%s3 + $0x8] sm:$0xff]
        %v587 = vld [vmem:[%s3 + $0x10] sm:$0xff]
        %v588 = vld [vmem:[%s3 + $0x18] sm:$0xff]
        %v589 = vld [vmem:[%s4] sm:$0x1]
        %v591 = vperm.slane %v589, 0
        %v594 = vsel %vm547, %v584, 0
        %596 = vmatpush.msra.mxu0 0.0
        %597 = vmatpush.msra.mxu0 0.0
        %598 = vmatpush.msra.mxu0 0.0
        %599 = vmatpush.msra.mxu0 0.0
        %600 = vmatpush.msra.mxu0 0.0
        %601 = vmatpush.msra.mxu0 0.0
        %602 = vmatpush.msra.mxu0 0.0
        %603 = vmatpush.msra.mxu0 0.0
        %604 = vmatpush.msra.mxu0 0.0
        %605 = vmatpush.msra.mxu0 0.0
        %606 = vmatpush.msra.mxu0 0.0
        %607 = vmatpush.msra.mxu0 0.0
        %608 = vmatpush.msra.mxu0 %v588
        %609 = vmatpush.msra.mxu0 %v587
        %610 = vmatpush.msra.mxu0 %v586
        %611 = vmatpush.msra.mxu0 %v585
        %612 = vmatmul.f32.gmra.mxu0 %v594
        %v613 = vpop.f32.mrf.mxu0
        %v614 = vadd.f32 %v591, %v613
        %615 = vdwg.mxu0
        %vm616 = vcmask 130048
        %617 = vst.msk [vmem:[#allocation2] sm:$0xff] %vm616, %v614
        %v618 = vld [vmem:[%s5] sm:$0xff]
        %v619 = vld [vmem:[%s5 + $0x8] sm:$0xff]
        %v620 = vld [vmem:[%s5 + $0x10] sm:$0xff]
        %v621 = vld [vmem:[%s5 + $0x18] sm:$0xff]
        %v622 = vld [vmem:[%s6] sm:$0x1]
        %v624 = vperm.slane %v622, 0
        %626 = vmatpush.msra.mxu0 0.0
        %627 = vmatpush.msra.mxu0 0.0
        %628 = vmatpush.msra.mxu0 0.0
        %629 = vmatpush.msra.mxu0 0.0
        %630 = vmatpush.msra.mxu0 0.0
        %631 = vmatpush.msra.mxu0 0.0
        %632 = vmatpush.msra.mxu0 0.0
        %633 = vmatpush.msra.mxu0 0.0
        %634 = vmatpush.msra.mxu0 0.0
        %635 = vmatpush.msra.mxu0 0.0
        %636 = vmatpush.msra.mxu0 0.0
        %637 = vmatpush.msra.mxu0 0.0
        %638 = vmatpush.msra.mxu0 %v621
        %639 = vmatpush.msra.mxu0 %v620
        %640 = vmatpush.msra.mxu0 %v619
        %641 = vmatpush.msra.mxu0 %v618
        %642 = vmatmul.f32.gmra.mxu0 %v594
        %v643 = vpop.f32.mrf.mxu0
        %v644 = vadd.f32 %v624, %v643
        %645 = vdwg.mxu0
        %646 = vst.msk [vmem:[#allocation3] sm:$0xff] %vm616, %v644
        %v647 = vld [vmem:[%s7] sm:$0xff]
        %v648 = vld [vmem:[%s7 + $0x8] sm:$0xff]
        %v649 = vld [vmem:[%s7 + $0x10] sm:$0xff]
        %v650 = vld [vmem:[%s7 + $0x18] sm:$0xff]
        %v651 = vld [vmem:[%s8] sm:$0x1]
        %v653 = vperm.slane %v651, 0
        %655 = vmatpush.msra.mxu0 0.0
        %656 = vmatpush.msra.mxu0 0.0
        %657 = vmatpush.msra.mxu0 0.0
        %658 = vmatpush.msra.mxu0 0.0
        %659 = vmatpush.msra.mxu0 0.0
        %660 = vmatpush.msra.mxu0 0.0
        %661 = vmatpush.msra.mxu0 0.0
        %662 = vmatpush.msra.mxu0 0.0
        %663 = vmatpush.msra.mxu0 0.0
        %664 = vmatpush.msra.mxu0 0.0
        %665 = vmatpush.msra.mxu0 0.0
        %666 = vmatpush.msra.mxu0 0.0
        %667 = vmatpush.msra.mxu0 %v650
        %668 = vmatpush.msra.mxu0 %v649
        %669 = vmatpush.msra.mxu0 %v648
        %670 = vmatpush.msra.mxu0 %v647
        %671 = vmatmul.f32.gmra.mxu0 %v594
        %v672 = vpop.f32.mrf.mxu0
        %v673 = vadd.f32 %v653, %v672
        %674 = vdwg.mxu0
        %675 = vst.msk [vmem:[#allocation4] sm:$0xff] %vm616, %v673
        %s676 = scalar_lea.vmem %s3, 32
        %v677 = vld [vmem:[%s676] sm:$0xff]
        %v678 = vld [vmem:[%s676 + $0x8] sm:$0xff]
        %v679 = vld [vmem:[%s676 + $0x10] sm:$0xff]
        %v680 = vld [vmem:[%s676 + $0x18] sm:$0xff]
        %s681 = scalar_lea.vmem %s4, 1
        %v682 = vld [vmem:[%s681] sm:$0x1]
        %v684 = vperm.slane %v682, 0
        %686 = vmatpush.msra.mxu0 0.0
        %687 = vmatpush.msra.mxu0 0.0
        %688 = vmatpush.msra.mxu0 0.0
        %689 = vmatpush.msra.mxu0 0.0
        %690 = vmatpush.msra.mxu0 0.0
        %691 = vmatpush.msra.mxu0 0.0
        %692 = vmatpush.msra.mxu0 0.0
        %693 = vmatpush.msra.mxu0 0.0
        %694 = vmatpush.msra.mxu0 0.0
        %695 = vmatpush.msra.mxu0 0.0
        %696 = vmatpush.msra.mxu0 0.0
        %697 = vmatpush.msra.mxu0 0.0
        %698 = vmatpush.msra.mxu0 %v680
        %699 = vmatpush.msra.mxu0 %v679
        %700 = vmatpush.msra.mxu0 %v678
        %701 = vmatpush.msra.mxu0 %v677
        %702 = vmatmul.f32.gmra.mxu0 %v594
        %v703 = vpop.f32.mrf.mxu0
        %v704 = vadd.f32 %v684, %v703
        %705 = vdwg.mxu0
        %s706 = scalar_lea.vmem [#allocation2], 8
        %707 = vst.msk [vmem:[%s706] sm:$0xff] %vm616, %v704
        %s708 = scalar_lea.vmem %s5, 32
        %v709 = vld [vmem:[%s708] sm:$0xff]
        %v710 = vld [vmem:[%s708 + $0x8] sm:$0xff]
        %v711 = vld [vmem:[%s708 + $0x10] sm:$0xff]
        %v712 = vld [vmem:[%s708 + $0x18] sm:$0xff]
        %s713 = scalar_lea.vmem %s6, 1
        %v714 = vld [vmem:[%s713] sm:$0x1]
        %v716 = vperm.slane %v714, 0
        %718 = vmatpush.msra.mxu0 0.0
        %719 = vmatpush.msra.mxu0 0.0
        %720 = vmatpush.msra.mxu0 0.0
        %721 = vmatpush.msra.mxu0 0.0
        %722 = vmatpush.msra.mxu0 0.0
        %723 = vmatpush.msra.mxu0 0.0
        %724 = vmatpush.msra.mxu0 0.0
        %725 = vmatpush.msra.mxu0 0.0
        %726 = vmatpush.msra.mxu0 0.0
        %727 = vmatpush.msra.mxu0 0.0
        %728 = vmatpush.msra.mxu0 0.0
        %729 = vmatpush.msra.mxu0 0.0
        %730 = vmatpush.msra.mxu0 %v712
        %731 = vmatpush.msra.mxu0 %v711
        %732 = vmatpush.msra.mxu0 %v710
        %733 = vmatpush.msra.mxu0 %v709
        %734 = vmatmul.f32.gmra.mxu0 %v594
        %v735 = vpop.f32.mrf.mxu0
        %v736 = vadd.f32 %v716, %v735
        %737 = vdwg.mxu0
        %s738 = scalar_lea.vmem [#allocation3], 8
        %739 = vst.msk [vmem:[%s738] sm:$0xff] %vm616, %v736
        %s740 = scalar_lea.vmem %s7, 32
        %v741 = vld [vmem:[%s740] sm:$0xff]
        %v742 = vld [vmem:[%s740 + $0x8] sm:$0xff]
        %v743 = vld [vmem:[%s740 + $0x10] sm:$0xff]
        %v744 = vld [vmem:[%s740 + $0x18] sm:$0xff]
        %s745 = scalar_lea.vmem %s8, 1
        %v746 = vld [vmem:[%s745] sm:$0x1]
        %v748 = vperm.slane %v746, 0
        %750 = vmatpush.msra.mxu0 0.0
        %751 = vmatpush.msra.mxu0 0.0
        %752 = vmatpush.msra.mxu0 0.0
        %753 = vmatpush.msra.mxu0 0.0
        %754 = vmatpush.msra.mxu0 0.0
        %755 = vmatpush.msra.mxu0 0.0
        %756 = vmatpush.msra.mxu0 0.0
        %757 = vmatpush.msra.mxu0 0.0
        %758 = vmatpush.msra.mxu0 0.0
        %759 = vmatpush.msra.mxu0 0.0
        %760 = vmatpush.msra.mxu0 0.0
        %761 = vmatpush.msra.mxu0 0.0
        %762 = vmatpush.msra.mxu0 %v744
        %763 = vmatpush.msra.mxu0 %v743
        %764 = vmatpush.msra.mxu0 %v742
        %765 = vmatpush.msra.mxu0 %v741
        %766 = vmatmul.f32.gmra.mxu0 %v594
        %v767 = vpop.f32.mrf.mxu0
        %v768 = vadd.f32 %v748, %v767
        %769 = vdwg.mxu0
        %s770 = scalar_lea.vmem [#allocation4], 8
        %771 = vst.msk [vmem:[%s770] sm:$0xff] %vm616, %v768
        %v772 = vld [vmem:[#allocation2] sm:$0xff]
        %v773 = vld [vmem:[#allocation2 + $0x8] sm:$0xff]
        %v774 = vld [vmem:[#allocation3] sm:$0xff]
        %v775 = vld [vmem:[#allocation3 + $0x8] sm:$0xff]
        %v776 = vld [vmem:[#allocation4] sm:$0xff]
        %v777 = vld [vmem:[#allocation4 + $0x8] sm:$0xff]
        %v779 = vsel %vm616, %v772, 0
        %v782 = vsel %vm616, %v774, 0
        %784 = vmatpush.xpose.msra.mxu0 0.0
        %785 = vmatpush.xpose.msra.mxu0 0.0
        %786 = vmatpush.xpose.msra.mxu0 0.0
        %787 = vmatpush.xpose.msra.mxu0 0.0
        %788 = vmatpush.xpose.msra.mxu0 0.0
        %789 = vmatpush.xpose.msra.mxu0 0.0
        %790 = vmatpush.xpose.msra.mxu0 0.0
        %791 = vmatpush.xpose.msra.mxu0 0.0
        %792 = vmatpush.xpose.msra.mxu0 0.0
        %793 = vmatpush.xpose.msra.mxu0 0.0
        %794 = vmatpush.xpose.msra.mxu0 0.0
        %795 = vmatpush.xpose.msra.mxu0 0.0
        %796 = vmatpush.xpose.msra.mxu0 0.0
        %797 = vmatpush.xpose.msra.mxu0 0.0
        %798 = vmatpush.xpose.msra.mxu0 0.0
        %799 = vmatpush.xpose.msra.mxu0 %v782
        %800 = vmatmul.f32.gmra.mxu0 %v779
        %v801 = vpop.f32.mrf.mxu0
        %v802 = vadd.f32 0.0, %v801
        %803 = vdwg.mxu0
        %v805 = vsel %vm616, %v773, 0
        %v808 = vsel %vm616, %v775, 0
        %810 = vmatpush.xpose.msra.mxu0 0.0
        %811 = vmatpush.xpose.msra.mxu0 0.0
        %812 = vmatpush.xpose.msra.mxu0 0.0
        %813 = vmatpush.xpose.msra.mxu0 0.0
        %814 = vmatpush.xpose.msra.mxu0 0.0
        %815 = vmatpush.xpose.msra.mxu0 0.0
        %816 = vmatpush.xpose.msra.mxu0 0.0
        %817 = vmatpush.xpose.msra.mxu0 0.0
        %818 = vmatpush.xpose.msra.mxu0 0.0
        %819 = vmatpush.xpose.msra.mxu0 0.0
        %820 = vmatpush.xpose.msra.mxu0 0.0
        %821 = vmatpush.xpose.msra.mxu0 0.0
        %822 = vmatpush.xpose.msra.mxu0 0.0
        %823 = vmatpush.xpose.msra.mxu0 0.0
        %824 = vmatpush.xpose.msra.mxu0 0.0
        %825 = vmatpush.xpose.msra.mxu0 %v808
        %826 = vmatmul.f32.gmra.mxu0 %v805
        %v827 = vpop.f32.mrf.mxu0
        %v828 = vadd.f32 0.0, %v827
        %829 = vdwg.mxu0
        %vm830 = vcmask 64512
        %v831 = vsel %vm830, %v802, -inf
        %832 = vmax.xlane.f32.xlu0 %v831
        %v833 = vpop.xlane.xlu0 %832
        %v834 = vsel %vm830, %v828, -inf
        %835 = vmax.xlane.f32.xlu0 %v834
        %v836 = vpop.xlane.xlu0 %835
        %v837 = vsub.f32 -inf, %v833
        %v838 = vsub.f32 -inf, %v836
        %v839 = vmul.f32 %v837, 1.442695
        %v840 = vpow.pop %v839
        %v841 = vmul.f32 %v838, 1.442695
        %v842 = vpow.pop %v841
        %v843 = vsub.f32 %v802, %v833
        %v844 = vsub.f32 %v828, %v836
        %v845 = vmul.f32 %v843, 1.442695
        %v846 = vpow.pop %v845
        %v847 = vmul.f32 %v844, 1.442695
        %v848 = vpow.pop %v847
        %v849 = vmul.f32 %v840, 0.0
        %v850 = vmul.f32 %v842, 0.0
        %v851 = vsel %vm830, %v846, 0.0
        %852 = vadd.xlane.f32.xlu0 %v851
        %v853 = vpop.xlane.xlu0 %852
        %v854 = vsel %vm830, %v848, 0.0
        %855 = vadd.xlane.f32.xlu0 %v854
        %v856 = vpop.xlane.xlu0 %855
        %v857 = vadd.f32 %v849, %v853
        %v858 = vadd.f32 %v850, %v856
        %v860 = vsel %vm830, %v846, 0
        %862 = vmatpush.msra.mxu0 0.0
        %863 = vmatpush.msra.mxu0 0.0
        %864 = vmatpush.msra.mxu0 0.0
        %865 = vmatpush.msra.mxu0 0.0
        %866 = vmatpush.msra.mxu0 0.0
        %867 = vmatpush.msra.mxu0 0.0
        %868 = vmatpush.msra.mxu0 0.0
        %869 = vmatpush.msra.mxu0 0.0
        %870 = vmatpush.msra.mxu0 0.0
        %871 = vmatpush.msra.mxu0 0.0
        %872 = vmatpush.msra.mxu0 0.0
        %873 = vmatpush.msra.mxu0 0.0
        %874 = vmatpush.msra.mxu0 0.0
        %875 = vmatpush.msra.mxu0 0.0
        %876 = vmatpush.msra.mxu0 0.0
        %877 = vmatpush.msra.mxu0 %v776
        %878 = vmatmul.f32.gmra.mxu0 %v860
        %v879 = vpop.f32.mrf.mxu0
        %v880 = vadd.f32 0.0, %v879
        %881 = vdwg.mxu0
        %v883 = vsel %vm830, %v848, 0
        %885 = vmatpush.msra.mxu0 0.0
        %886 = vmatpush.msra.mxu0 0.0
        %887 = vmatpush.msra.mxu0 0.0
        %888 = vmatpush.msra.mxu0 0.0
        %889 = vmatpush.msra.mxu0 0.0
        %890 = vmatpush.msra.mxu0 0.0
        %891 = vmatpush.msra.mxu0 0.0
        %892 = vmatpush.msra.mxu0 0.0
        %893 = vmatpush.msra.mxu0 0.0
        %894 = vmatpush.msra.mxu0 0.0
        %895 = vmatpush.msra.mxu0 0.0
        %896 = vmatpush.msra.mxu0 0.0
        %897 = vmatpush.msra.mxu0 0.0
        %898 = vmatpush.msra.mxu0 0.0
        %899 = vmatpush.msra.mxu0 0.0
        %900 = vmatpush.msra.mxu0 %v777
        %901 = vmatmul.f32.gmra.mxu0 %v883
        %v902 = vpop.f32.mrf.mxu0
        %v903 = vadd.f32 0.0, %v902
        %904 = vdwg.mxu0
        %v905 = vadd.f32 %v849, %v880
        %v906 = vadd.f32 %v850, %v903
        %v907 = vrcp.pop %v857
        %v908 = vmul.f32 %v857, %v907
        %v909 = vsub.f32 1.0, %v908
        %v910 = vmul.f32 %v907, %v909
        %v911 = vadd.f32 %v907, %v910
        %vm912 = vweird.f32 %v857
        %vm913 = vweird.f32 %v907
        %vm914 = vmor %vm912, %vm913
        %v915 = vsel %vm914, %v907, %v911
        %v916 = vand.u32 2147483647, %v857
        %vm917 = vcmp.eq.f32.partialorder %v916, 8.507059e+37
        %v918 = vand.u32 %v857, 2147483648
        %v919 = vor.u32 1.1754944e-38, %v918
        %v920 = vsel %vm917, %v919, %v915
        %v921 = vrcp.pop %v858
        %v922 = vmul.f32 %v858, %v921
        %v923 = vsub.f32 1.0, %v922
        %v924 = vmul.f32 %v921, %v923
        %v925 = vadd.f32 %v921, %v924
        %vm926 = vweird.f32 %v858
        %vm927 = vweird.f32 %v921
        %vm928 = vmor %vm926, %vm927
        %v929 = vsel %vm928, %v921, %v925
        %v930 = vand.u32 2147483647, %v858
        %vm931 = vcmp.eq.f32.partialorder %v930, 8.507059e+37
        %v932 = vand.u32 %v858, 2147483648
        %v933 = vor.u32 1.1754944e-38, %v932
        %v934 = vsel %vm931, %v933, %v929
        %v935 = vmul.f32 %v905, %v920
        %v936 = vmul.f32 %v906, %v934
        %v937 = vld [vmem:[%s10] sm:$0x1]
        %v938 = vld [vmem:[%s9] sm:$0xff]
        %v939 = vld [vmem:[%s9 + $0x8] sm:$0xff]
        %v941 = vsel %vm616, %v935, 0
        %943 = vmatpush.msra.mxu0 0.0
        %944 = vmatpush.msra.mxu0 0.0
        %945 = vmatpush.msra.mxu0 0.0
        %946 = vmatpush.msra.mxu0 0.0
        %947 = vmatpush.msra.mxu0 0.0
        %948 = vmatpush.msra.mxu0 0.0
        %949 = vmatpush.msra.mxu0 0.0
        %950 = vmatpush.msra.mxu0 0.0
        %951 = vmatpush.msra.mxu0 0.0
        %952 = vmatpush.msra.mxu0 0.0
        %953 = vmatpush.msra.mxu0 0.0
        %954 = vmatpush.msra.mxu0 0.0
        %955 = vmatpush.msra.mxu0 0.0
        %956 = vmatpush.msra.mxu0 0.0
        %957 = vmatpush.msra.mxu0 %v939
        %958 = vmatpush.msra.mxu0 %v938
        %959 = vmatmul.f32.gmra.mxu0 %v941
        %v960 = vpop.f32.mrf.mxu0
        %v961 = vadd.f32 0.0, %v960
        %962 = vdwg.mxu0
        %v964 = vperm.slane %v937, 0
        %v966 = vadd.f32 %v964, %v961
        %s967 = scalar_lea.vmem %s9, 16
        %v968 = vld [vmem:[%s967] sm:$0xff]
        %v969 = vld [vmem:[%s967 + $0x8] sm:$0xff]
        %v971 = vsel %vm616, %v936, 0
        %973 = vmatpush.msra.mxu0 0.0
        %974 = vmatpush.msra.mxu0 0.0
        %975 = vmatpush.msra.mxu0 0.0
        %976 = vmatpush.msra.mxu0 0.0
        %977 = vmatpush.msra.mxu0 0.0
        %978 = vmatpush.msra.mxu0 0.0
        %979 = vmatpush.msra.mxu0 0.0
        %980 = vmatpush.msra.mxu0 0.0
        %981 = vmatpush.msra.mxu0 0.0
        %982 = vmatpush.msra.mxu0 0.0
        %983 = vmatpush.msra.mxu0 0.0
        %984 = vmatpush.msra.mxu0 0.0
        %985 = vmatpush.msra.mxu0 0.0
        %986 = vmatpush.msra.mxu0 0.0
        %987 = vmatpush.msra.mxu0 %v969
        %988 = vmatpush.msra.mxu0 %v968
        %989 = vmatmul.f32.gmra.mxu0 %v971
        %v990 = vpop.f32.mrf.mxu0
        %v991 = vadd.f32 0.0, %v990
        %992 = vdwg.mxu0
        %v993 = vadd.f32 %v966, %v991
        %v994 = vadd.f32 %v544, %v993
        %v995 = vld [vmem:[%s11] sm:$0x1]
        %v996 = vld [vmem:[%s12] sm:$0x1]
        %v997 = vsel %vm547, %v994, 0.0
        %998 = vadd.xlane.f32.xlu0 %v997
        %v999 = vpop.xlane.xlu0 %998
        %v1000 = vmul.f32 %v999, %v557
        %v1001 = vsub.f32 %v994, %v1000
        %v1002 = vmul.f32 %v1001, %v1001
        %v1003 = vsel %vm547, %v1002, 0.0
        %1004 = vadd.xlane.f32.xlu0 %v1003
        %v1005 = vpop.xlane.xlu0 %1004
        %v1006 = vmul.f32 %v1005, %v557
        %v1007 = vadd.f32 %v1006, 1e-05
        %v1008 = vrsqrt.pop %v1007
        %v1009 = vmul.f32 %v1008, %v1007
        %v1010 = vmul.f32 %v1009, %v1008
        %v1011 = vmul.f32 0.5, %v1010
        %v1012 = vsub.f32 1.5, %v1011
        %v1013 = vmul.f32 %v1008, %v1012
        %vm1014 = vweird.f32 %v1007
        %vm1015 = vweird.f32 %v1008
        %vm1016 = vmor %vm1014, %vm1015
        %v1017 = vsel %vm1016, %v1008, %v1013
        %v1018 = vmul.f32 %v1001, %v1017
        %v1020 = vperm.slane %v995, 0
        %v1022 = vmul.f32 %v1018, %v1020
        %v1024 = vperm.slane %v996, 0
        %v1026 = vadd.f32 %v1022, %v1024
        %v1027 = vld [vmem:[%s13] sm:$0xff]
        %v1028 = vld [vmem:[%s13 + $0x8] sm:$0xff]
        %v1029 = vld [vmem:[%s13 + $0x10] sm:$0xff]
        %v1030 = vld [vmem:[%s13 + $0x18] sm:$0xff]
        %v1031 = vld [vmem:[%s14] sm:$0x1]
        %v1033 = vperm.slane %v1031, 0
        %v1036 = vsel %vm547, %v1026, 0
        %1038 = vmatpush.msra.mxu0 0.0
        %1039 = vmatpush.msra.mxu0 0.0
        %1040 = vmatpush.msra.mxu0 0.0
        %1041 = vmatpush.msra.mxu0 0.0
        %1042 = vmatpush.msra.mxu0 0.0
        %1043 = vmatpush.msra.mxu0 0.0
        %1044 = vmatpush.msra.mxu0 0.0
        %1045 = vmatpush.msra.mxu0 0.0
        %1046 = vmatpush.msra.mxu0 0.0
        %1047 = vmatpush.msra.mxu0 0.0
        %1048 = vmatpush.msra.mxu0 0.0
        %1049 = vmatpush.msra.mxu0 0.0
        %1050 = vmatpush.msra.mxu0 %v1030
        %1051 = vmatpush.msra.mxu0 %v1029
        %1052 = vmatpush.msra.mxu0 %v1028
        %1053 = vmatpush.msra.mxu0 %v1027
        %1054 = vmatmul.f32.gmra.mxu0 %v1036
        %v1055 = vpop.f32.mrf.mxu0
        %v1056 = vadd.f32 %v1033, %v1055
        %1057 = vdwg.mxu0
        %v1058 = vmul.f32 %v1056, 0.5
        %v1059 = vmul.f32 %v1056, 0.70710677
        %vm1060 = vcmp.ge.f32.partialorder %v1059, 0.0
        %v1061 = vsel %vm1060, 1.0, -1.0
        %v1062 = vand.u32 2147483647, %v1059
        %v1063 = vmul.f32 %v1062, 0.3275911
        %v1064 = vadd.f32 %v1063, 1.0
        %v1065 = vrcp.pop %v1064
        %v1066 = vmul.f32 %v1064, %v1065
        %v1067 = vsub.f32 1.0, %v1066
        %v1068 = vmul.f32 %v1065, %v1067
        %v1069 = vadd.f32 %v1065, %v1068
        %vm1070 = vweird.f32 %v1064
        %vm1071 = vweird.f32 %v1065
        %vm1072 = vmor %vm1070, %vm1071
        %v1073 = vsel %vm1072, %v1065, %v1069
        %v1074 = vand.u32 2147483647, %v1064
        %vm1075 = vcmp.eq.f32.partialorder %v1074, 8.507059e+37
        %v1076 = vand.u32 %v1064, 2147483648
        %v1077 = vor.u32 1.1754944e-38, %v1076
        %v1078 = vsel %vm1075, %v1077, %v1073
        %v1079 = vmul.f32 %v1078, 1.0614054
        %v1080 = vadd.f32 %v1079, -1.4531521
        %v1081 = vmul.f32 %v1080, %v1078
        %v1082 = vadd.f32 %v1081, 1.4214138
        %v1083 = vmul.f32 %v1082, %v1078
        %v1084 = vadd.f32 %v1083, -0.28449672
        %v1085 = vmul.f32 %v1084, %v1078
        %v1086 = vadd.f32 %v1085, 0.2548296
        %v1087 = vmul.f32 %v1086, %v1078
        %v1088 = vsub.f32 0.0, %v1062
        %v1089 = vmul.f32 %v1088, %v1062
        %v1090 = vmul.f32 %v1089, 1.442695
        %v1091 = vpow.pop %v1090
        %v1092 = vmul.f32 %v1087, %v1091
        %v1093 = vsub.f32 1.0, %v1092
        %v1094 = vmul.f32 %v1061, %v1093
        %v1095 = vadd.f32 %v1094, 1.0
        %v1096 = vmul.f32 %v1058, %v1095
        %v1097 = vld [vmem:[%s15] sm:$0xff]
        %v1098 = vld [vmem:[%s15 + $0x8] sm:$0xff]
        %v1099 = vld [vmem:[%s15 + $0x10] sm:$0xff]
        %v1100 = vld [vmem:[%s15 + $0x18] sm:$0xff]
        %v1101 = vld [vmem:[%s15 + $0x20] sm:$0xff]
        %v1102 = vld [vmem:[%s15 + $0x28] sm:$0xff]
        %v1103 = vld [vmem:[%s15 + $0x30] sm:$0xff]
        %v1104 = vld [vmem:[%s15 + $0x38] sm:$0xff]
        %v1105 = vld [vmem:[%s16] sm:$0x1]
        %v1107 = vperm.slane %v1105, 0
        %vm1109 = vcmask 523264
        %v1111 = vsel %vm1109, %v1096, 0
        %1113 = vmatpush.msra.mxu0 0.0
        %1114 = vmatpush.msra.mxu0 0.0
        %1115 = vmatpush.msra.mxu0 0.0
        %1116 = vmatpush.msra.mxu0 0.0
        %1117 = vmatpush.msra.mxu0 0.0
        %1118 = vmatpush.msra.mxu0 0.0
        %1119 = vmatpush.msra.mxu0 0.0
        %1120 = vmatpush.msra.mxu0 0.0
        %1121 = vmatpush.msra.mxu0 %v1104
        %1122 = vmatpush.msra.mxu0 %v1103
        %1123 = vmatpush.msra.mxu0 %v1102
        %1124 = vmatpush.msra.mxu0 %v1101
        %1125 = vmatpush.msra.mxu0 %v1100
        %1126 = vmatpush.msra.mxu0 %v1099
        %1127 = vmatpush.msra.mxu0 %v1098
        %1128 = vmatpush.msra.mxu0 %v1097
        %1129 = vmatmul.f32.gmra.mxu0 %v1111
        %v1130 = vpop.f32.mrf.mxu0
        %v1131 = vadd.f32 %v1107, %v1130
        %1132 = vdwg.mxu0
        %v1133 = vadd.f32 %v994, %v1131
        %1134 = vst.msk [vmem:[%s539] sm:$0xff] %vm547, %v1133
        %s1135 = sand.u32 %s401, 1
        %s1136 = scalar_lea.sflag [#allocation6], %s1135
        %s1137 = sand.u32 %s401, 1
        %s1138 = smul.addr %s1137, 8
        %s1139 = scalar_lea.vmem [#allocation5], %s1138
        // Predicated region
        $region89: #{tpu_custom_call.1} parent=87 // pred_check
          %p1140 = pneg %p411
        $region90: #{tpu_custom_call.1} parent=87 // pred_check_branch
          %1142 = sbr.rel (%p1140) target = $region92
        $region91: #{tpu_custom_call.1} parent=87 // pred_region
          %1144 = vsyncadd %s1136, 0
          %s1145 = smul.addr %s31, 8
          %s1146 = scalar_lea.hbm %s17, %s1145
          %s1148 = sshll.u32 %s1139, 4
          %s1149 = int_to_ptr.vmem [resolvable:$true] %s1148
          %s1150 = sshll.u32 %s1146, 4
          %s1151 = int_to_ptr.hbm [resolvable:$true] %s1150
          %1153 = dma.vmem_to_hbm [thread:$0]  %s1149, 128, %s1151, %s1136
        $region92: #{tpu_custom_call.1} parent=87 // pred_fallthru
          _
      $region88: #{tpu_custom_call.1} parent=5 // pred_fallthru
        _
      %p1154 = scmp.le.s32.totalorder 2, %s26
      // Predicated region
      $region93: #{tpu_custom_call.1} parent=5 // pred_check
        %p1155 = pneg %p1154
      $region94: #{tpu_custom_call.1} parent=5 // pred_check_branch
        %1157 = sbr.rel (%p1155) target = $region96
      $region95: #{tpu_custom_call.1} parent=5 // pred_region
        %s1158 = ssub.s32 %s26, 2
        // Predicated region
        $region97: #{tpu_custom_call.1} parent=95 // pred_check
          %p1159 = pneg %p417
        $region98: #{tpu_custom_call.1} parent=95 // pred_check_branch
          %1161 = sbr.rel (%p1159) target = $region100
        $region99: #{tpu_custom_call.1} parent=95 // pred_region
          %s1162 = sand.u32 %s402, 1
          %s1163 = scalar_lea.sflag [#allocation6], %s1162
          %s1164 = sand.u32 %s402, 1
          %s1165 = smul.addr %s1164, 8
          %s1166 = scalar_lea.vmem [#allocation5], %s1165
          %1168 = dma.done %s1163, 128
        $region100: #{tpu_custom_call.1} parent=95 // pred_fallthru
          _
      $region96: #{tpu_custom_call.1} parent=5 // pred_fallthru
        _
    $region6: #{tpu_custom_call.1} parent=1 // loop_footer
      %s30 = sadd.s32 1, %s26
    $region7: #{tpu_custom_call.1} parent=1 // loop_footer_branch
      %25 = sbr.rel target = $region3
    $region8: #{tpu_custom_call.1} parent=1 // loop_exit
      _
    %1169 = vsyncpa [#allocation6], 1
    %s1170 = scalar_lea.sflag [#allocation6], 1
    %1171 = vsyncpa %s1170, 1

</llo_original>
